<compile_context>
chip_gen: v5e
topology: v5e:2x2
jax: 0.10.0
libtpu: 0.0.40
codegen_flags: <defaults>
</compile_context>

<pallas_src>
import functools

import jax
import jax.numpy as jnp
from jax.experimental import pallas as pl
from jax.experimental.pallas import tpu as pltpu

_VMEM_LIMIT = 48 * 1024 * 1024  # < 64 MiB physical on v7x, > 16/32 MiB defaults


# ----------------------------------------------------------------------------
# helpers: row tiling with padding (no "tile_m = M" fallback)
# ----------------------------------------------------------------------------
def _row_tile(m):
    if m >= 256:
        return 256
    return max(8, ((m + 7) // 8) * 8)


def _pad_rows(x, tile):
    m = x.shape[0]
    mp = ((m + tile - 1) // tile) * tile
    if mp != m:
        x = jnp.pad(x, ((0, mp - m), (0, 0)))
    return x


def _pick_c_tile(c, max_tile=8):
    # chunk-tile must divide C and be a multiple of 8 (or equal C) so that the
    # (c_tile, W) / (c_tile, W*dh) blocks satisfy the (8,128) rule.
    for t in range(min(c, max_tile), 0, -1):
        if c % t == 0 and (t % 8 == 0 or t == c):
            return t
    return c


# ----------------------------------------------------------------------------
# Pallas kernels
# ----------------------------------------------------------------------------
def _linear_kernel(x_ref, w_ref, b_ref, o_ref):
    acc = jnp.dot(x_ref[...], w_ref[...], preferred_element_type=jnp.float32)
    acc = acc + b_ref[...]
    o_ref[...] = acc.astype(o_ref.dtype)


def linear(x, w, b=None):
    """y = x @ w (+ b).  x: (M, K), w: (K, N).  Tiled over rows.
    TODO(synk): add K/N tiling with an f32 accumulator for very large weights
    (v7x at full d_model/d_ffn); demo/medium sizes keep the whole weight in VMEM."""
    M, K = x.shape
    N = w.shape[1]
    if b is None:
        b = jnp.zeros((N,), x.dtype)
    tile_m = _row_tile(M)
    xp = _pad_rows(x, tile_m)
    Mp = xp.shape[0]
    out = pl.pallas_call(
        _linear_kernel,
        out_shape=jax.ShapeDtypeStruct((Mp, N), x.dtype),
        grid_spec=pltpu.PrefetchScalarGridSpec(
            num_scalar_prefetch=0,
            grid=(Mp // tile_m,),
            in_specs=[
                pl.BlockSpec((tile_m, K), lambda i: (i, 0)),
                pl.BlockSpec((K, N), lambda i: (0, 0)),
                pl.BlockSpec((1, N), lambda i: (0, 0)),
            ],
            out_specs=pl.BlockSpec((tile_m, N), lambda i: (i, 0)),
        ),
        compiler_params=pltpu.CompilerParams(
            dimension_semantics=("parallel",),
            vmem_limit_bytes=_VMEM_LIMIT),
    )(xp, w, b.reshape(1, N).astype(x.dtype))
    return out[:M] if Mp != M else out


def _layernorm_kernel(x_ref, g_ref, b_ref, o_ref, *, eps):
    x = x_ref[...].astype(jnp.float32)
    mean = jnp.mean(x, axis=-1, keepdims=True)
    var = jnp.mean(jnp.square(x - mean), axis=-1, keepdims=True)
    y = (x - mean) * jax.lax.rsqrt(var + eps)
    o_ref[...] = (y * g_ref[...] + b_ref[...]).astype(o_ref.dtype)


def layernorm(x, g, b, eps=1e-6):
    M, D = x.shape
    tile_m = _row_tile(M)
    xp = _pad_rows(x, tile_m)
    Mp = xp.shape[0]
    out = pl.pallas_call(
        functools.partial(_layernorm_kernel, eps=eps),
        out_shape=jax.ShapeDtypeStruct((Mp, D), x.dtype),
        grid_spec=pltpu.PrefetchScalarGridSpec(
            num_scalar_prefetch=0,
            grid=(Mp // tile_m,),
            in_specs=[
                pl.BlockSpec((tile_m, D), lambda i: (i, 0)),
                pl.BlockSpec((1, D), lambda i: (0, 0)),
                pl.BlockSpec((1, D), lambda i: (0, 0)),
            ],
            out_specs=pl.BlockSpec((tile_m, D), lambda i: (i, 0)),
        ),
        compiler_params=pltpu.CompilerParams(
            dimension_semantics=("parallel",),
            vmem_limit_bytes=_VMEM_LIMIT),
    )(xp, g.reshape(1, D), b.reshape(1, D))
    return out[:M] if Mp != M else out


def _ffn_ln_kernel(x_ref, r_ref, w1_ref, b1_ref, w2_ref, b2_ref, g_ref, bt_ref,
                   o_ref, *, eps):
    # fused: (src + attn) -> FFN(W1+ReLU+W2) -> + residual -> LayerNorm
    x = x_ref[...].astype(jnp.float32) + r_ref[...].astype(jnp.float32)
    h = jnp.dot(x, w1_ref[...], preferred_element_type=jnp.float32) + b1_ref[...]
    h = jnp.maximum(h, 0.0)
    y = jnp.dot(h, w2_ref[...], preferred_element_type=jnp.float32) + b2_ref[...]
    y = y + x
    mean = jnp.mean(y, axis=-1, keepdims=True)
    var = jnp.mean(jnp.square(y - mean), axis=-1, keepdims=True)
    yn = (y - mean) * jax.lax.rsqrt(var + eps)
    o_ref[...] = (yn * g_ref[...] + bt_ref[...]).astype(o_ref.dtype)


def ffn_residual_layernorm(x2, attn2, lp, eps=1e-6):
    """out = LayerNorm((x + attn) + FFN(x + attn)); one HBM pass over x/attn."""
    M, D = x2.shape
    F = lp["w_ff1"].shape[1]
    tile_m = _row_tile(M)
    xp = _pad_rows(x2, tile_m)
    ap = _pad_rows(attn2, tile_m)
    Mp = xp.shape[0]
    out = pl.pallas_call(
        functools.partial(_ffn_ln_kernel, eps=eps),
        out_shape=jax.ShapeDtypeStruct((Mp, D), x2.dtype),
        grid_spec=pltpu.PrefetchScalarGridSpec(
            num_scalar_prefetch=0,
            grid=(Mp // tile_m,),
            in_specs=[
                pl.BlockSpec((tile_m, D), lambda i: (i, 0)),
                pl.BlockSpec((tile_m, D), lambda i: (i, 0)),
                pl.BlockSpec((D, F), lambda i: (0, 0)),
                pl.BlockSpec((1, F), lambda i: (0, 0)),
                pl.BlockSpec((F, D), lambda i: (0, 0)),
                pl.BlockSpec((1, D), lambda i: (0, 0)),
                pl.BlockSpec((1, D), lambda i: (0, 0)),
                pl.BlockSpec((1, D), lambda i: (0, 0)),
            ],
            out_specs=pl.BlockSpec((tile_m, D), lambda i: (i, 0)),
        ),
        compiler_params=pltpu.CompilerParams(
            dimension_semantics=("parallel",),
            vmem_limit_bytes=_VMEM_LIMIT),
    )(xp, ap, lp["w_ff1"], lp["b_ff1"].reshape(1, F), lp["w_ff2"],
      lp["b_ff2"].reshape(1, D), lp["norm2_g"].reshape(1, D),
      lp["norm2_b"].reshape(1, D))
    return out[:M] if Mp != M else out


def _lsh_chunk_attn_kernel(qk_ref, qkp_ref, v_ref, vp_ref, tq_ref, tp_ref,
                           o_ref, lse_ref, *, scale):
    f32 = jnp.float32
    qk_c = qk_ref[0].astype(f32)        # (c_tile, W, dh) current chunks
    qk_p = qkp_ref[0, 0].astype(f32)    # (W, dh) chunk preceding this tile
    v_c = v_ref[0].astype(f32)
    v_p = vp_ref[0, 0].astype(f32)
    t_q = tq_ref[0]                     # (c_tile, W) sorted positions (queries)
    t_prev_tile = tp_ref[0]             # (c_tile, W) positions of previous tile

    # in-kernel look-one-back: chunk i also attends to keys/values of chunk i-1.
    # The chunk preceding the first chunk of this tile is the last chunk of the
    # previous tile (wraps), fetched via the prev BlockSpecs.
    qk_b = jnp.concatenate([qk_p[None], qk_c[:-1]], axis=0)
    v_b = jnp.concatenate([v_p[None], v_c[:-1]], axis=0)
    t_b = jnp.concatenate([t_prev_tile[-1:], t_q[:-1]], axis=0)

    def _l2norm(t):  # F.normalize(..., dim=-1, eps=1e-12)
        n = jnp.sqrt(jnp.sum(t * t, axis=-1, keepdims=True))
        return t / jnp.maximum(n, 1e-12)

    q = qk_c * scale  # fold scale into q (cheaper than scaling (W, 2W) dots)
    d1 = jnp.einsum("cie,cje->cij", q, _l2norm(qk_c), preferred_element_type=f32)
    d2 = jnp.einsum("cie,cje->cij", q, _l2norm(qk_b), preferred_element_type=f32)
    # mask attention to self (TOKEN_SELF_ATTN_VALUE = -5e4 in reformer-pytorch);
    # allow_duplicate_attention=True / attend_across_buckets=True -> no other masks.
    d1 = jnp.where(t_q[:, :, None] == t_q[:, None, :], -5e4, d1)
    d2 = jnp.where(t_q[:, :, None] == t_b[:, None, :], -5e4, d2)

    # single-pass softmax over [d1 | d2]: one exp per score + EUP reciprocal
    m = jnp.maximum(jnp.max(d1, axis=-1, keepdims=True),
                    jnp.max(d2, axis=-1, keepdims=True))
    e1 = jnp.exp(d1 - m)
    e2 = jnp.exp(d2 - m)
    s = (jnp.sum(e1, axis=-1, keepdims=True) +
         jnp.sum(e2, axis=-1, keepdims=True))
    inv = pl.reciprocal(s, approx=True)
    bo = (jnp.einsum("cij,cje->cie", e1, v_c, preferred_element_type=f32) +
          jnp.einsum("cij,cje->cie", e2, v_b, preferred_element_type=f32)) * inv
    o_ref[0] = bo.astype(o_ref.dtype)
    lse_ref[0] = (m[..., 0] + jnp.log(s[..., 0])).astype(lse_ref.dtype)


def lsh_chunk_attention(sqk, sv, st_sorted, *, bucket_size, scale):
    """sqk/sv: (BH, n_hashes*T, dh) sorted; st_sorted: (BH, n_hashes*T) int32."""
    BH, L, dh = sqk.shape
    W = bucket_size
    C = L // W
    assert W % 8 == 0, "bucket_size must be a multiple of 8 for TPU tiling"
    c_tile = _pick_c_tile(C)
    n_tiles = C // c_tile

    qk4 = sqk.reshape(BH, C, W, dh)
    v4 = sv.reshape(BH, C, W, dh)
    t3 = st_sorted.reshape(BH, C, W)

    def cur4(b, c):
        return (b, c, 0, 0)

    def prev4(b, c):  # single chunk preceding this tile (wraps), chunk-sized block
        return (b, (c * c_tile + C - 1) % C, 0, 0)

    def cur3(b, c):
        return (b, c, 0)

    def prev3(b, c):  # previous tile of the position table (wraps), tile-sized block
        return (b, (c + n_tiles - 1) % n_tiles, 0)

    bo, lse = pl.pallas_call(
        functools.partial(_lsh_chunk_attn_kernel, scale=scale),
        out_shape=(jax.ShapeDtypeStruct((BH, C, W, dh), sqk.dtype),
                   jax.ShapeDtypeStruct((BH, C, W), jnp.float32)),
        grid_spec=pltpu.PrefetchScalarGridSpec(
            num_scalar_prefetch=0,
            grid=(BH, n_tiles),
            in_specs=[
                pl.BlockSpec((1, c_tile, W, dh), cur4),
                pl.BlockSpec((1, 1, W, dh), prev4),
                pl.BlockSpec((1, c_tile, W, dh), cur4),
                pl.BlockSpec((1, 1, W, dh), prev4),
                pl.BlockSpec((1, c_tile, W), cur3),
                pl.BlockSpec((1, c_tile, W), prev3),
            ],
            out_specs=[
                pl.BlockSpec((1, c_tile, W, dh), cur4),
                pl.BlockSpec((1, c_tile, W), cur3),
            ],
        ),
        compiler_params=pltpu.CompilerParams(
            dimension_semantics=("parallel", "parallel"),
            vmem_limit_bytes=_VMEM_LIMIT),
    )(qk4, qk4, v4, v4, t3, t3)
    return bo.reshape(BH, L, dh), lse.reshape(BH, L)


# ----------------------------------------------------------------------------
# LSH self-attention (reformer-pytorch semantics; hashing/sort glue in JAX,
# projections + chunked attention in Pallas)
# ----------------------------------------------------------------------------
def lsh_self_attention(x, lp, rot_key, *, heads, bucket_size, n_hashes):
    B, T, D = x.shape
    dh = D // heads
    bh = B * heads
    x2 = x.reshape(B * T, D)

    # fused QK|V projection (both bias-free in LSHSelfAttention): one pass over x.
    qkv = linear(x2, lp["w_qkv"])                       # (B*T, 2D)
    qkv = qkv.reshape(B, T, 2, heads, dh).transpose(2, 0, 3, 1, 4)
    qk = qkv[0].reshape(bh, T, dh)
    v = qkv[1].reshape(bh, T, dh)

    n_buckets = T // bucket_size
    assert n_buckets % 2 == 0 and T % (2 * bucket_size) == 0

    # hashing (torch.randn rotations drawn per forward -> fixed-key jax.random)
    rot = jax.random.normal(rot_key, (1, dh, n_hashes, n_buckets // 2), dtype=x.dtype)
    rot = jnp.broadcast_to(rot, (bh, dh, n_hashes, n_buckets // 2))
    rotated = jnp.einsum("btf,bfhi->bhti", qk, rot)
    rotated = jnp.concatenate([rotated, -rotated], axis=-1)
    buckets = jnp.argmax(rotated, axis=-1)                       # (bh, n_hashes, T)
    offsets = (jnp.arange(n_hashes) * n_buckets).reshape(1, -1, 1)
    buckets = (buckets + offsets).reshape(bh, n_hashes * T)

    ticker = jnp.broadcast_to(jnp.arange(n_hashes * T)[None, :], (bh, n_hashes * T))
    buckets_and_t = T * buckets + (ticker % T)
    sticker = jnp.argsort(buckets_and_t, axis=-1).astype(jnp.int32)
    undo_sort = jnp.argsort(sticker, axis=-1).astype(jnp.int32)
    st = (sticker % T).astype(jnp.int32)

    # TODO(synk): the sorted gather / un-sort still use XLA take_along_axis; a
    # scalar-prefetch DMA gather inside the attention kernel would remove them.
    sqk = jnp.take_along_axis(qk, st[..., None], axis=1)
    sv = jnp.take_along_axis(v, st[..., None], axis=1)

    bo, slogits = lsh_chunk_attention(sqk, sv, st, bucket_size=bucket_size,
                                      scale=dh ** -0.5)

    o = jnp.take_along_axis(bo, undo_sort[..., None], axis=1)
    logits = jnp.take_along_axis(slogits, undo_sort, axis=1)
    o = o.reshape(bh, n_hashes, T, dh)
    logits = logits.reshape(bh, n_hashes, T, 1)
    probs = jnp.exp(logits - jax.scipy.special.logsumexp(logits, axis=1, keepdims=True))
    out = jnp.sum(o * probs, axis=1)                             # (bh, T, dh)

    out = out.reshape(B, heads, T, dh).transpose(0, 2, 1, 3).reshape(B * T, D)
    out = linear(out, lp["w_out"], lp["b_out"])                  # to_out (bias=True)
    return out.reshape(B, T, D)


# ----------------------------------------------------------------------------
# Reformer encoder layer / encoder (normalize_before=False; inference: dropout
# is identity; LayerNorm eps=1e-6 as in the SpeechBrain module).
# ----------------------------------------------------------------------------
def reformer_encoder_layer(src, lp, rot_key, *, heads, bucket_size, n_hashes):
    B, T, D = src.shape
    # normalize_before=False => norm1 is never applied (mirrors the PyTorch code).
    # TODO(synk): longformer_src_padder is an identity here because T is chosen
    # divisible by 2*bucket_size; general padding of ragged T not implemented.
    attn_out = lsh_self_attention(src, lp, rot_key, heads=heads,
                                  bucket_size=bucket_size, n_hashes=n_hashes)
    out = ffn_residual_layernorm(src.reshape(B * T, D),
                                 attn_out.reshape(B * T, D), lp, eps=1e-6)
    # return_attn=False in LSHSelfAttention -> attention is an empty tensor
    return out.reshape(B, T, D), jnp.zeros((0,), src.dtype)


def reformer_encoder(src, params, rot_keys, *, heads, bucket_size, n_hashes):
    out = src
    attn_lst = []
    for lp, rk in zip(params["layers"], rot_keys):
        out, attn = reformer_encoder_layer(out, lp, rk, heads=heads,
                                           bucket_size=bucket_size,
                                           n_hashes=n_hashes)
        attn_lst.append(attn)
    B, T, D = out.shape
    out = layernorm(out.reshape(B * T, D), params["norm_g"], params["norm_b"],
                    eps=1e-6).reshape(B, T, D)
    return out, attn_lst


def init_params(key, num_layers, d_model, d_ffn):
    layers = []
    s = 0.05
    for _ in range(num_layers):
        key, *ks = jax.random.split(key, 5)
        layers.append(dict(
            w_qkv=s * jax.random.normal(ks[0], (d_model, 2 * d_model), jnp.float32),
            w_out=s * jax.random.normal(ks[1], (d_model, d_model), jnp.float32),
            b_out=jnp.zeros((d_model,), jnp.float32),
            w_ff1=s * jax.random.normal(ks[2], (d_model, d_ffn), jnp.float32),
            b_ff1=jnp.zeros((d_ffn,), jnp.float32),
            w_ff2=s * jax.random.normal(ks[3], (d_ffn, d_model), jnp.float32),
            b_ff2=jnp.zeros((d_model,), jnp.float32),
            norm2_g=jnp.ones((d_model,), jnp.float32),
            norm2_b=jnp.zeros((d_model,), jnp.float32),
        ))
    return dict(layers=layers,
                norm_g=jnp.ones((d_model,), jnp.float32),
                norm_b=jnp.zeros((d_model,), jnp.float32))


if __name__ == "__main__":
    B, T, D = 2, 64, 32          # (batch, time, d_model)
    nhead, d_ffn = 4, 64
    bucket_size, n_hashes, num_layers = 8, 2, 2

    key = jax.random.PRNGKey(0)
    kx, kp, kr = jax.random.split(key, 3)
    src = jax.random.normal(kx, (B, T, D), jnp.float32)
    params = init_params(kp, num_layers, D, d_ffn)
    rot_keys = list(jax.random.split(kr, num_layers))

    fwd = jax.jit(functools.partial(reformer_encoder, heads=nhead,
                                    bucket_size=bucket_size, n_hashes=n_hashes))
    out, attn_lst = fwd(src, params, rot_keys)
    jax.block_until_ready(out)
    assert out.shape == (B, T, D) and len(attn_lst) == num_layers
    print("KERNEL_OK")
</pallas_src>

<mosaic_0001>
module attributes {stable_mosaic.version = 11 : i64} {
  func.func @_linear_kernel(%arg0: i32, %arg1: memref<128x32xf32, #tpu.memory_space<vmem>>, %arg2: memref<32x64xf32, #tpu.memory_space<vmem>>, %arg3: memref<1x64xf32, #tpu.memory_space<vmem>>, %arg4: memref<128x64xf32, #tpu.memory_space<vmem>>) attributes {dimension_semantics = [#tpu.dimension_semantics<parallel>], iteration_bounds = array<i64: 1>, scalar_prefetch = 0 : i64, scratch_operands = 0 : i64, tpu.core_type = #tpu.core_type<tc>, window_params = [{transform_indices = @transform_0, window_bounds = array<i64: 128, 32>}, {pipeline_mode = #tpu.pipeline_mode<synchronous>, transform_indices = @transform_1, window_bounds = array<i64: 32, 64>}, {pipeline_mode = #tpu.pipeline_mode<synchronous>, transform_indices = @transform_2, window_bounds = array<i64: 1, 64>}, {transform_indices = @transform_3, window_bounds = array<i64: 128, 64>}]} {
    %c0 = arith.constant 0 : index
    %c0_0 = arith.constant 0 : index
    %0 = vector.load %arg1[%c0, %c0_0] : memref<128x32xf32, #tpu.memory_space<vmem>>, vector<128x32xf32>
    %c0_1 = arith.constant 0 : index
    %c0_2 = arith.constant 0 : index
    %1 = vector.load %arg2[%c0_1, %c0_2] : memref<32x64xf32, #tpu.memory_space<vmem>>, vector<32x64xf32>
    %cst = arith.constant dense<0.000000e+00> : vector<128x64xf32>
    %2 = tpu.matmul %0, %1, %cst {dimension_numbers = #tpu.dot_dimension_numbers<[1], [0], [0], [1], [0, 0, 1, 1], [], []>} : vector<128x32xf32>, vector<32x64xf32>, vector<128x64xf32> -> vector<128x64xf32>
    %c0_3 = arith.constant 0 : index
    %c0_4 = arith.constant 0 : index
    %3 = vector.load %arg3[%c0_3, %c0_4] : memref<1x64xf32, #tpu.memory_space<vmem>>, vector<1x64xf32>
    %4 = vector.broadcast %3 : vector<1x64xf32> to vector<128x64xf32>
    %5 = arith.addf %2, %4 : vector<128x64xf32>
    %c0_5 = arith.constant 0 : index
    %c0_6 = arith.constant 0 : index
    %6 = vector.load %arg4[%c0_5, %c0_6] : memref<128x64xf32, #tpu.memory_space<vmem>>, vector<128x64xf32>
    tpu.vector_store %arg4[%c0_5, %c0_6], %5 {strides = array<i32>} : memref<128x64xf32, #tpu.memory_space<vmem>>, vector<128x64xf32>,
    return
  }
  func.func @transform_0(%arg0: i32) -> (i32, i32) {
    %c0_i32 = arith.constant 0 : i32
    %c0_i32_0 = arith.constant 0 : i32
    return %arg0, %c0_i32 : i32, i32
  }
  func.func @transform_1(%arg0: i32) -> (i32, i32) {
    %c0_i32 = arith.constant 0 : i32
    %c0_i32_0 = arith.constant 0 : i32
    %c0_i32_1 = arith.constant 0 : i32
    return %c0_i32, %c0_i32_0 : i32, i32
  }
  func.func @transform_2(%arg0: i32) -> (i32, i32) {
    %c0_i32 = arith.constant 0 : i32
    %c0_i32_0 = arith.constant 0 : i32
    %c0_i32_1 = arith.constant 0 : i32
    return %c0_i32, %c0_i32_0 : i32, i32
  }
  func.func @transform_3(%arg0: i32) -> (i32, i32) {
    %c0_i32 = arith.constant 0 : i32
    %c0_i32_0 = arith.constant 0 : i32
    return %arg0, %c0_i32 : i32, i32
  }
}

module attributes {stable_mosaic.version = 11 : i64} {
  func.func @_lsh_chunk_attn_kernel(%arg0: i32, %arg1: i32, %arg2: memref<1x8x8x8xf32, #tpu.memory_space<vmem>>, %arg3: memref<1x1x8x8xf32, #tpu.memory_space<vmem>>, %arg4: memref<1x8x8x8xf32, #tpu.memory_space<vmem>>, %arg5: memref<1x1x8x8xf32, #tpu.memory_space<vmem>>, %arg6: memref<1x8x8xi32, #tpu.memory_space<vmem>>, %arg7: memref<1x8x8xi32, #tpu.memory_space<vmem>>, %arg8: memref<1x8x8x8xf32, #tpu.memory_space<vmem>>, %arg9: memref<1x8x8xf32, #tpu.memory_space<vmem>>) attributes {dimension_semantics = [#tpu.dimension_semantics<parallel>, #tpu.dimension_semantics<parallel>], iteration_bounds = array<i64: 8, 2>, scalar_prefetch = 0 : i64, scratch_operands = 0 : i64, tpu.core_type = #tpu.core_type<tc>, window_params = [{transform_indices = @transform_0, window_bounds = array<i64: 1, 8, 8, 8>}, {transform_indices = @transform_1, window_bounds = array<i64: 1, 1, 8, 8>}, {transform_indices = @transform_2, window_bounds = array<i64: 1, 8, 8, 8>}, {transform_indices = @transform_3, window_bounds = array<i64: 1, 1, 8, 8>}, {transform_indices = @transform_4, window_bounds = array<i64: 1, 8, 8>}, {transform_indices = @transform_5, window_bounds = array<i64: 1, 8, 8>}, {transform_indices = @transform_6, window_bounds = array<i64: 1, 8, 8, 8>}, {transform_indices = @transform_7, window_bounds = array<i64: 1, 8, 8>}]} {
    %c0 = arith.constant 0 : index
    %c0_0 = arith.constant 0 : index
    %c0_1 = arith.constant 0 : index
    %c0_2 = arith.constant 0 : index
    %0 = vector.load %arg2[%c0, %c0_0, %c0_1, %c0_2] : memref<1x8x8x8xf32, #tpu.memory_space<vmem>>, vector<1x8x8x8xf32>
    %1 = vector.shape_cast %0 : vector<1x8x8x8xf32> to vector<8x8x8xf32>
    %c0_3 = arith.constant 0 : index
    %c0_4 = arith.constant 0 : index
    %c0_5 = arith.constant 0 : index
    %c0_6 = arith.constant 0 : index
    %2 = vector.load %arg3[%c0_3, %c0_4, %c0_5, %c0_6] : memref<1x1x8x8xf32, #tpu.memory_space<vmem>>, vector<1x1x8x8xf32>
    %3 = vector.shape_cast %2 : vector<1x1x8x8xf32> to vector<8x8xf32>
    %c0_7 = arith.constant 0 : index
    %c0_8 = arith.constant 0 : index
    %c0_9 = arith.constant 0 : index
    %c0_10 = arith.constant 0 : index
    %4 = vector.load %arg4[%c0_7, %c0_8, %c0_9, %c0_10] : memref<1x8x8x8xf32, #tpu.memory_space<vmem>>, vector<1x8x8x8xf32>
    %5 = vector.shape_cast %4 : vector<1x8x8x8xf32> to vector<8x8x8xf32>
    %c0_11 = arith.constant 0 : index
    %c0_12 = arith.constant 0 : index
    %c0_13 = arith.constant 0 : index
    %c0_14 = arith.constant 0 : index
    %6 = vector.load %arg5[%c0_11, %c0_12, %c0_13, %c0_14] : memref<1x1x8x8xf32, #tpu.memory_space<vmem>>, vector<1x1x8x8xf32>
    %7 = vector.shape_cast %6 : vector<1x1x8x8xf32> to vector<8x8xf32>
    %c0_15 = arith.constant 0 : index
    %c0_16 = arith.constant 0 : index
    %c0_17 = arith.constant 0 : index
    %8 = vector.load %arg6[%c0_15, %c0_16, %c0_17] : memref<1x8x8xi32, #tpu.memory_space<vmem>>, vector<1x8x8xi32>
    %9 = vector.shape_cast %8 : vector<1x8x8xi32> to vector<8x8xi32>
    %c0_18 = arith.constant 0 : index
    %c0_19 = arith.constant 0 : index
    %c0_20 = arith.constant 0 : index
    %10 = vector.load %arg7[%c0_18, %c0_19, %c0_20] : memref<1x8x8xi32, #tpu.memory_space<vmem>>, vector<1x8x8xi32>
    %11 = vector.shape_cast %10 : vector<1x8x8xi32> to vector<8x8xi32>
    %12 = vector.shape_cast %3 : vector<8x8xf32> to vector<1x8x8xf32>
    %13 = vector.extract_strided_slice %1 {offsets = [0, 0, 0], sizes = [7, 8, 8], strides = [1, 1, 1]} : vector<8x8x8xf32> to vector<7x8x8xf32>
    %14 = tpu.concatenate %12, %13 in 0 : vector<1x8x8xf32>, vector<7x8x8xf32> -> vector<8x8x8xf32>
    %15 = vector.shape_cast %7 : vector<8x8xf32> to vector<1x8x8xf32>
    %16 = vector.extract_strided_slice %5 {offsets = [0, 0, 0], sizes = [7, 8, 8], strides = [1, 1, 1]} : vector<8x8x8xf32> to vector<7x8x8xf32>
    %17 = tpu.concatenate %15, %16 in 0 : vector<1x8x8xf32>, vector<7x8x8xf32> -> vector<8x8x8xf32>
    %18 = vector.extract_strided_slice %11 {offsets = [7, 0], sizes = [1, 8], strides = [1, 1]} : vector<8x8xi32> to vector<1x8xi32>
    %19 = vector.extract_strided_slice %9 {offsets = [0, 0], sizes = [7, 8], strides = [1, 1]} : vector<8x8xi32> to vector<7x8xi32>
    %20 = tpu.concatenate %18, %19 in 0 : vector<1x8xi32>, vector<7x8xi32> -> vector<8x8xi32>
    %cst = arith.constant 0.353553385 : f32
    %21 = vector.broadcast %cst : f32 to vector<8x8x8xf32>
    %22 = arith.mulf %1, %21 : vector<8x8x8xf32>
    %23 = arith.mulf %1, %1 : vector<8x8x8xf32>
    %cst_21 = arith.constant dense<0.000000e+00> : vector<8x8xf32>
    %24 = vector.multi_reduction <add>, %23, %cst_21 [2] : vector<8x8x8xf32> to vector<8x8xf32>
    %25 = vector.shape_cast %24 : vector<8x8xf32> to vector<8x8x1xf32>
    %26 = math.sqrt %25 : vector<8x8x1xf32>
    %cst_22 = arith.constant 9.99999996E-13 : f32
    %27 = vector.broadcast %cst_22 : f32 to vector<8x8x1xf32>
    %28 = arith.maximumf %26, %27 : vector<8x8x1xf32>
    %29 = vector.broadcast %28 : vector<8x8x1xf32> to vector<8x8x8xf32>
    %30 = arith.divf %1, %29 : vector<8x8x8xf32>
    "tpu.trace_start"() <{level = 10 : i32, message = "cie,cje->cij"}> : () -> ()
    %cst_23 = arith.constant dense<0.000000e+00> : vector<8x8x8xf32>
    %31 = tpu.matmul %22, %30, %cst_23 {dimension_numbers = #tpu.dot_dimension_numbers<[2], [2], [1], [1], [0, 0, 0, 1, 1, 1], [0], [0]>} : vector<8x8x8xf32>, vector<8x8x8xf32>, vector<8x8x8xf32> -> vector<8x8x8xf32>
    "tpu.trace_stop"() : () -> ()
    %32 = arith.mulf %14, %14 : vector<8x8x8xf32>
    %cst_24 = arith.constant dense<0.000000e+00> : vector<8x8xf32>
    %33 = vector.multi_reduction <add>, %32, %cst_24 [2] : vector<8x8x8xf32> to vector<8x8xf32>
    %34 = vector.shape_cast %33 : vector<8x8xf32> to vector<8x8x1xf32>
    %35 = math.sqrt %34 : vector<8x8x1xf32>
    %cst_25 = arith.constant 9.99999996E-13 : f32
    %36 = vector.broadcast %cst_25 : f32 to vector<8x8x1xf32>
    %37 = arith.maximumf %35, %36 : vector<8x8x1xf32>
    %38 = vector.broadcast %37 : vector<8x8x1xf32> to vector<8x8x8xf32>
    %39 = arith.divf %14, %38 : vector<8x8x8xf32>
    "tpu.trace_start"() <{level = 10 : i32, message = "cie,cje->cij"}> : () -> ()
    %cst_26 = arith.constant dense<0.000000e+00> : vector<8x8x8xf32>
    %40 = tpu.matmul %22, %39, %cst_26 {dimension_numbers = #tpu.dot_dimension_numbers<[2], [2], [1], [1], [0, 0, 0, 1, 1, 1], [0], [0]>} : vector<8x8x8xf32>, vector<8x8x8xf32>, vector<8x8x8xf32> -> vector<8x8x8xf32>
    "tpu.trace_stop"() : () -> ()
    %41 = vector.shape_cast %9 : vector<8x8xi32> to vector<8x8x1xi32>
    %42 = vector.shape_cast %9 : vector<8x8xi32> to vector<8x1x8xi32>
    %43 = vector.broadcast %41 : vector<8x8x1xi32> to vector<8x8x8xi32>
    %44 = vector.broadcast %42 : vector<8x1x8xi32> to vector<8x8x8xi32>
    %45 = arith.cmpi eq, %43, %44 : vector<8x8x8xi32>
    %cst_27 = arith.constant -5.000000e+04 : f32
    %46 = vector.broadcast %cst_27 : f32 to vector<8x8x8xf32>
    %47 = arith.select %45, %46, %31 : vector<8x8x8xi1>, vector<8x8x8xf32>
    %48 = vector.shape_cast %9 : vector<8x8xi32> to vector<8x8x1xi32>
    %49 = vector.shape_cast %20 : vector<8x8xi32> to vector<8x1x8xi32>
    %50 = vector.broadcast %48 : vector<8x8x1xi32> to vector<8x8x8xi32>
    %51 = vector.broadcast %49 : vector<8x1x8xi32> to vector<8x8x8xi32>
    %52 = arith.cmpi eq, %50, %51 : vector<8x8x8xi32>
    %cst_28 = arith.constant -5.000000e+04 : f32
    %53 = vector.broadcast %cst_28 : f32 to vector<8x8x8xf32>
    %54 = arith.select %52, %53, %40 : vector<8x8x8xi1>, vector<8x8x8xf32>
    %cst_29 = arith.constant dense<0xFF800000> : vector<8x8xf32>
    %55 = vector.multi_reduction <maximumf>, %47, %cst_29 [2] : vector<8x8x8xf32> to vector<8x8xf32>
    %56 = vector.shape_cast %55 : vector<8x8xf32> to vector<8x8x1xf32>
    %cst_30 = arith.constant dense<0xFF800000> : vector<8x8xf32>
    %57 = vector.multi_reduction <maximumf>, %54, %cst_30 [2] : vector<8x8x8xf32> to vector<8x8xf32>
    %58 = vector.shape_cast %57 : vector<8x8xf32> to vector<8x8x1xf32>
    %59 = arith.maximumf %56, %58 : vector<8x8x1xf32>
    %60 = vector.broadcast %59 : vector<8x8x1xf32> to vector<8x8x8xf32>
    %61 = arith.subf %47, %60 : vector<8x8x8xf32>
    %62 = math.exp %61 : vector<8x8x8xf32>
    %63 = vector.broadcast %59 : vector<8x8x1xf32> to vector<8x8x8xf32>
    %64 = arith.subf %54, %63 : vector<8x8x8xf32>
    %65 = math.exp %64 : vector<8x8x8xf32>
    %cst_31 = arith.constant dense<0.000000e+00> : vector<8x8xf32>
    %66 = vector.multi_reduction <add>, %62, %cst_31 [2] : vector<8x8x8xf32> to vector<8x8xf32>
    %67 = vector.shape_cast %66 : vector<8x8xf32> to vector<8x8x1xf32>
    %cst_32 = arith.constant dense<0.000000e+00> : vector<8x8xf32>
    %68 = vector.multi_reduction <add>, %65, %cst_32 [2] : vector<8x8x8xf32> to vector<8x8xf32>
    %69 = vector.shape_cast %68 : vector<8x8xf32> to vector<8x8x1xf32>
    %70 = arith.addf %67, %69 : vector<8x8x1xf32>
    %71 = tpu.reciprocal %70 {approx = true} : vector<8x8x1xf32> -> vector<8x8x1xf32>
    "tpu.trace_start"() <{level = 10 : i32, message = "cij,cje->cie"}> : () -> ()
    %cst_33 = arith.constant dense<0.000000e+00> : vector<8x8x8xf32>
    %72 = tpu.matmul %62, %5, %cst_33 {dimension_numbers = #tpu.dot_dimension_numbers<[2], [1], [1], [2], [0, 0, 0, 1, 1, 2], [0], [0]>} : vector<8x8x8xf32>, vector<8x8x8xf32>, vector<8x8x8xf32> -> vector<8x8x8xf32>
    %cst_34 = arith.constant dense<0.000000e+00> : vector<8x8x8xf32>
    %73 = tpu.matmul %65, %17, %cst_34 {dimension_numbers = #tpu.dot_dimension_numbers<[2], [1], [1], [2], [0, 0, 0, 1, 1, 2], [0], [0]>} : vector<8x8x8xf32>, vector<8x8x8xf32>, vector<8x8x8xf32> -> vector<8x8x8xf32>
    "tpu.trace_stop"() : () -> ()
    %74 = arith.addf %72, %73 : vector<8x8x8xf32>
    %75 = vector.broadcast %71 : vector<8x8x1xf32> to vector<8x8x8xf32>
    %76 = arith.mulf %74, %75 : vector<8x8x8xf32>
    %c0_35 = arith.constant 0 : index
    %c0_36 = arith.constant 0 : index
    %c0_37 = arith.constant 0 : index
    %c0_38 = arith.constant 0 : index
    %77 = vector.load %arg8[%c0_35, %c0_36, %c0_37, %c0_38] : memref<1x8x8x8xf32, #tpu.memory_space<vmem>>, vector<1x8x8x8xf32>
    %78 = vector.shape_cast %77 : vector<1x8x8x8xf32> to vector<8x8x8xf32>
    %79 = vector.shape_cast %76 : vector<8x8x8xf32> to vector<1x8x8x8xf32>
    tpu.vector_store %arg8[%c0_35, %c0_36, %c0_37, %c0_38], %79 {strides = array<i32>} : memref<1x8x8x8xf32, #tpu.memory_space<vmem>>, vector<1x8x8x8xf32>,
    %80 = vector.shape_cast %59 : vector<8x8x1xf32> to vector<8x8xf32>
    %81 = vector.shape_cast %70 : vector<8x8x1xf32> to vector<8x8xf32>
    %82 = math.log %81 : vector<8x8xf32>
    %83 = arith.addf %80, %82 : vector<8x8xf32>
    %c0_39 = arith.constant 0 : index
    %c0_40 = arith.constant 0 : index
    %c0_41 = arith.constant 0 : index
    %84 = vector.load %arg9[%c0_39, %c0_40, %c0_41] : memref<1x8x8xf32, #tpu.memory_space<vmem>>, vector<1x8x8xf32>
    %85 = vector.shape_cast %84 : vector<1x8x8xf32> to vector<8x8xf32>
    %86 = vector.shape_cast %83 : vector<8x8xf32> to vector<1x8x8xf32>
    tpu.vector_store %arg9[%c0_39, %c0_40, %c0_41], %86 {strides = array<i32>} : memref<1x8x8xf32, #tpu.memory_space<vmem>>, vector<1x8x8xf32>,
    return
  }
  func.func @transform_0(%arg0: i32, %arg1: i32) -> (i32, i32, i32, i32) {
    %c0_i32 = arith.constant 0 : i32
    %c0_i32_0 = arith.constant 0 : i32
    %c0_i32_1 = arith.constant 0 : i32
    return %arg0, %arg1, %c0_i32, %c0_i32_0 : i32, i32, i32, i32
  }
  func.func @transform_1(%arg0: i32, %arg1: i32) -> (i32, i32, i32, i32) {
    %c8_i32 = arith.constant 8 : i32
    %0 = arith.muli %arg1, %c8_i32 : i32
    %c16_i32 = arith.constant 16 : i32
    %1 = arith.addi %0, %c16_i32 : i32
    %c1_i32 = arith.constant 1 : i32
    %2 = arith.subi %1, %c1_i32 : i32
    %c16_i32_0 = arith.constant 16 : i32
    %c0_i32 = arith.constant 0 : i32
    %3 = arith.cmpi eq, %c16_i32_0, %c0_i32 : i32
    %c1_i32_1 = arith.constant 1 : i32
    %4 = arith.select %3, %c1_i32_1, %c16_i32_0 : i32
    %5 = arith.remsi %2, %4 : i32
    %c0_i32_2 = arith.constant 0 : i32
    %6 = arith.cmpi ne, %5, %c0_i32_2 : i32
    %c0_i32_3 = arith.constant 0 : i32
    %7 = arith.cmpi slt, %5, %c0_i32_3 : i32
    %c0_i32_4 = arith.constant 0 : i32
    %8 = arith.cmpi slt, %4, %c0_i32_4 : i32
    %9 = arith.xori %7, %8 : i1
    %10 = arith.andi %9, %6 : i1
    %11 = arith.addi %5, %4 : i32
    %12 = arith.select %10, %11, %5 : i32
    %c0_i32_5 = arith.constant 0 : i32
    %c0_i32_6 = arith.constant 0 : i32
    %c0_i32_7 = arith.constant 0 : i32
    return %arg0, %12, %c0_i32_5, %c0_i32_6 : i32, i32, i32, i32
  }
  func.func @transform_2(%arg0: i32, %arg1: i32) -> (i32, i32, i32, i32) {
    %c0_i32 = arith.constant 0 : i32
    %c0_i32_0 = arith.constant 0 : i32
    %c0_i32_1 = arith.constant 0 : i32
    return %arg0, %arg1, %c0_i32, %c0_i32_0 : i32, i32, i32, i32
  }
  func.func @transform_3(%arg0: i32, %arg1: i32) -> (i32, i32, i32, i32) {
    %c8_i32 = arith.constant 8 : i32
    %0 = arith.muli %arg1, %c8_i32 : i32
    %c16_i32 = arith.constant 16 : i32
    %1 = arith.addi %0, %c16_i32 : i32
    %c1_i32 = arith.constant 1 : i32
    %2 = arith.subi %1, %c1_i32 : i32
    %c16_i32_0 = arith.constant 16 : i32
    %c0_i32 = arith.constant 0 : i32
    %3 = arith.cmpi eq, %c16_i32_0, %c0_i32 : i32
    %c1_i32_1 = arith.constant 1 : i32
    %4 = arith.select %3, %c1_i32_1, %c16_i32_0 : i32
    %5 = arith.remsi %2, %4 : i32
    %c0_i32_2 = arith.constant 0 : i32
    %6 = arith.cmpi ne, %5, %c0_i32_2 : i32
    %c0_i32_3 = arith.constant 0 : i32
    %7 = arith.cmpi slt, %5, %c0_i32_3 : i32
    %c0_i32_4 = arith.constant 0 : i32
    %8 = arith.cmpi slt, %4, %c0_i32_4 : i32
    %9 = arith.xori %7, %8 : i1
    %10 = arith.andi %9, %6 : i1
    %11 = arith.addi %5, %4 : i32
    %12 = arith.select %10, %11, %5 : i32
    %c0_i32_5 = arith.constant 0 : i32
    %c0_i32_6 = arith.constant 0 : i32
    %c0_i32_7 = arith.constant 0 : i32
    return %arg0, %12, %c0_i32_5, %c0_i32_6 : i32, i32, i32, i32
  }
  func.func @transform_4(%arg0: i32, %arg1: i32) -> (i32, i32, i32) {
    %c0_i32 = arith.constant 0 : i32
    %c0_i32_0 = arith.constant 0 : i32
    return %arg0, %arg1, %c0_i32 : i32, i32, i32
  }
  func.func @transform_5(%arg0: i32, %arg1: i32) -> (i32, i32, i32) {
    %c2_i32 = arith.constant 2 : i32
    %0 = arith.addi %arg1, %c2_i32 : i32
    %c1_i32 = arith.constant 1 : i32
    %1 = arith.subi %0, %c1_i32 : i32
    %c2_i32_0 = arith.constant 2 : i32
    %c0_i32 = arith.constant 0 : i32
    %2 = arith.cmpi eq, %c2_i32_0, %c0_i32 : i32
    %c1_i32_1 = arith.constant 1 : i32
    %3 = arith.select %2, %c1_i32_1, %c2_i32_0 : i32
    %4 = arith.remsi %1, %3 : i32
    %c0_i32_2 = arith.constant 0 : i32
    %5 = arith.cmpi ne, %4, %c0_i32_2 : i32
    %c0_i32_3 = arith.constant 0 : i32
    %6 = arith.cmpi slt, %4, %c0_i32_3 : i32
    %c0_i32_4 = arith.constant 0 : i32
    %7 = arith.cmpi slt, %3, %c0_i32_4 : i32
    %8 = arith.xori %6, %7 : i1
    %9 = arith.andi %8, %5 : i1
    %10 = arith.addi %4, %3 : i32
    %11 = arith.select %9, %10, %4 : i32
    %c0_i32_5 = arith.constant 0 : i32
    %c0_i32_6 = arith.constant 0 : i32
    return %arg0, %11, %c0_i32_5 : i32, i32, i32
  }
  func.func @transform_6(%arg0: i32, %arg1: i32) -> (i32, i32, i32, i32) {
    %c0_i32 = arith.constant 0 : i32
    %c0_i32_0 = arith.constant 0 : i32
    %c0_i32_1 = arith.constant 0 : i32
    return %arg0, %arg1, %c0_i32, %c0_i32_0 : i32, i32, i32, i32
  }
  func.func @transform_7(%arg0: i32, %arg1: i32) -> (i32, i32, i32) {
    %c0_i32 = arith.constant 0 : i32
    %c0_i32_0 = arith.constant 0 : i32
    return %arg0, %arg1, %c0_i32 : i32, i32, i32
  }
}

module attributes {stable_mosaic.version = 11 : i64} {
  func.func @_linear_kernel(%arg0: i32, %arg1: memref<128x32xf32, #tpu.memory_space<vmem>>, %arg2: memref<32x32xf32, #tpu.memory_space<vmem>>, %arg3: memref<1x32xf32, #tpu.memory_space<vmem>>, %arg4: memref<128x32xf32, #tpu.memory_space<vmem>>) attributes {dimension_semantics = [#tpu.dimension_semantics<parallel>], iteration_bounds = array<i64: 1>, scalar_prefetch = 0 : i64, scratch_operands = 0 : i64, tpu.core_type = #tpu.core_type<tc>, window_params = [{transform_indices = @transform_0, window_bounds = array<i64: 128, 32>}, {pipeline_mode = #tpu.pipeline_mode<synchronous>, transform_indices = @transform_1, window_bounds = array<i64: 32, 32>}, {pipeline_mode = #tpu.pipeline_mode<synchronous>, transform_indices = @transform_2, window_bounds = array<i64: 1, 32>}, {transform_indices = @transform_3, window_bounds = array<i64: 128, 32>}]} {
    %c0 = arith.constant 0 : index
    %c0_0 = arith.constant 0 : index
    %0 = vector.load %arg1[%c0, %c0_0] : memref<128x32xf32, #tpu.memory_space<vmem>>, vector<128x32xf32>
    %c0_1 = arith.constant 0 : index
    %c0_2 = arith.constant 0 : index
    %1 = vector.load %arg2[%c0_1, %c0_2] : memref<32x32xf32, #tpu.memory_space<vmem>>, vector<32x32xf32>
    %cst = arith.constant dense<0.000000e+00> : vector<128x32xf32>
    %2 = tpu.matmul %0, %1, %cst {dimension_numbers = #tpu.dot_dimension_numbers<[1], [0], [0], [1], [0, 0, 1, 1], [], []>} : vector<128x32xf32>, vector<32x32xf32>, vector<128x32xf32> -> vector<128x32xf32>
    %c0_3 = arith.constant 0 : index
    %c0_4 = arith.constant 0 : index
    %3 = vector.load %arg3[%c0_3, %c0_4] : memref<1x32xf32, #tpu.memory_space<vmem>>, vector<1x32xf32>
    %4 = vector.broadcast %3 : vector<1x32xf32> to vector<128x32xf32>
    %5 = arith.addf %2, %4 : vector<128x32xf32>
    %c0_5 = arith.constant 0 : index
    %c0_6 = arith.constant 0 : index
    %6 = vector.load %arg4[%c0_5, %c0_6] : memref<128x32xf32, #tpu.memory_space<vmem>>, vector<128x32xf32>
    tpu.vector_store %arg4[%c0_5, %c0_6], %5 {strides = array<i32>} : memref<128x32xf32, #tpu.memory_space<vmem>>, vector<128x32xf32>,
    return
  }
  func.func @transform_0(%arg0: i32) -> (i32, i32) {
    %c0_i32 = arith.constant 0 : i32
    %c0_i32_0 = arith.constant 0 : i32
    return %arg0, %c0_i32 : i32, i32
  }
  func.func @transform_1(%arg0: i32) -> (i32, i32) {
    %c0_i32 = arith.constant 0 : i32
    %c0_i32_0 = arith.constant 0 : i32
    %c0_i32_1 = arith.constant 0 : i32
    return %c0_i32, %c0_i32_0 : i32, i32
  }
  func.func @transform_2(%arg0: i32) -> (i32, i32) {
    %c0_i32 = arith.constant 0 : i32
    %c0_i32_0 = arith.constant 0 : i32
    %c0_i32_1 = arith.constant 0 : i32
    return %c0_i32, %c0_i32_0 : i32, i32
  }
  func.func @transform_3(%arg0: i32) -> (i32, i32) {
    %c0_i32 = arith.constant 0 : i32
    %c0_i32_0 = arith.constant 0 : i32
    return %arg0, %c0_i32 : i32, i32
  }
}

module attributes {stable_mosaic.version = 11 : i64} {
  func.func @_ffn_ln_kernel(%arg0: i32, %arg1: memref<128x32xf32, #tpu.memory_space<vmem>>, %arg2: memref<128x32xf32, #tpu.memory_space<vmem>>, %arg3: memref<32x64xf32, #tpu.memory_space<vmem>>, %arg4: memref<1x64xf32, #tpu.memory_space<vmem>>, %arg5: memref<64x32xf32, #tpu.memory_space<vmem>>, %arg6: memref<1x32xf32, #tpu.memory_space<vmem>>, %arg7: memref<1x32xf32, #tpu.memory_space<vmem>>, %arg8: memref<1x32xf32, #tpu.memory_space<vmem>>, %arg9: memref<128x32xf32, #tpu.memory_space<vmem>>) attributes {dimension_semantics = [#tpu.dimension_semantics<parallel>], iteration_bounds = array<i64: 1>, scalar_prefetch = 0 : i64, scratch_operands = 0 : i64, tpu.core_type = #tpu.core_type<tc>, window_params = [{transform_indices = @transform_0, window_bounds = array<i64: 128, 32>}, {transform_indices = @transform_1, window_bounds = array<i64: 128, 32>}, {pipeline_mode = #tpu.pipeline_mode<synchronous>, transform_indices = @transform_2, window_bounds = array<i64: 32, 64>}, {pipeline_mode = #tpu.pipeline_mode<synchronous>, transform_indices = @transform_3, window_bounds = array<i64: 1, 64>}, {pipeline_mode = #tpu.pipeline_mode<synchronous>, transform_indices = @transform_4, window_bounds = array<i64: 64, 32>}, {pipeline_mode = #tpu.pipeline_mode<synchronous>, transform_indices = @transform_5, window_bounds = array<i64: 1, 32>}, {pipeline_mode = #tpu.pipeline_mode<synchronous>, transform_indices = @transform_6, window_bounds = array<i64: 1, 32>}, {pipeline_mode = #tpu.pipeline_mode<synchronous>, transform_indices = @transform_7, window_bounds = array<i64: 1, 32>}, {transform_indices = @transform_8, window_bounds = array<i64: 128, 32>}]} {
    %c0 = arith.constant 0 : index
    %c0_0 = arith.constant 0 : index
    %0 = vector.load %arg1[%c0, %c0_0] : memref<128x32xf32, #tpu.memory_space<vmem>>, vector<128x32xf32>
    %c0_1 = arith.constant 0 : index
    %c0_2 = arith.constant 0 : index
    %1 = vector.load %arg2[%c0_1, %c0_2] : memref<128x32xf32, #tpu.memory_space<vmem>>, vector<128x32xf32>
    %2 = arith.addf %0, %1 : vector<128x32xf32>
    %c0_3 = arith.constant 0 : index
    %c0_4 = arith.constant 0 : index
    %3 = vector.load %arg3[%c0_3, %c0_4] : memref<32x64xf32, #tpu.memory_space<vmem>>, vector<32x64xf32>
    %cst = arith.constant dense<0.000000e+00> : vector<128x64xf32>
    %4 = tpu.matmul %2, %3, %cst {dimension_numbers = #tpu.dot_dimension_numbers<[1], [0], [0], [1], [0, 0, 1, 1], [], []>} : vector<128x32xf32>, vector<32x64xf32>, vector<128x64xf32> -> vector<128x64xf32>
    %c0_5 = arith.constant 0 : index
    %c0_6 = arith.constant 0 : index
    %5 = vector.load %arg4[%c0_5, %c0_6] : memref<1x64xf32, #tpu.memory_space<vmem>>, vector<1x64xf32>
    %6 = vector.broadcast %5 : vector<1x64xf32> to vector<128x64xf32>
    %7 = arith.addf %4, %6 : vector<128x64xf32>
    %cst_7 = arith.constant 0.000000e+00 : f32
    %8 = vector.broadcast %cst_7 : f32 to vector<128x64xf32>
    %9 = arith.maximumf %7, %8 : vector<128x64xf32>
    %c0_8 = arith.constant 0 : index
    %c0_9 = arith.constant 0 : index
    %10 = vector.load %arg5[%c0_8, %c0_9] : memref<64x32xf32, #tpu.memory_space<vmem>>, vector<64x32xf32>
    %cst_10 = arith.constant dense<0.000000e+00> : vector<128x32xf32>
    %11 = tpu.matmul %9, %10, %cst_10 {dimension_numbers = #tpu.dot_dimension_numbers<[1], [0], [0], [1], [0, 0, 1, 1], [], []>} : vector<128x64xf32>, vector<64x32xf32>, vector<128x32xf32> -> vector<128x32xf32>
    %c0_11 = arith.constant 0 : index
    %c0_12 = arith.constant 0 : index
    %12 = vector.load %arg6[%c0_11, %c0_12] : memref<1x32xf32, #tpu.memory_space<vmem>>, vector<1x32xf32>
    %13 = vector.broadcast %12 : vector<1x32xf32> to vector<128x32xf32>
    %14 = arith.addf %11, %13 : vector<128x32xf32>
    %15 = arith.addf %14, %2 : vector<128x32xf32>
    %cst_13 = arith.constant dense<0.000000e+00> : vector<128xf32>
    %16 = vector.multi_reduction <add>, %15, %cst_13 [1] : vector<128x32xf32> to vector<128xf32>
    %17 = vector.shape_cast %16 : vector<128xf32> to vector<128x1xf32>
    %cst_14 = arith.constant 3.200000e+01 : f32
    %18 = vector.broadcast %cst_14 : f32 to vector<128x1xf32>
    %19 = arith.divf %17, %18 : vector<128x1xf32>
    %20 = vector.broadcast %19 : vector<128x1xf32> to vector<128x32xf32>
    %21 = arith.subf %15, %20 : vector<128x32xf32>
    %22 = arith.mulf %21, %21 : vector<128x32xf32>
    %cst_15 = arith.constant dense<0.000000e+00> : vector<128xf32>
    %23 = vector.multi_reduction <add>, %22, %cst_15 [1] : vector<128x32xf32> to vector<128xf32>
    %24 = vector.shape_cast %23 : vector<128xf32> to vector<128x1xf32>
    %cst_16 = arith.constant 3.200000e+01 : f32
    %25 = vector.broadcast %cst_16 : f32 to vector<128x1xf32>
    %26 = arith.divf %24, %25 : vector<128x1xf32>
    %27 = vector.broadcast %19 : vector<128x1xf32> to vector<128x32xf32>
    %28 = arith.subf %15, %27 : vector<128x32xf32>
    %cst_17 = arith.constant 9.99999997E-7 : f32
    %29 = vector.broadcast %cst_17 : f32 to vector<128x1xf32>
    %30 = arith.addf %26, %29 : vector<128x1xf32>
    %31 = math.rsqrt %30 : vector<128x1xf32>
    %32 = vector.broadcast %31 : vector<128x1xf32> to vector<128x32xf32>
    %33 = arith.mulf %28, %32 : vector<128x32xf32>
    %c0_18 = arith.constant 0 : index
    %c0_19 = arith.constant 0 : index
    %34 = vector.load %arg7[%c0_18, %c0_19] : memref<1x32xf32, #tpu.memory_space<vmem>>, vector<1x32xf32>
    %35 = vector.broadcast %34 : vector<1x32xf32> to vector<128x32xf32>
    %36 = arith.mulf %33, %35 : vector<128x32xf32>
    %c0_20 = arith.constant 0 : index
    %c0_21 = arith.constant 0 : index
    %37 = vector.load %arg8[%c0_20, %c0_21] : memref<1x32xf32, #tpu.memory_space<vmem>>, vector<1x32xf32>
    %38 = vector.broadcast %37 : vector<1x32xf32> to vector<128x32xf32>
    %39 = arith.addf %36, %38 : vector<128x32xf32>
    %c0_22 = arith.constant 0 : index
    %c0_23 = arith.constant 0 : index
    %40 = vector.load %arg9[%c0_22, %c0_23] : memref<128x32xf32, #tpu.memory_space<vmem>>, vector<128x32xf32>
    tpu.vector_store %arg9[%c0_22, %c0_23], %39 {strides = array<i32>} : memref<128x32xf32, #tpu.memory_space<vmem>>, vector<128x32xf32>,
    return
  }
  func.func @transform_0(%arg0: i32) -> (i32, i32) {
    %c0_i32 = arith.constant 0 : i32
    %c0_i32_0 = arith.constant 0 : i32
    return %arg0, %c0_i32 : i32, i32
  }
  func.func @transform_1(%arg0: i32) -> (i32, i32) {
    %c0_i32 = arith.constant 0 : i32
    %c0_i32_0 = arith.constant 0 : i32
    return %arg0, %c0_i32 : i32, i32
  }
  func.func @transform_2(%arg0: i32) -> (i32, i32) {
    %c0_i32 = arith.constant 0 : i32
    %c0_i32_0 = arith.constant 0 : i32
    %c0_i32_1 = arith.constant 0 : i32
    return %c0_i32, %c0_i32_0 : i32, i32
  }
  func.func @transform_3(%arg0: i32) -> (i32, i32) {
    %c0_i32 = arith.constant 0 : i32
    %c0_i32_0 = arith.constant 0 : i32
    %c0_i32_1 = arith.constant 0 : i32
    return %c0_i32, %c0_i32_0 : i32, i32
  }
  func.func @transform_4(%arg0: i32) -> (i32, i32) {
    %c0_i32 = arith.constant 0 : i32
    %c0_i32_0 = arith.constant 0 : i32
    %c0_i32_1 = arith.constant 0 : i32
    return %c0_i32, %c0_i32_0 : i32, i32
  }
  func.func @transform_5(%arg0: i32) -> (i32, i32) {
    %c0_i32 = arith.constant 0 : i32
    %c0_i32_0 = arith.constant 0 : i32
    %c0_i32_1 = arith.constant 0 : i32
    return %c0_i32, %c0_i32_0 : i32, i32
  }
  func.func @transform_6(%arg0: i32) -> (i32, i32) {
    %c0_i32 = arith.constant 0 : i32
    %c0_i32_0 = arith.constant 0 : i32
    %c0_i32_1 = arith.constant 0 : i32
    return %c0_i32, %c0_i32_0 : i32, i32
  }
  func.func @transform_7(%arg0: i32) -> (i32, i32) {
    %c0_i32 = arith.constant 0 : i32
    %c0_i32_0 = arith.constant 0 : i32
    %c0_i32_1 = arith.constant 0 : i32
    return %c0_i32, %c0_i32_0 : i32, i32
  }
  func.func @transform_8(%arg0: i32) -> (i32, i32) {
    %c0_i32 = arith.constant 0 : i32
    %c0_i32_0 = arith.constant 0 : i32
    return %arg0, %c0_i32 : i32, i32
  }
}

module attributes {stable_mosaic.version = 11 : i64} {
  func.func @_layernorm_kernel(%arg0: i32, %arg1: memref<128x32xf32, #tpu.memory_space<vmem>>, %arg2: memref<1x32xf32, #tpu.memory_space<vmem>>, %arg3: memref<1x32xf32, #tpu.memory_space<vmem>>, %arg4: memref<128x32xf32, #tpu.memory_space<vmem>>) attributes {dimension_semantics = [#tpu.dimension_semantics<parallel>], iteration_bounds = array<i64: 1>, scalar_prefetch = 0 : i64, scratch_operands = 0 : i64, tpu.core_type = #tpu.core_type<tc>, window_params = [{transform_indices = @transform_0, window_bounds = array<i64: 128, 32>}, {pipeline_mode = #tpu.pipeline_mode<synchronous>, transform_indices = @transform_1, window_bounds = array<i64: 1, 32>}, {pipeline_mode = #tpu.pipeline_mode<synchronous>, transform_indices = @transform_2, window_bounds = array<i64: 1, 32>}, {transform_indices = @transform_3, window_bounds = array<i64: 128, 32>}]} {
    %c0 = arith.constant 0 : index
    %c0_0 = arith.constant 0 : index
    %0 = vector.load %arg1[%c0, %c0_0] : memref<128x32xf32, #tpu.memory_space<vmem>>, vector<128x32xf32>
    %cst = arith.constant dense<0.000000e+00> : vector<128xf32>
    %1 = vector.multi_reduction <add>, %0, %cst [1] : vector<128x32xf32> to vector<128xf32>
    %2 = vector.shape_cast %1 : vector<128xf32> to vector<128x1xf32>
    %cst_1 = arith.constant 3.200000e+01 : f32
    %3 = vector.broadcast %cst_1 : f32 to vector<128x1xf32>
    %4 = arith.divf %2, %3 : vector<128x1xf32>
    %5 = vector.broadcast %4 : vector<128x1xf32> to vector<128x32xf32>
    %6 = arith.subf %0, %5 : vector<128x32xf32>
    %7 = arith.mulf %6, %6 : vector<128x32xf32>
    %cst_2 = arith.constant dense<0.000000e+00> : vector<128xf32>
    %8 = vector.multi_reduction <add>, %7, %cst_2 [1] : vector<128x32xf32> to vector<128xf32>
    %9 = vector.shape_cast %8 : vector<128xf32> to vector<128x1xf32>
    %cst_3 = arith.constant 3.200000e+01 : f32
    %10 = vector.broadcast %cst_3 : f32 to vector<128x1xf32>
    %11 = arith.divf %9, %10 : vector<128x1xf32>
    %12 = vector.broadcast %4 : vector<128x1xf32> to vector<128x32xf32>
    %13 = arith.subf %0, %12 : vector<128x32xf32>
    %cst_4 = arith.constant 9.99999997E-7 : f32
    %14 = vector.broadcast %cst_4 : f32 to vector<128x1xf32>
    %15 = arith.addf %11, %14 : vector<128x1xf32>
    %16 = math.rsqrt %15 : vector<128x1xf32>
    %17 = vector.broadcast %16 : vector<128x1xf32> to vector<128x32xf32>
    %18 = arith.mulf %13, %17 : vector<128x32xf32>
    %c0_5 = arith.constant 0 : index
    %c0_6 = arith.constant 0 : index
    %19 = vector.load %arg2[%c0_5, %c0_6] : memref<1x32xf32, #tpu.memory_space<vmem>>, vector<1x32xf32>
    %20 = vector.broadcast %19 : vector<1x32xf32> to vector<128x32xf32>
    %21 = arith.mulf %18, %20 : vector<128x32xf32>
    %c0_7 = arith.constant 0 : index
    %c0_8 = arith.constant 0 : index
    %22 = vector.load %arg3[%c0_7, %c0_8] : memref<1x32xf32, #tpu.memory_space<vmem>>, vector<1x32xf32>
    %23 = vector.broadcast %22 : vector<1x32xf32> to vector<128x32xf32>
    %24 = arith.addf %21, %23 : vector<128x32xf32>
    %c0_9 = arith.constant 0 : index
    %c0_10 = arith.constant 0 : index
    %25 = vector.load %arg4[%c0_9, %c0_10] : memref<128x32xf32, #tpu.memory_space<vmem>>, vector<128x32xf32>
    tpu.vector_store %arg4[%c0_9, %c0_10], %24 {strides = array<i32>} : memref<128x32xf32, #tpu.memory_space<vmem>>, vector<128x32xf32>,
    return
  }
  func.func @transform_0(%arg0: i32) -> (i32, i32) {
    %c0_i32 = arith.constant 0 : i32
    %c0_i32_0 = arith.constant 0 : i32
    return %arg0, %c0_i32 : i32, i32
  }
  func.func @transform_1(%arg0: i32) -> (i32, i32) {
    %c0_i32 = arith.constant 0 : i32
    %c0_i32_0 = arith.constant 0 : i32
    %c0_i32_1 = arith.constant 0 : i32
    return %c0_i32, %c0_i32_0 : i32, i32
  }
  func.func @transform_2(%arg0: i32) -> (i32, i32) {
    %c0_i32 = arith.constant 0 : i32
    %c0_i32_0 = arith.constant 0 : i32
    %c0_i32_1 = arith.constant 0 : i32
    return %c0_i32, %c0_i32_0 : i32, i32
  }
  func.func @transform_3(%arg0: i32) -> (i32, i32) {
    %c0_i32 = arith.constant 0 : i32
    %c0_i32_0 = arith.constant 0 : i32
    return %arg0, %c0_i32 : i32, i32
  }
}

</mosaic_0001>

<llo_original>
// kernel: reformer_encoder.9
$region0: #{reformer_encoder.9}
  #allocation0 [shape = 'u32[]', space=smem, size = 0x4, offset = 0x4, fixed_abs, tag = 'smem constant byte address 0x4 - core index']
  #allocation1 [shape = 'u32[72,128]{1,0:T(1,128)}', space=vmem, size = 0x9000, scoped, tag = 'internal scratch']
  %s0 = inlined_call_operand.vmem [shape: f32[128,32], index: 0, kind: input, shape index: {}]
  %s1 = inlined_call_operand.vmem [shape: f32[32,64], index: 1, kind: input, shape index: {}]
  %s2 = inlined_call_operand.vmem [shape: f32[1,64], index: 2, kind: input, shape index: {}]
  %s3 = inlined_call_operand.vmem [shape: f32[128,64], index: 3, kind: output, shape index: {}]
  %s4 = sld [smem:[#allocation0]]
  $region22: #{reformer_encoder.9} parent=0
    _
  %s6 = ssub.s32 1, %s4
  %s7 = scalar_select 0, %s6, %s4
  // Predicated region
  $region2: #{reformer_encoder.9} parent=0 // pred_check
    _
  $region3: #{reformer_encoder.9} parent=0 // pred_check_branch
    %9 = sbr.rel (0) target = $region5
  $region4: #{reformer_encoder.9} parent=0 // pred_region
    _
  $region5: #{reformer_encoder.9} parent=0 // pred_fallthru
    _
  // Predicated region
  $region6: #{reformer_encoder.9} parent=0 // pred_check
    _
  $region7: #{reformer_encoder.9} parent=0 // pred_check_branch
    %11 = sbr.rel (0) target = $region9
  $region8: #{reformer_encoder.9} parent=0 // pred_region
    _
  $region9: #{reformer_encoder.9} parent=0 // pred_fallthru
    _
  // Predicated region
  $region10: #{reformer_encoder.9} parent=0 // pred_check
    _
  $region11: #{reformer_encoder.9} parent=0 // pred_check_branch
    %13 = sbr.rel (0) target = $region13
  $region12: #{reformer_encoder.9} parent=0 // pred_region
    _
  $region13: #{reformer_encoder.9} parent=0 // pred_fallthru
    _
  %v14 = vld [vmem:[%s0] sm:$0xff]
  %v15 = vld [vmem:[%s0 + $0x8] sm:$0xff]
  %v16 = vld [vmem:[%s0 + $0x10] sm:$0xff]
  %v17 = vld [vmem:[%s0 + $0x18] sm:$0xff]
  %v18 = vld [vmem:[%s0 + $0x20] sm:$0xff]
  %v19 = vld [vmem:[%s0 + $0x28] sm:$0xff]
  %v20 = vld [vmem:[%s0 + $0x30] sm:$0xff]
  %v21 = vld [vmem:[%s0 + $0x38] sm:$0xff]
  %v22 = vld [vmem:[%s0 + $0x40] sm:$0xff]
  %v23 = vld [vmem:[%s0 + $0x48] sm:$0xff]
  %v24 = vld [vmem:[%s0 + $0x50] sm:$0xff]
  %v25 = vld [vmem:[%s0 + $0x58] sm:$0xff]
  %v26 = vld [vmem:[%s0 + $0x60] sm:$0xff]
  %v27 = vld [vmem:[%s0 + $0x68] sm:$0xff]
  %v28 = vld [vmem:[%s0 + $0x70] sm:$0xff]
  %v29 = vld [vmem:[%s0 + $0x78] sm:$0xff]
  %v30 = vld [vmem:[%s1] sm:$0xff]
  %v31 = vld [vmem:[%s1 + $0x8] sm:$0xff]
  %v32 = vld [vmem:[%s1 + $0x10] sm:$0xff]
  %v33 = vld [vmem:[%s1 + $0x18] sm:$0xff]
  %v34 = vld [vmem:[%s2] sm:$0x1]
  %v36 = vperm.slane %v34, 0
  %vm38 = vcmask 261120
  %v40 = vsel %vm38, %v14, 0
  %v43 = vsel %vm38, %v15, 0
  %v46 = vsel %vm38, %v16, 0
  %v49 = vsel %vm38, %v17, 0
  %v52 = vsel %vm38, %v18, 0
  %v55 = vsel %vm38, %v19, 0
  %v58 = vsel %vm38, %v20, 0
  %v61 = vsel %vm38, %v21, 0
  %v64 = vsel %vm38, %v22, 0
  %v67 = vsel %vm38, %v23, 0
  %v70 = vsel %vm38, %v24, 0
  %v73 = vsel %vm38, %v25, 0
  %v76 = vsel %vm38, %v26, 0
  %v79 = vsel %vm38, %v27, 0
  %v82 = vsel %vm38, %v28, 0
  %v85 = vsel %vm38, %v29, 0
  %87 = vmatpush.msra.mxu0 0.0
  %88 = vmatpush.msra.mxu0 0.0
  %89 = vmatpush.msra.mxu0 0.0
  %90 = vmatpush.msra.mxu0 0.0
  %91 = vmatpush.msra.mxu0 0.0
  %92 = vmatpush.msra.mxu0 0.0
  %93 = vmatpush.msra.mxu0 0.0
  %94 = vmatpush.msra.mxu0 0.0
  %95 = vmatpush.msra.mxu0 0.0
  %96 = vmatpush.msra.mxu0 0.0
  %97 = vmatpush.msra.mxu0 0.0
  %98 = vmatpush.msra.mxu0 0.0
  %99 = vmatpush.msra.mxu0 %v33
  %100 = vmatpush.msra.mxu0 %v32
  %101 = vmatpush.msra.mxu0 %v31
  %102 = vmatpush.msra.mxu0 %v30
  %103 = vmatmul.f32.gmra.mxu0 %v40
  %v104 = vpop.f32.mrf.mxu0
  %v105 = vadd.f32 %v36, %v104
  %106 = vmatmul.f32.gmra.mxu0 %v43
  %v107 = vpop.f32.mrf.mxu0
  %v108 = vadd.f32 %v36, %v107
  %109 = vmatmul.f32.gmra.mxu0 %v46
  %v110 = vpop.f32.mrf.mxu0
  %v111 = vadd.f32 %v36, %v110
  %112 = vmatmul.f32.gmra.mxu0 %v49
  %v113 = vpop.f32.mrf.mxu0
  %v114 = vadd.f32 %v36, %v113
  %115 = vmatmul.f32.gmra.mxu0 %v52
  %v116 = vpop.f32.mrf.mxu0
  %v117 = vadd.f32 %v36, %v116
  %118 = vmatmul.f32.gmra.mxu0 %v55
  %v119 = vpop.f32.mrf.mxu0
  %v120 = vadd.f32 %v36, %v119
  %121 = vmatmul.f32.gmra.mxu0 %v58
  %v122 = vpop.f32.mrf.mxu0
  %v123 = vadd.f32 %v36, %v122
  %124 = vmatmul.f32.gmra.mxu0 %v61
  %v125 = vpop.f32.mrf.mxu0
  %v126 = vadd.f32 %v36, %v125
  %127 = vmatmul.f32.gmra.mxu0 %v64
  %v128 = vpop.f32.mrf.mxu0
  %v129 = vadd.f32 %v36, %v128
  %130 = vmatmul.f32.gmra.mxu0 %v67
  %v131 = vpop.f32.mrf.mxu0
  %v132 = vadd.f32 %v36, %v131
  %133 = vmatmul.f32.gmra.mxu0 %v70
  %v134 = vpop.f32.mrf.mxu0
  %v135 = vadd.f32 %v36, %v134
  %136 = vmatmul.f32.gmra.mxu0 %v73
  %v137 = vpop.f32.mrf.mxu0
  %v138 = vadd.f32 %v36, %v137
  %139 = vmatmul.f32.gmra.mxu0 %v76
  %v140 = vpop.f32.mrf.mxu0
  %v141 = vadd.f32 %v36, %v140
  %142 = vmatmul.f32.gmra.mxu0 %v79
  %v143 = vpop.f32.mrf.mxu0
  %v144 = vadd.f32 %v36, %v143
  %145 = vmatmul.f32.gmra.mxu0 %v82
  %v146 = vpop.f32.mrf.mxu0
  %v147 = vadd.f32 %v36, %v146
  %148 = vmatmul.f32.gmra.mxu0 %v85
  %v149 = vpop.f32.mrf.mxu0
  %v150 = vadd.f32 %v36, %v149
  %151 = vdwg.mxu0
  %vm152 = vcmask 523264
  %153 = vst.msk [vmem:[%s3] sm:$0xff] %vm152, %v105
  %154 = vst.msk [vmem:[%s3 + $0x8] sm:$0xff] %vm152, %v108
  %155 = vst.msk [vmem:[%s3 + $0x10] sm:$0xff] %vm152, %v111
  %156 = vst.msk [vmem:[%s3 + $0x18] sm:$0xff] %vm152, %v114
  %157 = vst.msk [vmem:[%s3 + $0x20] sm:$0xff] %vm152, %v117
  %158 = vst.msk [vmem:[%s3 + $0x28] sm:$0xff] %vm152, %v120
  %159 = vst.msk [vmem:[%s3 + $0x30] sm:$0xff] %vm152, %v123
  %160 = vst.msk [vmem:[%s3 + $0x38] sm:$0xff] %vm152, %v126
  %161 = vst.msk [vmem:[%s3 + $0x40] sm:$0xff] %vm152, %v129
  %162 = vst.msk [vmem:[%s3 + $0x48] sm:$0xff] %vm152, %v132
  %163 = vst.msk [vmem:[%s3 + $0x50] sm:$0xff] %vm152, %v135
  %164 = vst.msk [vmem:[%s3 + $0x58] sm:$0xff] %vm152, %v138
  %165 = vst.msk [vmem:[%s3 + $0x60] sm:$0xff] %vm152, %v141
  %166 = vst.msk [vmem:[%s3 + $0x68] sm:$0xff] %vm152, %v144
  %167 = vst.msk [vmem:[%s3 + $0x70] sm:$0xff] %vm152, %v147
  %168 = vst.msk [vmem:[%s3 + $0x78] sm:$0xff] %vm152, %v150
  // Predicated region
  $region14: #{reformer_encoder.9} parent=0 // pred_check
    _
  $region15: #{reformer_encoder.9} parent=0 // pred_check_branch
    %170 = sbr.rel (0) target = $region17
  $region16: #{reformer_encoder.9} parent=0 // pred_region
    _
  $region17: #{reformer_encoder.9} parent=0 // pred_fallthru
    _
  // Predicated region
  $region18: #{reformer_encoder.9} parent=0 // pred_check
    _
  $region19: #{reformer_encoder.9} parent=0 // pred_check_branch
    %172 = sbr.rel (0) target = $region21
  $region20: #{reformer_encoder.9} parent=0 // pred_region
    _
  $region21: #{reformer_encoder.9} parent=0 // pred_fallthru
    _

// kernel: reformer_encoder.10
$region0: #{reformer_encoder.10}
  #allocation0 [shape = 'u32[]', space=smem, size = 0x4, offset = 0x4, fixed_abs, tag = 'smem constant byte address 0x4 - core index']
  #allocation1 [shape = 'u32[72,128]{1,0:T(1,128)}', space=vmem, size = 0x9000, scoped, tag = 'internal scratch']
  %s0 = inlined_call_operand.vmem [shape: f32[8,16,8,8], index: 0, kind: input, shape index: {}, may-alias: {0,1}]
  %s1 = inlined_call_operand.vmem [shape: f32[8,16,8,8], index: 1, kind: input, shape index: {}, may-alias: {0,1}]
  %s2 = inlined_call_operand.vmem [shape: f32[8,16,8,8], index: 2, kind: input, shape index: {}, may-alias: {2,3}]
  %s3 = inlined_call_operand.vmem [shape: f32[8,16,8,8], index: 3, kind: input, shape index: {}, may-alias: {2,3}]
  %s4 = inlined_call_operand.vmem [shape: s32[8,16,8], index: 4, kind: input, shape index: {}, may-alias: {4,5}]
  %s5 = inlined_call_operand.vmem [shape: s32[8,16,8], index: 5, kind: input, shape index: {}, may-alias: {4,5}]
  %s6 = inlined_call_operand.vmem [shape: f32[8,16,8,8], index: 6, kind: output, shape index: {0}]
  %s7 = inlined_call_operand.vmem [shape: f32[8,16,8], index: 7, kind: output, shape index: {1}]
  %8 = xla_tuple %s6, %s7
  %s9 = sld [smem:[#allocation0]]
  $region65: #{reformer_encoder.10} parent=0
    _
  %s11 = ssub.s32 1, %s9
  %s12 = scalar_select 0, %s11, %s9
  loop: start=0, step=1, limit=18
  $region2: #{reformer_encoder.10} parent=0 // loop_pre_header
    _
  $region3: #{reformer_encoder.10} parent=0 // loop_header
    %s14 = sphi 0, %s18
    %p15 = scmp.ge.s32.totalorder %s14, 18
    %s21 = sphi 0, %s33
    %s22 = sphi 0, %s29
    %s23 = sphi 0, %s21
    %s24 = sphi 0, %s22
    %s25 = sphi 0, %s23
    %s26 = sphi 0, %s24
    %s38 = sphi 0, %s40
    %s41 = sphi 0, %s38
    %s42 = sphi 0, %s41
    %s58 = sphi 0, %s42
    %s94 = sphi 0, %s96
    %s97 = sphi 0, %s94
    %s98 = sphi 0, %s97
    %s114 = sphi 0, %s98
    %s122 = sphi 0, %s124
    %s125 = sphi 0, %s122
    %s126 = sphi 0, %s125
    %s142 = sphi 0, %s126
    %s178 = sphi 0, %s180
    %s181 = sphi 0, %s178
    %s182 = sphi 0, %s181
    %s198 = sphi 0, %s182
    %s206 = sphi 0, %s208
    %s209 = sphi 0, %s206
    %s210 = sphi 0, %s209
    %s226 = sphi 0, %s210
    %s260 = sphi 0, %s262
    %s263 = sphi 0, %s260
    %s264 = sphi 0, %s263
    %s280 = sphi 0, %s264
    %s288 = sphi 0, %s290
    %s291 = sphi 0, %s288
    %s292 = sphi 0, %s291
    %s308 = sphi 0, %s292
    %s316 = sphi 0, %s318
    %s319 = sphi 0, %s316
    %s320 = sphi 0, %s319
    %s336 = sphi 0, %s320
  $region4: #{reformer_encoder.10} parent=0 // loop_header_branch
    %17 = sbr.rel (%p15) target = $region8
  $region5: #{reformer_encoder.10} parent=0 // loop_body
    %s19 = ssub.s32 %s14, 1
    %s20 = ssub.s32 %s14, 2
    %s27 = sadd.s32 1, %s22
    %p28 = scmp.ge.s32.totalorder %s27, 2
    %s29 = scalar_select %p28, 0, %s27
    %s30 = sadd.s32 1, %s21
    %s31 = scalar_select %p28, %s30, %s21
    %p32 = scmp.ge.s32.totalorder %s31, 8
    %s33 = scalar_select %p32, 0, %s31
    %s34 = ssub.s32 %s21, %s33
    %s35 = ssub.s32 %s22, %s29
    %s36 = sor.u32 %s34, %s35
    %p37 = scmp.eq.s32.totalorder %s36, 0
    %s39 = sadd.s32 %s38, 1
    %s40 = scalar_select %p37, %s38, %s39
    %p43 = pneg %p37
    %p44 = scmp.eq.s32.totalorder %s14, 15
    %p45 = por %p43, %p44
    %p46 = scmp.ne.s32.totalorder %s38, %s41
    %p47 = scmp.eq.s32.totalorder %s14, 0
    %p48 = por %p46, %p47
    %p49 = scmp.ne.s32.totalorder %s38, %s41
    %p50 = scmp.eq.s32.totalorder %s19, 15
    %p51 = por %p49, %p50
    %p52 = scmp.ne.s32.totalorder %s41, %s42
    %p53 = scmp.eq.s32.totalorder %s19, 0
    %p54 = por %p52, %p53
    %p55 = scmp.ne.s32.totalorder %s41, %s42
    %p56 = scmp.eq.s32.totalorder %s20, 15
    %p57 = por %p55, %p56
    %p59 = scmp.ne.s32.totalorder %s42, %s58
    %p60 = scmp.eq.s32.totalorder %s20, 0
    %p61 = por %p59, %p60
    %s62 = smul.u32 %s22, 8
    %s63 = sadd.s32 %s62, 15
    %p64 = scmp.lt.s32.totalorder %s63, 0
    %s65 = ssub.s32 0, %s63
    %s66 = scalar_select %p64, %s65, %s63
    %s67 = sand.u32 %s66, 15
    %s68 = ssub.s32 0, %s67
    %s69 = scalar_select %p64, %s68, %s67
    %p70 = scmp.ne.s32.totalorder %s69, 0
    %p71 = scmp.lt.s32.totalorder %s69, 0
    %p72 = pnand %p71, %p70
    %p73 = pneg %p72
    %s74 = sadd.s32 %s69, 16
    %s75 = scalar_select %p73, %s74, %s69
    %s76 = smul.u32 %s29, 8
    %s77 = sadd.s32 %s76, 15
    %p78 = scmp.lt.s32.totalorder %s77, 0
    %s79 = ssub.s32 0, %s77
    %s80 = scalar_select %p78, %s79, %s77
    %s81 = sand.u32 %s80, 15
    %s82 = ssub.s32 0, %s81
    %s83 = scalar_select %p78, %s82, %s81
    %p84 = scmp.ne.s32.totalorder %s83, 0
    %p85 = scmp.lt.s32.totalorder %s83, 0
    %p86 = pnand %p85, %p84
    %p87 = pneg %p86
    %s88 = sadd.s32 %s83, 16
    %s89 = scalar_select %p87, %s88, %s83
    %s90 = ssub.s32 %s21, %s33
    %s91 = ssub.s32 %s75, %s89
    %s92 = sor.u32 %s90, %s91
    %p93 = scmp.eq.s32.totalorder %s92, 0
    %s95 = sadd.s32 %s94, 1
    %s96 = scalar_select %p93, %s94, %s95
    %p99 = pneg %p93
    %p100 = scmp.eq.s32.totalorder %s14, 15
    %p101 = por %p99, %p100
    %p102 = scmp.ne.s32.totalorder %s94, %s97
    %p103 = scmp.eq.s32.totalorder %s14, 0
    %p104 = por %p102, %p103
    %p105 = scmp.ne.s32.totalorder %s94, %s97
    %p106 = scmp.eq.s32.totalorder %s19, 15
    %p107 = por %p105, %p106
    %p108 = scmp.ne.s32.totalorder %s97, %s98
    %p109 = scmp.eq.s32.totalorder %s19, 0
    %p110 = por %p108, %p109
    %p111 = scmp.ne.s32.totalorder %s97, %s98
    %p112 = scmp.eq.s32.totalorder %s20, 15
    %p113 = por %p111, %p112
    %p115 = scmp.ne.s32.totalorder %s98, %s114
    %p116 = scmp.eq.s32.totalorder %s20, 0
    %p117 = por %p115, %p116
    %s118 = ssub.s32 %s21, %s33
    %s119 = ssub.s32 %s22, %s29
    %s120 = sor.u32 %s118, %s119
    %p121 = scmp.eq.s32.totalorder %s120, 0
    %s123 = sadd.s32 %s122, 1
    %s124 = scalar_select %p121, %s122, %s123
    %p127 = pneg %p121
    %p128 = scmp.eq.s32.totalorder %s14, 15
    %p129 = por %p127, %p128
    %p130 = scmp.ne.s32.totalorder %s122, %s125
    %p131 = scmp.eq.s32.totalorder %s14, 0
    %p132 = por %p130, %p131
    %p133 = scmp.ne.s32.totalorder %s122, %s125
    %p134 = scmp.eq.s32.totalorder %s19, 15
    %p135 = por %p133, %p134
    %p136 = scmp.ne.s32.totalorder %s125, %s126
    %p137 = scmp.eq.s32.totalorder %s19, 0
    %p138 = por %p136, %p137
    %p139 = scmp.ne.s32.totalorder %s125, %s126
    %p140 = scmp.eq.s32.totalorder %s20, 15
    %p141 = por %p139, %p140
    %p143 = scmp.ne.s32.totalorder %s126, %s142
    %p144 = scmp.eq.s32.totalorder %s20, 0
    %p145 = por %p143, %p144
    %s146 = smul.u32 %s22, 8
    %s147 = sadd.s32 %s146, 15
    %p148 = scmp.lt.s32.totalorder %s147, 0
    %s149 = ssub.s32 0, %s147
    %s150 = scalar_select %p148, %s149, %s147
    %s151 = sand.u32 %s150, 15
    %s152 = ssub.s32 0, %s151
    %s153 = scalar_select %p148, %s152, %s151
    %p154 = scmp.ne.s32.totalorder %s153, 0
    %p155 = scmp.lt.s32.totalorder %s153, 0
    %p156 = pnand %p155, %p154
    %p157 = pneg %p156
    %s158 = sadd.s32 %s153, 16
    %s159 = scalar_select %p157, %s158, %s153
    %s160 = smul.u32 %s29, 8
    %s161 = sadd.s32 %s160, 15
    %p162 = scmp.lt.s32.totalorder %s161, 0
    %s163 = ssub.s32 0, %s161
    %s164 = scalar_select %p162, %s163, %s161
    %s165 = sand.u32 %s164, 15
    %s166 = ssub.s32 0, %s165
    %s167 = scalar_select %p162, %s166, %s165
    %p168 = scmp.ne.s32.totalorder %s167, 0
    %p169 = scmp.lt.s32.totalorder %s167, 0
    %p170 = pnand %p169, %p168
    %p171 = pneg %p170
    %s172 = sadd.s32 %s167, 16
    %s173 = scalar_select %p171, %s172, %s167
    %s174 = ssub.s32 %s21, %s33
    %s175 = ssub.s32 %s159, %s173
    %s176 = sor.u32 %s174, %s175
    %p177 = scmp.eq.s32.totalorder %s176, 0
    %s179 = sadd.s32 %s178, 1
    %s180 = scalar_select %p177, %s178, %s179
    %p183 = pneg %p177
    %p184 = scmp.eq.s32.totalorder %s14, 15
    %p185 = por %p183, %p184
    %p186 = scmp.ne.s32.totalorder %s178, %s181
    %p187 = scmp.eq.s32.totalorder %s14, 0
    %p188 = por %p186, %p187
    %p189 = scmp.ne.s32.totalorder %s178, %s181
    %p190 = scmp.eq.s32.totalorder %s19, 15
    %p191 = por %p189, %p190
    %p192 = scmp.ne.s32.totalorder %s181, %s182
    %p193 = scmp.eq.s32.totalorder %s19, 0
    %p194 = por %p192, %p193
    %p195 = scmp.ne.s32.totalorder %s181, %s182
    %p196 = scmp.eq.s32.totalorder %s20, 15
    %p197 = por %p195, %p196
    %p199 = scmp.ne.s32.totalorder %s182, %s198
    %p200 = scmp.eq.s32.totalorder %s20, 0
    %p201 = por %p199, %p200
    %s202 = ssub.s32 %s21, %s33
    %s203 = ssub.s32 %s22, %s29
    %s204 = sor.u32 %s202, %s203
    %p205 = scmp.eq.s32.totalorder %s204, 0
    %s207 = sadd.s32 %s206, 1
    %s208 = scalar_select %p205, %s206, %s207
    %p211 = pneg %p205
    %p212 = scmp.eq.s32.totalorder %s14, 15
    %p213 = por %p211, %p212
    %p214 = scmp.ne.s32.totalorder %s206, %s209
    %p215 = scmp.eq.s32.totalorder %s14, 0
    %p216 = por %p214, %p215
    %p217 = scmp.ne.s32.totalorder %s206, %s209
    %p218 = scmp.eq.s32.totalorder %s19, 15
    %p219 = por %p217, %p218
    %p220 = scmp.ne.s32.totalorder %s209, %s210
    %p221 = scmp.eq.s32.totalorder %s19, 0
    %p222 = por %p220, %p221
    %p223 = scmp.ne.s32.totalorder %s209, %s210
    %p224 = scmp.eq.s32.totalorder %s20, 15
    %p225 = por %p223, %p224
    %p227 = scmp.ne.s32.totalorder %s210, %s226
    %p228 = scmp.eq.s32.totalorder %s20, 0
    %p229 = por %p227, %p228
    %s230 = sadd.s32 %s22, 1
    %p231 = scmp.lt.s32.totalorder %s230, 0
    %s232 = ssub.s32 0, %s230
    %s233 = scalar_select %p231, %s232, %s230
    %s234 = sand.u32 %s233, 1
    %s235 = ssub.s32 0, %s234
    %s236 = scalar_select %p231, %s235, %s234
    %p237 = scmp.ne.s32.totalorder %s236, 0
    %p238 = scmp.lt.s32.totalorder %s236, 0
    %p239 = pnand %p238, %p237
    %p240 = pneg %p239
    %s241 = sadd.s32 %s236, 2
    %s242 = scalar_select %p240, %s241, %s236
    %s243 = sadd.s32 %s29, 1
    %p244 = scmp.lt.s32.totalorder %s243, 0
    %s245 = ssub.s32 0, %s243
    %s246 = scalar_select %p244, %s245, %s243
    %s247 = sand.u32 %s246, 1
    %s248 = ssub.s32 0, %s247
    %s249 = scalar_select %p244, %s248, %s247
    %p250 = scmp.ne.s32.totalorder %s249, 0
    %p251 = scmp.lt.s32.totalorder %s249, 0
    %p252 = pnand %p251, %p250
    %p253 = pneg %p252
    %s254 = sadd.s32 %s249, 2
    %s255 = scalar_select %p253, %s254, %s249
    %s256 = ssub.s32 %s21, %s33
    %s257 = ssub.s32 %s242, %s255
    %s258 = sor.u32 %s256, %s257
    %p259 = scmp.eq.s32.totalorder %s258, 0
    %s261 = sadd.s32 %s260, 1
    %s262 = scalar_select %p259, %s260, %s261
    %p265 = pneg %p259
    %p266 = scmp.eq.s32.totalorder %s14, 15
    %p267 = por %p265, %p266
    %p268 = scmp.ne.s32.totalorder %s260, %s263
    %p269 = scmp.eq.s32.totalorder %s14, 0
    %p270 = por %p268, %p269
    %p271 = scmp.ne.s32.totalorder %s260, %s263
    %p272 = scmp.eq.s32.totalorder %s19, 15
    %p273 = por %p271, %p272
    %p274 = scmp.ne.s32.totalorder %s263, %s264
    %p275 = scmp.eq.s32.totalorder %s19, 0
    %p276 = por %p274, %p275
    %p277 = scmp.ne.s32.totalorder %s263, %s264
    %p278 = scmp.eq.s32.totalorder %s20, 15
    %p279 = por %p277, %p278
    %p281 = scmp.ne.s32.totalorder %s264, %s280
    %p282 = scmp.eq.s32.totalorder %s20, 0
    %p283 = por %p281, %p282
    %s284 = ssub.s32 %s21, %s33
    %s285 = ssub.s32 %s22, %s29
    %s286 = sor.u32 %s284, %s285
    %p287 = scmp.eq.s32.totalorder %s286, 0
    %s289 = sadd.s32 %s288, 1
    %s290 = scalar_select %p287, %s288, %s289
    %p293 = pneg %p287
    %p294 = scmp.eq.s32.totalorder %s14, 15
    %p295 = por %p293, %p294
    %p296 = scmp.ne.s32.totalorder %s288, %s291
    %p297 = scmp.eq.s32.totalorder %s14, 0
    %p298 = por %p296, %p297
    %p299 = scmp.ne.s32.totalorder %s288, %s291
    %p300 = scmp.eq.s32.totalorder %s19, 15
    %p301 = por %p299, %p300
    %p302 = scmp.ne.s32.totalorder %s291, %s292
    %p303 = scmp.eq.s32.totalorder %s19, 0
    %p304 = por %p302, %p303
    %p305 = scmp.ne.s32.totalorder %s291, %s292
    %p306 = scmp.eq.s32.totalorder %s20, 15
    %p307 = por %p305, %p306
    %p309 = scmp.ne.s32.totalorder %s292, %s308
    %p310 = scmp.eq.s32.totalorder %s20, 0
    %p311 = por %p309, %p310
    %s312 = ssub.s32 %s21, %s33
    %s313 = ssub.s32 %s22, %s29
    %s314 = sor.u32 %s312, %s313
    %p315 = scmp.eq.s32.totalorder %s314, 0
    %s317 = sadd.s32 %s316, 1
    %s318 = scalar_select %p315, %s316, %s317
    %p321 = pneg %p315
    %p322 = scmp.eq.s32.totalorder %s14, 15
    %p323 = por %p321, %p322
    %p324 = scmp.ne.s32.totalorder %s316, %s319
    %p325 = scmp.eq.s32.totalorder %s14, 0
    %p326 = por %p324, %p325
    %p327 = scmp.ne.s32.totalorder %s316, %s319
    %p328 = scmp.eq.s32.totalorder %s19, 15
    %p329 = por %p327, %p328
    %p330 = scmp.ne.s32.totalorder %s319, %s320
    %p331 = scmp.eq.s32.totalorder %s19, 0
    %p332 = por %p330, %p331
    %p333 = scmp.ne.s32.totalorder %s319, %s320
    %p334 = scmp.eq.s32.totalorder %s20, 15
    %p335 = por %p333, %p334
    %p337 = scmp.ne.s32.totalorder %s320, %s336
    %p338 = scmp.eq.s32.totalorder %s20, 0
    %p339 = por %p337, %p338
    %p340 = scmp.le.s32.totalorder 1, %s14
    %p341 = scmp.lt.s32.totalorder %s14, 17
    %p342 = pnand %p340, %p341
    %p343 = pneg %p342
    // Predicated region
    $region9: #{reformer_encoder.10} parent=5 // pred_check
      _
    $region10: #{reformer_encoder.10} parent=5 // pred_check_branch
      %345 = sbr.rel (%p342) target = $region12
    $region11: #{reformer_encoder.10} parent=5 // pred_region
      %s346 = ssub.s32 %s14, 1
    $region12: #{reformer_encoder.10} parent=5 // pred_fallthru
      _
    %p347 = scmp.lt.s32.totalorder %s14, 16
    // Predicated region
    $region13: #{reformer_encoder.10} parent=5 // pred_check
      %p348 = pneg %p347
    $region14: #{reformer_encoder.10} parent=5 // pred_check_branch
      %350 = sbr.rel (%p348) target = $region16
    $region15: #{reformer_encoder.10} parent=5 // pred_region
      // Predicated region
      $region17: #{reformer_encoder.10} parent=15 // pred_check
        %p351 = pneg %p48
      $region18: #{reformer_encoder.10} parent=15 // pred_check_branch
        %353 = sbr.rel (%p351) target = $region20
      $region19: #{reformer_encoder.10} parent=15 // pred_region
        %s354 = smul.u32 8, %s22
        %p355 = scmp.lt.s32.totalorder %s21, 7
        %s356 = scalar_select %p355, %s21, 7
        %p357 = scmp.lt.s32.totalorder %s354, 15
        %s358 = scalar_select %p357, %s354, 15
        %s359 = smul.addr %s356, 16
        %s360 = sadd.s32 %s358, %s359
        %s361 = smul.addr %s360, 8
        %s362 = scalar_lea.vmem %s0, %s361
        %s363 = smul.u32 8, %s22
      $region20: #{reformer_encoder.10} parent=15 // pred_fallthru
        _
      // Predicated region
      $region21: #{reformer_encoder.10} parent=15 // pred_check
        %p364 = pneg %p104
      $region22: #{reformer_encoder.10} parent=15 // pred_check_branch
        %366 = sbr.rel (%p364) target = $region24
      $region23: #{reformer_encoder.10} parent=15 // pred_region
        %s367 = smul.u32 %s22, 8
        %s368 = sadd.s32 %s367, 15
        %p369 = scmp.lt.s32.totalorder %s368, 0
        %s370 = ssub.s32 0, %s368
        %s371 = scalar_select %p369, %s370, %s368
        %s372 = sand.u32 %s371, 15
        %s373 = ssub.s32 0, %s372
        %s374 = scalar_select %p369, %s373, %s372
        %p375 = scmp.ne.s32.totalorder %s374, 0
        %p376 = scmp.lt.s32.totalorder %s374, 0
        %p377 = pnand %p376, %p375
        %p378 = pneg %p377
        %s379 = sadd.s32 %s374, 16
        %s380 = scalar_select %p378, %s379, %s374
        %p381 = scmp.lt.s32.totalorder %s21, 7
        %s382 = scalar_select %p381, %s21, 7
        %p383 = scmp.lt.s32.totalorder %s380, 15
        %s384 = scalar_select %p383, %s380, 15
        %s385 = smul.addr %s382, 16
        %s386 = sadd.s32 %s384, %s385
        %s387 = smul.addr %s386, 8
        %s388 = scalar_lea.vmem %s1, %s387
        %s389 = smul.u32 %s22, 8
        %s390 = sadd.s32 %s389, 15
        %p391 = scmp.lt.s32.totalorder %s390, 0
        %s392 = ssub.s32 0, %s390
        %s393 = scalar_select %p391, %s392, %s390
        %s394 = sand.u32 %s393, 15
        %s395 = ssub.s32 0, %s394
        %s396 = scalar_select %p391, %s395, %s394
        %p397 = scmp.ne.s32.totalorder %s396, 0
        %p398 = scmp.lt.s32.totalorder %s396, 0
        %p399 = pnand %p398, %p397
        %p400 = pneg %p399
        %s401 = sadd.s32 %s396, 16
        %s402 = scalar_select %p400, %s401, %s396
      $region24: #{reformer_encoder.10} parent=15 // pred_fallthru
        _
      // Predicated region
      $region25: #{reformer_encoder.10} parent=15 // pred_check
        %p403 = pneg %p132
      $region26: #{reformer_encoder.10} parent=15 // pred_check_branch
        %405 = sbr.rel (%p403) target = $region28
      $region27: #{reformer_encoder.10} parent=15 // pred_region
        %s406 = smul.u32 8, %s22
        %p407 = scmp.lt.s32.totalorder %s21, 7
        %s408 = scalar_select %p407, %s21, 7
        %p409 = scmp.lt.s32.totalorder %s406, 15
        %s410 = scalar_select %p409, %s406, 15
        %s411 = smul.addr %s408, 16
        %s412 = sadd.s32 %s410, %s411
        %s413 = smul.addr %s412, 8
        %s414 = scalar_lea.vmem %s2, %s413
        %s415 = smul.u32 8, %s22
      $region28: #{reformer_encoder.10} parent=15 // pred_fallthru
        _
      // Predicated region
      $region29: #{reformer_encoder.10} parent=15 // pred_check
        %p416 = pneg %p188
      $region30: #{reformer_encoder.10} parent=15 // pred_check_branch
        %418 = sbr.rel (%p416) target = $region32
      $region31: #{reformer_encoder.10} parent=15 // pred_region
        %s419 = smul.u32 %s22, 8
        %s420 = sadd.s32 %s419, 15
        %p421 = scmp.lt.s32.totalorder %s420, 0
        %s422 = ssub.s32 0, %s420
        %s423 = scalar_select %p421, %s422, %s420
        %s424 = sand.u32 %s423, 15
        %s425 = ssub.s32 0, %s424
        %s426 = scalar_select %p421, %s425, %s424
        %p427 = scmp.ne.s32.totalorder %s426, 0
        %p428 = scmp.lt.s32.totalorder %s426, 0
        %p429 = pnand %p428, %p427
        %p430 = pneg %p429
        %s431 = sadd.s32 %s426, 16
        %s432 = scalar_select %p430, %s431, %s426
        %p433 = scmp.lt.s32.totalorder %s21, 7
        %s434 = scalar_select %p433, %s21, 7
        %p435 = scmp.lt.s32.totalorder %s432, 15
        %s436 = scalar_select %p435, %s432, 15
        %s437 = smul.addr %s434, 16
        %s438 = sadd.s32 %s436, %s437
        %s439 = smul.addr %s438, 8
        %s440 = scalar_lea.vmem %s3, %s439
        %s441 = smul.u32 %s22, 8
        %s442 = sadd.s32 %s441, 15
        %p443 = scmp.lt.s32.totalorder %s442, 0
        %s444 = ssub.s32 0, %s442
        %s445 = scalar_select %p443, %s444, %s442
        %s446 = sand.u32 %s445, 15
        %s447 = ssub.s32 0, %s446
        %s448 = scalar_select %p443, %s447, %s446
        %p449 = scmp.ne.s32.totalorder %s448, 0
        %p450 = scmp.lt.s32.totalorder %s448, 0
        %p451 = pnand %p450, %p449
        %p452 = pneg %p451
        %s453 = sadd.s32 %s448, 16
        %s454 = scalar_select %p452, %s453, %s448
      $region32: #{reformer_encoder.10} parent=15 // pred_fallthru
        _
      // Predicated region
      $region33: #{reformer_encoder.10} parent=15 // pred_check
        %p455 = pneg %p216
      $region34: #{reformer_encoder.10} parent=15 // pred_check_branch
        %457 = sbr.rel (%p455) target = $region36
      $region35: #{reformer_encoder.10} parent=15 // pred_region
        %p458 = scmp.lt.s32.totalorder %s21, 7
        %s459 = scalar_select %p458, %s21, 7
        %p460 = scmp.lt.s32.totalorder %s22, 1
        %s461 = scalar_select %p460, %s22, 1
        %s462 = smul.addr %s459, 2
        %s463 = sadd.s32 %s461, %s462
        %s464 = smul.addr %s463, 8
        %s465 = scalar_lea.vmem %s4, %s464
      $region36: #{reformer_encoder.10} parent=15 // pred_fallthru
        _
      // Predicated region
      $region37: #{reformer_encoder.10} parent=15 // pred_check
        %p466 = pneg %p270
      $region38: #{reformer_encoder.10} parent=15 // pred_check_branch
        %468 = sbr.rel (%p466) target = $region40
      $region39: #{reformer_encoder.10} parent=15 // pred_region
        %s469 = sadd.s32 %s22, 1
        %p470 = scmp.lt.s32.totalorder %s469, 0
        %s471 = ssub.s32 0, %s469
        %s472 = scalar_select %p470, %s471, %s469
        %s473 = sand.u32 %s472, 1
        %s474 = ssub.s32 0, %s473
        %s475 = scalar_select %p470, %s474, %s473
        %p476 = scmp.ne.s32.totalorder %s475, 0
        %p477 = scmp.lt.s32.totalorder %s475, 0
        %p478 = pnand %p477, %p476
        %p479 = pneg %p478
        %s480 = sadd.s32 %s475, 2
        %s481 = scalar_select %p479, %s480, %s475
        %p482 = scmp.lt.s32.totalorder %s21, 7
        %s483 = scalar_select %p482, %s21, 7
        %p484 = scmp.lt.s32.totalorder %s481, 1
        %s485 = scalar_select %p484, %s481, 1
        %s486 = smul.addr %s483, 2
        %s487 = sadd.s32 %s485, %s486
        %s488 = smul.addr %s487, 8
        %s489 = scalar_lea.vmem %s5, %s488
        %s490 = sadd.s32 %s22, 1
        %p491 = scmp.lt.s32.totalorder %s490, 0
        %s492 = ssub.s32 0, %s490
        %s493 = scalar_select %p491, %s492, %s490
        %s494 = sand.u32 %s493, 1
        %s495 = ssub.s32 0, %s494
        %s496 = scalar_select %p491, %s495, %s494
        %p497 = scmp.ne.s32.totalorder %s496, 0
        %p498 = scmp.lt.s32.totalorder %s496, 0
        %p499 = pnand %p498, %p497
        %p500 = pneg %p499
        %s501 = sadd.s32 %s496, 2
        %s502 = scalar_select %p500, %s501, %s496
      $region40: #{reformer_encoder.10} parent=15 // pred_fallthru
        _
    $region16: #{reformer_encoder.10} parent=5 // pred_fallthru
      _
    %p503 = scmp.le.s32.totalorder 1, %s14
    %p504 = scmp.lt.s32.totalorder %s14, 17
    %p505 = pnand %p503, %p504
    %p506 = pneg %p505
    // Predicated region
    $region41: #{reformer_encoder.10} parent=5 // pred_check
      _
    $region42: #{reformer_encoder.10} parent=5 // pred_check_branch
      %508 = sbr.rel (%p505) target = $region44
    $region43: #{reformer_encoder.10} parent=5 // pred_region
      %s509 = ssub.s32 %s14, 1
      %s510 = smul.u32 8, %s24
      %p511 = scmp.lt.s32.totalorder %s23, 7
      %s512 = scalar_select %p511, %s23, 7
      %p513 = scmp.lt.s32.totalorder %s510, 15
      %s514 = scalar_select %p513, %s510, 15
      %s515 = smul.addr %s512, 16
      %s516 = sadd.s32 %s514, %s515
      %s517 = smul.addr %s516, 8
      %s518 = scalar_lea.vmem %s0, %s517
      %p519 = pneg %p54
      %p520 = pneg %p51
      %s521 = smul.u32 %s24, 8
      %s522 = sadd.s32 %s521, 15
      %p523 = scmp.lt.s32.totalorder %s522, 0
      %s524 = ssub.s32 0, %s522
      %s525 = scalar_select %p523, %s524, %s522
      %s526 = sand.u32 %s525, 15
      %s527 = ssub.s32 0, %s526
      %s528 = scalar_select %p523, %s527, %s526
      %p529 = scmp.ne.s32.totalorder %s528, 0
      %p530 = scmp.lt.s32.totalorder %s528, 0
      %p531 = pnand %p530, %p529
      %p532 = pneg %p531
      %s533 = sadd.s32 %s528, 16
      %s534 = scalar_select %p532, %s533, %s528
      %p535 = scmp.lt.s32.totalorder %s23, 7
      %s536 = scalar_select %p535, %s23, 7
      %p537 = scmp.lt.s32.totalorder %s534, 15
      %s538 = scalar_select %p537, %s534, 15
      %s539 = smul.addr %s536, 16
      %s540 = sadd.s32 %s538, %s539
      %s541 = smul.addr %s540, 8
      %s542 = scalar_lea.vmem %s1, %s541
      %p543 = pneg %p110
      %p544 = pneg %p107
      %s545 = smul.u32 8, %s24
      %p546 = scmp.lt.s32.totalorder %s23, 7
      %s547 = scalar_select %p546, %s23, 7
      %p548 = scmp.lt.s32.totalorder %s545, 15
      %s549 = scalar_select %p548, %s545, 15
      %s550 = smul.addr %s547, 16
      %s551 = sadd.s32 %s549, %s550
      %s552 = smul.addr %s551, 8
      %s553 = scalar_lea.vmem %s2, %s552
      %p554 = pneg %p138
      %p555 = pneg %p135
      %s556 = smul.u32 %s24, 8
      %s557 = sadd.s32 %s556, 15
      %p558 = scmp.lt.s32.totalorder %s557, 0
      %s559 = ssub.s32 0, %s557
      %s560 = scalar_select %p558, %s559, %s557
      %s561 = sand.u32 %s560, 15
      %s562 = ssub.s32 0, %s561
      %s563 = scalar_select %p558, %s562, %s561
      %p564 = scmp.ne.s32.totalorder %s563, 0
      %p565 = scmp.lt.s32.totalorder %s563, 0
      %p566 = pnand %p565, %p564
      %p567 = pneg %p566
      %s568 = sadd.s32 %s563, 16
      %s569 = scalar_select %p567, %s568, %s563
      %p570 = scmp.lt.s32.totalorder %s23, 7
      %s571 = scalar_select %p570, %s23, 7
      %p572 = scmp.lt.s32.totalorder %s569, 15
      %s573 = scalar_select %p572, %s569, 15
      %s574 = smul.addr %s571, 16
      %s575 = sadd.s32 %s573, %s574
      %s576 = smul.addr %s575, 8
      %s577 = scalar_lea.vmem %s3, %s576
      %p578 = pneg %p194
      %p579 = pneg %p191
      %p580 = scmp.lt.s32.totalorder %s23, 7
      %s581 = scalar_select %p580, %s23, 7
      %p582 = scmp.lt.s32.totalorder %s24, 1
      %s583 = scalar_select %p582, %s24, 1
      %s584 = smul.addr %s581, 2
      %s585 = sadd.s32 %s583, %s584
      %s586 = smul.addr %s585, 8
      %s587 = scalar_lea.vmem %s4, %s586
      %p588 = pneg %p222
      %p589 = pneg %p219
      %s590 = sadd.s32 %s24, 1
      %p591 = scmp.lt.s32.totalorder %s590, 0
      %s592 = ssub.s32 0, %s590
      %s593 = scalar_select %p591, %s592, %s590
      %s594 = sand.u32 %s593, 1
      %s595 = ssub.s32 0, %s594
      %s596 = scalar_select %p591, %s595, %s594
      %p597 = scmp.ne.s32.totalorder %s596, 0
      %p598 = scmp.lt.s32.totalorder %s596, 0
      %p599 = pnand %p598, %p597
      %p600 = pneg %p599
      %s601 = sadd.s32 %s596, 2
      %s602 = scalar_select %p600, %s601, %s596
      %p603 = scmp.lt.s32.totalorder %s23, 7
      %s604 = scalar_select %p603, %s23, 7
      %p605 = scmp.lt.s32.totalorder %s602, 1
      %s606 = scalar_select %p605, %s602, 1
      %s607 = smul.addr %s604, 2
      %s608 = sadd.s32 %s606, %s607
      %s609 = smul.addr %s608, 8
      %s610 = scalar_lea.vmem %s5, %s609
      %p611 = pneg %p276
      %p612 = pneg %p273
      %p613 = pneg %p304
      %p614 = pneg %p301
      %s615 = smul.u32 8, %s24
      %p616 = scmp.lt.s32.totalorder %s23, 7
      %s617 = scalar_select %p616, %s23, 7
      %p618 = scmp.lt.s32.totalorder %s615, 15
      %s619 = scalar_select %p618, %s615, 15
      %s620 = smul.addr %s617, 16
      %s621 = sadd.s32 %s619, %s620
      %s622 = smul.addr %s621, 8
      %s623 = scalar_lea.vmem %s6, %s622
      %p624 = pneg %p332
      %p625 = pneg %p329
      %p626 = scmp.lt.s32.totalorder %s23, 7
      %s627 = scalar_select %p626, %s23, 7
      %p628 = scmp.lt.s32.totalorder %s24, 1
      %s629 = scalar_select %p628, %s24, 1
      %s630 = smul.addr %s627, 2
      %s631 = sadd.s32 %s629, %s630
      %s632 = smul.addr %s631, 8
      %s633 = scalar_lea.vmem %s7, %s632
      %s634 = smul.u32 8, %s24
      %p635 = scmp.lt.s32.totalorder %s23, 7
      %s636 = scalar_select %p635, %s23, 7
      %p637 = scmp.lt.s32.totalorder %s634, 15
      %s638 = scalar_select %p637, %s634, 15
      %s639 = smul.addr %s636, 16
      %s640 = sadd.s32 %s638, %s639
      %s641 = smul.addr %s640, 8
      %s642 = scalar_lea.vmem %s0, %s641
      %s643 = smul.u32 8, %s24
      %s644 = smul.u32 %s24, 8
      %s645 = sadd.s32 %s644, 15
      %p646 = scmp.lt.s32.totalorder %s645, 0
      %s647 = ssub.s32 0, %s645
      %s648 = scalar_select %p646, %s647, %s645
      %s649 = sand.u32 %s648, 15
      %s650 = ssub.s32 0, %s649
      %s651 = scalar_select %p646, %s650, %s649
      %p652 = scmp.ne.s32.totalorder %s651, 0
      %p653 = scmp.lt.s32.totalorder %s651, 0
      %p654 = pnand %p653, %p652
      %p655 = pneg %p654
      %s656 = sadd.s32 %s651, 16
      %s657 = scalar_select %p655, %s656, %s651
      %p658 = scmp.lt.s32.totalorder %s23, 7
      %s659 = scalar_select %p658, %s23, 7
      %p660 = scmp.lt.s32.totalorder %s657, 15
      %s661 = scalar_select %p660, %s657, 15
      %s662 = smul.addr %s659, 16
      %s663 = sadd.s32 %s661, %s662
      %s664 = smul.addr %s663, 8
      %s665 = scalar_lea.vmem %s1, %s664
      %s666 = smul.u32 %s24, 8
      %s667 = sadd.s32 %s666, 15
      %p668 = scmp.lt.s32.totalorder %s667, 0
      %s669 = ssub.s32 0, %s667
      %s670 = scalar_select %p668, %s669, %s667
      %s671 = sand.u32 %s670, 15
      %s672 = ssub.s32 0, %s671
      %s673 = scalar_select %p668, %s672, %s671
      %p674 = scmp.ne.s32.totalorder %s673, 0
      %p675 = scmp.lt.s32.totalorder %s673, 0
      %p676 = pnand %p675, %p674
      %p677 = pneg %p676
      %s678 = sadd.s32 %s673, 16
      %s679 = scalar_select %p677, %s678, %s673
      %s680 = smul.u32 8, %s24
      %p681 = scmp.lt.s32.totalorder %s23, 7
      %s682 = scalar_select %p681, %s23, 7
      %p683 = scmp.lt.s32.totalorder %s680, 15
      %s684 = scalar_select %p683, %s680, 15
      %s685 = smul.addr %s682, 16
      %s686 = sadd.s32 %s684, %s685
      %s687 = smul.addr %s686, 8
      %s688 = scalar_lea.vmem %s2, %s687
      %s689 = smul.u32 8, %s24
      %s690 = smul.u32 %s24, 8
      %s691 = sadd.s32 %s690, 15
      %p692 = scmp.lt.s32.totalorder %s691, 0
      %s693 = ssub.s32 0, %s691
      %s694 = scalar_select %p692, %s693, %s691
      %s695 = sand.u32 %s694, 15
      %s696 = ssub.s32 0, %s695
      %s697 = scalar_select %p692, %s696, %s695
      %p698 = scmp.ne.s32.totalorder %s697, 0
      %p699 = scmp.lt.s32.totalorder %s697, 0
      %p700 = pnand %p699, %p698
      %p701 = pneg %p700
      %s702 = sadd.s32 %s697, 16
      %s703 = scalar_select %p701, %s702, %s697
      %p704 = scmp.lt.s32.totalorder %s23, 7
      %s705 = scalar_select %p704, %s23, 7
      %p706 = scmp.lt.s32.totalorder %s703, 15
      %s707 = scalar_select %p706, %s703, 15
      %s708 = smul.addr %s705, 16
      %s709 = sadd.s32 %s707, %s708
      %s710 = smul.addr %s709, 8
      %s711 = scalar_lea.vmem %s3, %s710
      %s712 = smul.u32 %s24, 8
      %s713 = sadd.s32 %s712, 15
      %p714 = scmp.lt.s32.totalorder %s713, 0
      %s715 = ssub.s32 0, %s713
      %s716 = scalar_select %p714, %s715, %s713
      %s717 = sand.u32 %s716, 15
      %s718 = ssub.s32 0, %s717
      %s719 = scalar_select %p714, %s718, %s717
      %p720 = scmp.ne.s32.totalorder %s719, 0
      %p721 = scmp.lt.s32.totalorder %s719, 0
      %p722 = pnand %p721, %p720
      %p723 = pneg %p722
      %s724 = sadd.s32 %s719, 16
      %s725 = scalar_select %p723, %s724, %s719
      %p726 = scmp.lt.s32.totalorder %s23, 7
      %s727 = scalar_select %p726, %s23, 7
      %p728 = scmp.lt.s32.totalorder %s24, 1
      %s729 = scalar_select %p728, %s24, 1
      %s730 = smul.addr %s727, 2
      %s731 = sadd.s32 %s729, %s730
      %s732 = smul.addr %s731, 8
      %s733 = scalar_lea.vmem %s4, %s732
      %s734 = sadd.s32 %s24, 1
      %p735 = scmp.lt.s32.totalorder %s734, 0
      %s736 = ssub.s32 0, %s734
      %s737 = scalar_select %p735, %s736, %s734
      %s738 = sand.u32 %s737, 1
      %s739 = ssub.s32 0, %s738
      %s740 = scalar_select %p735, %s739, %s738
      %p741 = scmp.ne.s32.totalorder %s740, 0
      %p742 = scmp.lt.s32.totalorder %s740, 0
      %p743 = pnand %p742, %p741
      %p744 = pneg %p743
      %s745 = sadd.s32 %s740, 2
      %s746 = scalar_select %p744, %s745, %s740
      %p747 = scmp.lt.s32.totalorder %s23, 7
      %s748 = scalar_select %p747, %s23, 7
      %p749 = scmp.lt.s32.totalorder %s746, 1
      %s750 = scalar_select %p749, %s746, 1
      %s751 = smul.addr %s748, 2
      %s752 = sadd.s32 %s750, %s751
      %s753 = smul.addr %s752, 8
      %s754 = scalar_lea.vmem %s5, %s753
      %s755 = sadd.s32 %s24, 1
      %p756 = scmp.lt.s32.totalorder %s755, 0
      %s757 = ssub.s32 0, %s755
      %s758 = scalar_select %p756, %s757, %s755
      %s759 = sand.u32 %s758, 1
      %s760 = ssub.s32 0, %s759
      %s761 = scalar_select %p756, %s760, %s759
      %p762 = scmp.ne.s32.totalorder %s761, 0
      %p763 = scmp.lt.s32.totalorder %s761, 0
      %p764 = pnand %p763, %p762
      %p765 = pneg %p764
      %s766 = sadd.s32 %s761, 2
      %s767 = scalar_select %p765, %s766, %s761
      %s768 = smul.u32 8, %s24
      %p769 = scmp.lt.s32.totalorder %s23, 7
      %s770 = scalar_select %p769, %s23, 7
      %p771 = scmp.lt.s32.totalorder %s768, 15
      %s772 = scalar_select %p771, %s768, 15
      %s773 = smul.addr %s770, 16
      %s774 = sadd.s32 %s772, %s773
      %s775 = smul.addr %s774, 8
      %s776 = scalar_lea.vmem %s6, %s775
      %s777 = smul.u32 8, %s24
      %p778 = scmp.lt.s32.totalorder %s23, 7
      %s779 = scalar_select %p778, %s23, 7
      %p780 = scmp.lt.s32.totalorder %s24, 1
      %s781 = scalar_select %p780, %s24, 1
      %s782 = smul.addr %s779, 2
      %s783 = sadd.s32 %s781, %s782
      %s784 = smul.addr %s783, 8
      %s785 = scalar_lea.vmem %s7, %s784
      %v786 = vld [vmem:[%s642] sm:$0xff]
      %v787 = vld [vmem:[%s642 + $0x8] sm:$0xff]
      %v788 = vld [vmem:[%s642 + $0x10] sm:$0xff]
      %v789 = vld [vmem:[%s642 + $0x18] sm:$0xff]
      %v790 = vld [vmem:[%s642 + $0x20] sm:$0xff]
      %v791 = vld [vmem:[%s642 + $0x28] sm:$0xff]
      %v792 = vld [vmem:[%s642 + $0x30] sm:$0xff]
      %v793 = vld [vmem:[%s642 + $0x38] sm:$0xff]
      %v794 = vld [vmem:[%s665] sm:$0xff]
      %v795 = vld [vmem:[%s688] sm:$0xff]
      %v796 = vld [vmem:[%s688 + $0x8] sm:$0xff]
      %v797 = vld [vmem:[%s688 + $0x10] sm:$0xff]
      %v798 = vld [vmem:[%s688 + $0x18] sm:$0xff]
      %v799 = vld [vmem:[%s688 + $0x20] sm:$0xff]
      %v800 = vld [vmem:[%s688 + $0x28] sm:$0xff]
      %v801 = vld [vmem:[%s688 + $0x30] sm:$0xff]
      %v802 = vld [vmem:[%s688 + $0x38] sm:$0xff]
      %v803 = vld [vmem:[%s711] sm:$0xff]
      %v804 = vld [vmem:[%s733] sm:$0xff]
      %v805 = vld [vmem:[%s754] sm:$0xff]
      %v806 = vrot.slane %v805, 7
      %v807 = vrot.slane %v804, 7
      %vm808 = vcmask 1040384
      %v809 = vsel %vm808, %v806, %v807
      %v810 = vmul.f32 %v786, 0.35355338
      %v811 = vmul.f32 %v787, 0.35355338
      %v812 = vmul.f32 %v788, 0.35355338
      %v813 = vmul.f32 %v789, 0.35355338
      %v814 = vmul.f32 %v790, 0.35355338
      %v815 = vmul.f32 %v791, 0.35355338
      %v816 = vmul.f32 %v792, 0.35355338
      %v817 = vmul.f32 %v793, 0.35355338
      %v818 = vmul.f32 %v786, %v786
      %v819 = vmul.f32 %v787, %v787
      %v820 = vmul.f32 %v788, %v788
      %v821 = vmul.f32 %v789, %v789
      %v822 = vmul.f32 %v790, %v790
      %v823 = vmul.f32 %v791, %v791
      %v824 = vmul.f32 %v792, %v792
      %v825 = vmul.f32 %v793, %v793
      %vm826 = vcmask 64512
      %v827 = vsel %vm826, %v818, 0.0
      %828 = vadd.xlane.f32.xlu0 %v827
      %v829 = vpop.xlane.xlu0 %828
      %v830 = vsel %vm826, %v819, 0.0
      %831 = vadd.xlane.f32.xlu0 %v830
      %v832 = vpop.xlane.xlu0 %831
      %v833 = vsel %vm826, %v820, 0.0
      %834 = vadd.xlane.f32.xlu0 %v833
      %v835 = vpop.xlane.xlu0 %834
      %v836 = vsel %vm826, %v821, 0.0
      %837 = vadd.xlane.f32.xlu0 %v836
      %v838 = vpop.xlane.xlu0 %837
      %v839 = vsel %vm826, %v822, 0.0
      %840 = vadd.xlane.f32.xlu0 %v839
      %v841 = vpop.xlane.xlu0 %840
      %v842 = vsel %vm826, %v823, 0.0
      %843 = vadd.xlane.f32.xlu0 %v842
      %v844 = vpop.xlane.xlu0 %843
      %v845 = vsel %vm826, %v824, 0.0
      %846 = vadd.xlane.f32.xlu0 %v845
      %v847 = vpop.xlane.xlu0 %846
      %v848 = vsel %vm826, %v825, 0.0
      %849 = vadd.xlane.f32.xlu0 %v848
      %v850 = vpop.xlane.xlu0 %849
      %v851 = vrsqrt.pop %v829
      %v852 = vmul.f32 %v851, %v829
      %v853 = vmul.f32 %v852, %v851
      %v854 = vmul.f32 0.5, %v853
      %v855 = vsub.f32 1.5, %v854
      %v856 = vmul.f32 %v851, %v855
      %v857 = vmul.f32 %v829, %v856
      %vm858 = vcmp.eq.f32.partialorder %v829, inf
      %v859 = vsel %vm858, %v829, %v857
      %vm860 = vcmp.eq.f32.partialorder %v829, 0.0
      %v861 = vand.u32 %v829, 2147483648
      %v862 = vsel %vm860, %v861, %v859
      %v863 = vrsqrt.pop %v832
      %v864 = vmul.f32 %v863, %v832
      %v865 = vmul.f32 %v864, %v863
      %v866 = vmul.f32 0.5, %v865
      %v867 = vsub.f32 1.5, %v866
      %v868 = vmul.f32 %v863, %v867
      %v869 = vmul.f32 %v832, %v868
      %vm870 = vcmp.eq.f32.partialorder %v832, inf
      %v871 = vsel %vm870, %v832, %v869
      %vm872 = vcmp.eq.f32.partialorder %v832, 0.0
      %v873 = vand.u32 %v832, 2147483648
      %v874 = vsel %vm872, %v873, %v871
      %v875 = vrsqrt.pop %v835
      %v876 = vmul.f32 %v875, %v835
      %v877 = vmul.f32 %v876, %v875
      %v878 = vmul.f32 0.5, %v877
      %v879 = vsub.f32 1.5, %v878
      %v880 = vmul.f32 %v875, %v879
      %v881 = vmul.f32 %v835, %v880
      %vm882 = vcmp.eq.f32.partialorder %v835, inf
      %v883 = vsel %vm882, %v835, %v881
      %vm884 = vcmp.eq.f32.partialorder %v835, 0.0
      %v885 = vand.u32 %v835, 2147483648
      %v886 = vsel %vm884, %v885, %v883
      %v887 = vrsqrt.pop %v838
      %v888 = vmul.f32 %v887, %v838
      %v889 = vmul.f32 %v888, %v887
      %v890 = vmul.f32 0.5, %v889
      %v891 = vsub.f32 1.5, %v890
      %v892 = vmul.f32 %v887, %v891
      %v893 = vmul.f32 %v838, %v892
      %vm894 = vcmp.eq.f32.partialorder %v838, inf
      %v895 = vsel %vm894, %v838, %v893
      %vm896 = vcmp.eq.f32.partialorder %v838, 0.0
      %v897 = vand.u32 %v838, 2147483648
      %v898 = vsel %vm896, %v897, %v895
      %v899 = vrsqrt.pop %v841
      %v900 = vmul.f32 %v899, %v841
      %v901 = vmul.f32 %v900, %v899
      %v902 = vmul.f32 0.5, %v901
      %v903 = vsub.f32 1.5, %v902
      %v904 = vmul.f32 %v899, %v903
      %v905 = vmul.f32 %v841, %v904
      %vm906 = vcmp.eq.f32.partialorder %v841, inf
      %v907 = vsel %vm906, %v841, %v905
      %vm908 = vcmp.eq.f32.partialorder %v841, 0.0
      %v909 = vand.u32 %v841, 2147483648
      %v910 = vsel %vm908, %v909, %v907
      %v911 = vrsqrt.pop %v844
      %v912 = vmul.f32 %v911, %v844
      %v913 = vmul.f32 %v912, %v911
      %v914 = vmul.f32 0.5, %v913
      %v915 = vsub.f32 1.5, %v914
      %v916 = vmul.f32 %v911, %v915
      %v917 = vmul.f32 %v844, %v916
      %vm918 = vcmp.eq.f32.partialorder %v844, inf
      %v919 = vsel %vm918, %v844, %v917
      %vm920 = vcmp.eq.f32.partialorder %v844, 0.0
      %v921 = vand.u32 %v844, 2147483648
      %v922 = vsel %vm920, %v921, %v919
      %v923 = vrsqrt.pop %v847
      %v924 = vmul.f32 %v923, %v847
      %v925 = vmul.f32 %v924, %v923
      %v926 = vmul.f32 0.5, %v925
      %v927 = vsub.f32 1.5, %v926
      %v928 = vmul.f32 %v923, %v927
      %v929 = vmul.f32 %v847, %v928
      %vm930 = vcmp.eq.f32.partialorder %v847, inf
      %v931 = vsel %vm930, %v847, %v929
      %vm932 = vcmp.eq.f32.partialorder %v847, 0.0
      %v933 = vand.u32 %v847, 2147483648
      %v934 = vsel %vm932, %v933, %v931
      %v935 = vrsqrt.pop %v850
      %v936 = vmul.f32 %v935, %v850
      %v937 = vmul.f32 %v936, %v935
      %v938 = vmul.f32 0.5, %v937
      %v939 = vsub.f32 1.5, %v938
      %v940 = vmul.f32 %v935, %v939
      %v941 = vmul.f32 %v850, %v940
      %vm942 = vcmp.eq.f32.partialorder %v850, inf
      %v943 = vsel %vm942, %v850, %v941
      %vm944 = vcmp.eq.f32.partialorder %v850, 0.0
      %v945 = vand.u32 %v850, 2147483648
      %v946 = vsel %vm944, %v945, %v943
      %v947 = vmax.f32 %v862, 1e-12
      %v948 = vmax.f32 %v874, 1e-12
      %v949 = vmax.f32 %v886, 1e-12
      %v950 = vmax.f32 %v898, 1e-12
      %v951 = vmax.f32 %v910, 1e-12
      %v952 = vmax.f32 %v922, 1e-12
      %v953 = vmax.f32 %v934, 1e-12
      %v954 = vmax.f32 %v946, 1e-12
      %v955 = vrcp.pop %v947
      %v956 = vmul.f32 %v947, %v955
      %v957 = vsub.f32 1.0, %v956
      %v958 = vmul.f32 %v955, %v957
      %v959 = vadd.f32 %v955, %v958
      %vm960 = vweird.f32 %v947
      %vm961 = vweird.f32 %v955
      %vm962 = vmor %vm960, %vm961
      %v963 = vsel %vm962, %v955, %v959
      %v964 = vand.u32 2147483647, %v947
      %vm965 = vcmp.eq.f32.partialorder %v964, 8.507059e+37
      %v966 = vand.u32 %v947, 2147483648
      %v967 = vor.u32 1.1754944e-38, %v966
      %v968 = vsel %vm965, %v967, %v963
      %v969 = vmul.f32 %v786, %v968
      %v970 = vrcp.pop %v948
      %v971 = vmul.f32 %v948, %v970
      %v972 = vsub.f32 1.0, %v971
      %v973 = vmul.f32 %v970, %v972
      %v974 = vadd.f32 %v970, %v973
      %vm975 = vweird.f32 %v948
      %vm976 = vweird.f32 %v970
      %vm977 = vmor %vm975, %vm976
      %v978 = vsel %vm977, %v970, %v974
      %v979 = vand.u32 2147483647, %v948
      %vm980 = vcmp.eq.f32.partialorder %v979, 8.507059e+37
      %v981 = vand.u32 %v948, 2147483648
      %v982 = vor.u32 1.1754944e-38, %v981
      %v983 = vsel %vm980, %v982, %v978
      %v984 = vmul.f32 %v787, %v983
      %v985 = vrcp.pop %v949
      %v986 = vmul.f32 %v949, %v985
      %v987 = vsub.f32 1.0, %v986
      %v988 = vmul.f32 %v985, %v987
      %v989 = vadd.f32 %v985, %v988
      %vm990 = vweird.f32 %v949
      %vm991 = vweird.f32 %v985
      %vm992 = vmor %vm990, %vm991
      %v993 = vsel %vm992, %v985, %v989
      %v994 = vand.u32 2147483647, %v949
      %vm995 = vcmp.eq.f32.partialorder %v994, 8.507059e+37
      %v996 = vand.u32 %v949, 2147483648
      %v997 = vor.u32 1.1754944e-38, %v996
      %v998 = vsel %vm995, %v997, %v993
      %v999 = vmul.f32 %v788, %v998
      %v1000 = vrcp.pop %v950
      %v1001 = vmul.f32 %v950, %v1000
      %v1002 = vsub.f32 1.0, %v1001
      %v1003 = vmul.f32 %v1000, %v1002
      %v1004 = vadd.f32 %v1000, %v1003
      %vm1005 = vweird.f32 %v950
      %vm1006 = vweird.f32 %v1000
      %vm1007 = vmor %vm1005, %vm1006
      %v1008 = vsel %vm1007, %v1000, %v1004
      %v1009 = vand.u32 2147483647, %v950
      %vm1010 = vcmp.eq.f32.partialorder %v1009, 8.507059e+37
      %v1011 = vand.u32 %v950, 2147483648
      %v1012 = vor.u32 1.1754944e-38, %v1011
      %v1013 = vsel %vm1010, %v1012, %v1008
      %v1014 = vmul.f32 %v789, %v1013
      %v1015 = vrcp.pop %v951
      %v1016 = vmul.f32 %v951, %v1015
      %v1017 = vsub.f32 1.0, %v1016
      %v1018 = vmul.f32 %v1015, %v1017
      %v1019 = vadd.f32 %v1015, %v1018
      %vm1020 = vweird.f32 %v951
      %vm1021 = vweird.f32 %v1015
      %vm1022 = vmor %vm1020, %vm1021
      %v1023 = vsel %vm1022, %v1015, %v1019
      %v1024 = vand.u32 2147483647, %v951
      %vm1025 = vcmp.eq.f32.partialorder %v1024, 8.507059e+37
      %v1026 = vand.u32 %v951, 2147483648
      %v1027 = vor.u32 1.1754944e-38, %v1026
      %v1028 = vsel %vm1025, %v1027, %v1023
      %v1029 = vmul.f32 %v790, %v1028
      %v1030 = vrcp.pop %v952
      %v1031 = vmul.f32 %v952, %v1030
      %v1032 = vsub.f32 1.0, %v1031
      %v1033 = vmul.f32 %v1030, %v1032
      %v1034 = vadd.f32 %v1030, %v1033
      %vm1035 = vweird.f32 %v952
      %vm1036 = vweird.f32 %v1030
      %vm1037 = vmor %vm1035, %vm1036
      %v1038 = vsel %vm1037, %v1030, %v1034
      %v1039 = vand.u32 2147483647, %v952
      %vm1040 = vcmp.eq.f32.partialorder %v1039, 8.507059e+37
      %v1041 = vand.u32 %v952, 2147483648
      %v1042 = vor.u32 1.1754944e-38, %v1041
      %v1043 = vsel %vm1040, %v1042, %v1038
      %v1044 = vmul.f32 %v791, %v1043
      %v1045 = vrcp.pop %v953
      %v1046 = vmul.f32 %v953, %v1045
      %v1047 = vsub.f32 1.0, %v1046
      %v1048 = vmul.f32 %v1045, %v1047
      %v1049 = vadd.f32 %v1045, %v1048
      %vm1050 = vweird.f32 %v953
      %vm1051 = vweird.f32 %v1045
      %vm1052 = vmor %vm1050, %vm1051
      %v1053 = vsel %vm1052, %v1045, %v1049
      %v1054 = vand.u32 2147483647, %v953
      %vm1055 = vcmp.eq.f32.partialorder %v1054, 8.507059e+37
      %v1056 = vand.u32 %v953, 2147483648
      %v1057 = vor.u32 1.1754944e-38, %v1056
      %v1058 = vsel %vm1055, %v1057, %v1053
      %v1059 = vmul.f32 %v792, %v1058
      %v1060 = vrcp.pop %v954
      %v1061 = vmul.f32 %v954, %v1060
      %v1062 = vsub.f32 1.0, %v1061
      %v1063 = vmul.f32 %v1060, %v1062
      %v1064 = vadd.f32 %v1060, %v1063
      %vm1065 = vweird.f32 %v954
      %vm1066 = vweird.f32 %v1060
      %vm1067 = vmor %vm1065, %vm1066
      %v1068 = vsel %vm1067, %v1060, %v1064
      %v1069 = vand.u32 2147483647, %v954
      %vm1070 = vcmp.eq.f32.partialorder %v1069, 8.507059e+37
      %v1071 = vand.u32 %v954, 2147483648
      %v1072 = vor.u32 1.1754944e-38, %v1071
      %v1073 = vsel %vm1070, %v1072, %v1068
      %v1074 = vmul.f32 %v793, %v1073
      %v1076 = vsel %vm826, %v810, 0
      %v1079 = vsel %vm826, %v969, 0
      %1081 = vmatpush.xpose.msra.mxu0 0.0
      %1082 = vmatpush.xpose.msra.mxu0 0.0
      %1083 = vmatpush.xpose.msra.mxu0 0.0
      %1084 = vmatpush.xpose.msra.mxu0 0.0
      %1085 = vmatpush.xpose.msra.mxu0 0.0
      %1086 = vmatpush.xpose.msra.mxu0 0.0
      %1087 = vmatpush.xpose.msra.mxu0 0.0
      %1088 = vmatpush.xpose.msra.mxu0 0.0
      %1089 = vmatpush.xpose.msra.mxu0 0.0
      %1090 = vmatpush.xpose.msra.mxu0 0.0
      %1091 = vmatpush.xpose.msra.mxu0 0.0
      %1092 = vmatpush.xpose.msra.mxu0 0.0
      %1093 = vmatpush.xpose.msra.mxu0 0.0
      %1094 = vmatpush.xpose.msra.mxu0 0.0
      %1095 = vmatpush.xpose.msra.mxu0 0.0
      %1096 = vmatpush.xpose.msra.mxu0 %v1079
      %1097 = vmatmul.f32.gmra.mxu0 %v1076
      %v1098 = vpop.f32.mrf.mxu0
      %v1099 = vadd.f32 0.0, %v1098
      %1100 = vdwg.mxu0
      %v1102 = vsel %vm826, %v811, 0
      %v1105 = vsel %vm826, %v984, 0
      %1107 = vmatpush.xpose.msra.mxu0 0.0
      %1108 = vmatpush.xpose.msra.mxu0 0.0
      %1109 = vmatpush.xpose.msra.mxu0 0.0
      %1110 = vmatpush.xpose.msra.mxu0 0.0
      %1111 = vmatpush.xpose.msra.mxu0 0.0
      %1112 = vmatpush.xpose.msra.mxu0 0.0
      %1113 = vmatpush.xpose.msra.mxu0 0.0
      %1114 = vmatpush.xpose.msra.mxu0 0.0
      %1115 = vmatpush.xpose.msra.mxu0 0.0
      %1116 = vmatpush.xpose.msra.mxu0 0.0
      %1117 = vmatpush.xpose.msra.mxu0 0.0
      %1118 = vmatpush.xpose.msra.mxu0 0.0
      %1119 = vmatpush.xpose.msra.mxu0 0.0
      %1120 = vmatpush.xpose.msra.mxu0 0.0
      %1121 = vmatpush.xpose.msra.mxu0 0.0
      %1122 = vmatpush.xpose.msra.mxu0 %v1105
      %1123 = vmatmul.f32.gmra.mxu0 %v1102
      %v1124 = vpop.f32.mrf.mxu0
      %v1125 = vadd.f32 0.0, %v1124
      %1126 = vdwg.mxu0
      %v1128 = vsel %vm826, %v812, 0
      %v1131 = vsel %vm826, %v999, 0
      %1133 = vmatpush.xpose.msra.mxu0 0.0
      %1134 = vmatpush.xpose.msra.mxu0 0.0
      %1135 = vmatpush.xpose.msra.mxu0 0.0
      %1136 = vmatpush.xpose.msra.mxu0 0.0
      %1137 = vmatpush.xpose.msra.mxu0 0.0
      %1138 = vmatpush.xpose.msra.mxu0 0.0
      %1139 = vmatpush.xpose.msra.mxu0 0.0
      %1140 = vmatpush.xpose.msra.mxu0 0.0
      %1141 = vmatpush.xpose.msra.mxu0 0.0
      %1142 = vmatpush.xpose.msra.mxu0 0.0
      %1143 = vmatpush.xpose.msra.mxu0 0.0
      %1144 = vmatpush.xpose.msra.mxu0 0.0
      %1145 = vmatpush.xpose.msra.mxu0 0.0
      %1146 = vmatpush.xpose.msra.mxu0 0.0
      %1147 = vmatpush.xpose.msra.mxu0 0.0
      %1148 = vmatpush.xpose.msra.mxu0 %v1131
      %1149 = vmatmul.f32.gmra.mxu0 %v1128
      %v1150 = vpop.f32.mrf.mxu0
      %v1151 = vadd.f32 0.0, %v1150
      %1152 = vdwg.mxu0
      %v1154 = vsel %vm826, %v813, 0
      %v1157 = vsel %vm826, %v1014, 0
      %1159 = vmatpush.xpose.msra.mxu0 0.0
      %1160 = vmatpush.xpose.msra.mxu0 0.0
      %1161 = vmatpush.xpose.msra.mxu0 0.0
      %1162 = vmatpush.xpose.msra.mxu0 0.0
      %1163 = vmatpush.xpose.msra.mxu0 0.0
      %1164 = vmatpush.xpose.msra.mxu0 0.0
      %1165 = vmatpush.xpose.msra.mxu0 0.0
      %1166 = vmatpush.xpose.msra.mxu0 0.0
      %1167 = vmatpush.xpose.msra.mxu0 0.0
      %1168 = vmatpush.xpose.msra.mxu0 0.0
      %1169 = vmatpush.xpose.msra.mxu0 0.0
      %1170 = vmatpush.xpose.msra.mxu0 0.0
      %1171 = vmatpush.xpose.msra.mxu0 0.0
      %1172 = vmatpush.xpose.msra.mxu0 0.0
      %1173 = vmatpush.xpose.msra.mxu0 0.0
      %1174 = vmatpush.xpose.msra.mxu0 %v1157
      %1175 = vmatmul.f32.gmra.mxu0 %v1154
      %v1176 = vpop.f32.mrf.mxu0
      %v1177 = vadd.f32 0.0, %v1176
      %1178 = vdwg.mxu0
      %v1180 = vsel %vm826, %v814, 0
      %v1183 = vsel %vm826, %v1029, 0
      %1185 = vmatpush.xpose.msra.mxu0 0.0
      %1186 = vmatpush.xpose.msra.mxu0 0.0
      %1187 = vmatpush.xpose.msra.mxu0 0.0
      %1188 = vmatpush.xpose.msra.mxu0 0.0
      %1189 = vmatpush.xpose.msra.mxu0 0.0
      %1190 = vmatpush.xpose.msra.mxu0 0.0
      %1191 = vmatpush.xpose.msra.mxu0 0.0
      %1192 = vmatpush.xpose.msra.mxu0 0.0
      %1193 = vmatpush.xpose.msra.mxu0 0.0
      %1194 = vmatpush.xpose.msra.mxu0 0.0
      %1195 = vmatpush.xpose.msra.mxu0 0.0
      %1196 = vmatpush.xpose.msra.mxu0 0.0
      %1197 = vmatpush.xpose.msra.mxu0 0.0
      %1198 = vmatpush.xpose.msra.mxu0 0.0
      %1199 = vmatpush.xpose.msra.mxu0 0.0
      %1200 = vmatpush.xpose.msra.mxu0 %v1183
      %1201 = vmatmul.f32.gmra.mxu0 %v1180
      %v1202 = vpop.f32.mrf.mxu0
      %v1203 = vadd.f32 0.0, %v1202
      %1204 = vdwg.mxu0
      %v1206 = vsel %vm826, %v815, 0
      %v1209 = vsel %vm826, %v1044, 0
      %1211 = vmatpush.xpose.msra.mxu0 0.0
      %1212 = vmatpush.xpose.msra.mxu0 0.0
      %1213 = vmatpush.xpose.msra.mxu0 0.0
      %1214 = vmatpush.xpose.msra.mxu0 0.0
      %1215 = vmatpush.xpose.msra.mxu0 0.0
      %1216 = vmatpush.xpose.msra.mxu0 0.0
      %1217 = vmatpush.xpose.msra.mxu0 0.0
      %1218 = vmatpush.xpose.msra.mxu0 0.0
      %1219 = vmatpush.xpose.msra.mxu0 0.0
      %1220 = vmatpush.xpose.msra.mxu0 0.0
      %1221 = vmatpush.xpose.msra.mxu0 0.0
      %1222 = vmatpush.xpose.msra.mxu0 0.0
      %1223 = vmatpush.xpose.msra.mxu0 0.0
      %1224 = vmatpush.xpose.msra.mxu0 0.0
      %1225 = vmatpush.xpose.msra.mxu0 0.0
      %1226 = vmatpush.xpose.msra.mxu0 %v1209
      %1227 = vmatmul.f32.gmra.mxu0 %v1206
      %v1228 = vpop.f32.mrf.mxu0
      %v1229 = vadd.f32 0.0, %v1228
      %1230 = vdwg.mxu0
      %v1232 = vsel %vm826, %v816, 0
      %v1235 = vsel %vm826, %v1059, 0
      %1237 = vmatpush.xpose.msra.mxu0 0.0
      %1238 = vmatpush.xpose.msra.mxu0 0.0
      %1239 = vmatpush.xpose.msra.mxu0 0.0
      %1240 = vmatpush.xpose.msra.mxu0 0.0
      %1241 = vmatpush.xpose.msra.mxu0 0.0
      %1242 = vmatpush.xpose.msra.mxu0 0.0
      %1243 = vmatpush.xpose.msra.mxu0 0.0
      %1244 = vmatpush.xpose.msra.mxu0 0.0
      %1245 = vmatpush.xpose.msra.mxu0 0.0
      %1246 = vmatpush.xpose.msra.mxu0 0.0
      %1247 = vmatpush.xpose.msra.mxu0 0.0
      %1248 = vmatpush.xpose.msra.mxu0 0.0
      %1249 = vmatpush.xpose.msra.mxu0 0.0
      %1250 = vmatpush.xpose.msra.mxu0 0.0
      %1251 = vmatpush.xpose.msra.mxu0 0.0
      %1252 = vmatpush.xpose.msra.mxu0 %v1235
      %1253 = vmatmul.f32.gmra.mxu0 %v1232
      %v1254 = vpop.f32.mrf.mxu0
      %v1255 = vadd.f32 0.0, %v1254
      %1256 = vdwg.mxu0
      %v1258 = vsel %vm826, %v817, 0
      %v1261 = vsel %vm826, %v1074, 0
      %1263 = vmatpush.xpose.msra.mxu0 0.0
      %1264 = vmatpush.xpose.msra.mxu0 0.0
      %1265 = vmatpush.xpose.msra.mxu0 0.0
      %1266 = vmatpush.xpose.msra.mxu0 0.0
      %1267 = vmatpush.xpose.msra.mxu0 0.0
      %1268 = vmatpush.xpose.msra.mxu0 0.0
      %1269 = vmatpush.xpose.msra.mxu0 0.0
      %1270 = vmatpush.xpose.msra.mxu0 0.0
      %1271 = vmatpush.xpose.msra.mxu0 0.0
      %1272 = vmatpush.xpose.msra.mxu0 0.0
      %1273 = vmatpush.xpose.msra.mxu0 0.0
      %1274 = vmatpush.xpose.msra.mxu0 0.0
      %1275 = vmatpush.xpose.msra.mxu0 0.0
      %1276 = vmatpush.xpose.msra.mxu0 0.0
      %1277 = vmatpush.xpose.msra.mxu0 0.0
      %1278 = vmatpush.xpose.msra.mxu0 %v1261
      %1279 = vmatmul.f32.gmra.mxu0 %v1258
      %v1280 = vpop.f32.mrf.mxu0
      %v1281 = vadd.f32 0.0, %v1280
      %1282 = vdwg.mxu0
      %v1283 = vmul.f32 %v794, %v794
      %v1284 = vsel %vm826, %v1283, 0.0
      %1285 = vadd.xlane.f32.xlu0 %v1284
      %v1286 = vpop.xlane.xlu0 %1285
      %v1287 = vrsqrt.pop %v1286
      %v1288 = vmul.f32 %v1287, %v1286
      %v1289 = vmul.f32 %v1288, %v1287
      %v1290 = vmul.f32 0.5, %v1289
      %v1291 = vsub.f32 1.5, %v1290
      %v1292 = vmul.f32 %v1287, %v1291
      %v1293 = vmul.f32 %v1286, %v1292
      %vm1294 = vcmp.eq.f32.partialorder %v1286, inf
      %v1295 = vsel %vm1294, %v1286, %v1293
      %vm1296 = vcmp.eq.f32.partialorder %v1286, 0.0
      %v1297 = vand.u32 %v1286, 2147483648
      %v1298 = vsel %vm1296, %v1297, %v1295
      %v1299 = vmax.f32 %v1298, 1e-12
      %v1300 = vrcp.pop %v1299
      %v1301 = vmul.f32 %v1299, %v1300
      %v1302 = vsub.f32 1.0, %v1301
      %v1303 = vmul.f32 %v1300, %v1302
      %v1304 = vadd.f32 %v1300, %v1303
      %vm1305 = vweird.f32 %v1299
      %vm1306 = vweird.f32 %v1300
      %vm1307 = vmor %vm1305, %vm1306
      %v1308 = vsel %vm1307, %v1300, %v1304
      %v1309 = vand.u32 2147483647, %v1299
      %vm1310 = vcmp.eq.f32.partialorder %v1309, 8.507059e+37
      %v1311 = vand.u32 %v1299, 2147483648
      %v1312 = vor.u32 1.1754944e-38, %v1311
      %v1313 = vsel %vm1310, %v1312, %v1308
      %v1314 = vmul.f32 %v794, %v1313
      %v1316 = vsel %vm826, %v1314, 0
      %1318 = vmatpush.xpose.msra.mxu0 0.0
      %1319 = vmatpush.xpose.msra.mxu0 0.0
      %1320 = vmatpush.xpose.msra.mxu0 0.0
      %1321 = vmatpush.xpose.msra.mxu0 0.0
      %1322 = vmatpush.xpose.msra.mxu0 0.0
      %1323 = vmatpush.xpose.msra.mxu0 0.0
      %1324 = vmatpush.xpose.msra.mxu0 0.0
      %1325 = vmatpush.xpose.msra.mxu0 0.0
      %1326 = vmatpush.xpose.msra.mxu0 0.0
      %1327 = vmatpush.xpose.msra.mxu0 0.0
      %1328 = vmatpush.xpose.msra.mxu0 0.0
      %1329 = vmatpush.xpose.msra.mxu0 0.0
      %1330 = vmatpush.xpose.msra.mxu0 0.0
      %1331 = vmatpush.xpose.msra.mxu0 0.0
      %1332 = vmatpush.xpose.msra.mxu0 0.0
      %1333 = vmatpush.xpose.msra.mxu0 %v1316
      %1334 = vmatmul.f32.gmra.mxu0 %v1076
      %v1335 = vpop.f32.mrf.mxu0
      %v1336 = vadd.f32 0.0, %v1335
      %1337 = vdwg.mxu0
      %1338 = vmatpush.xpose.msra.mxu0 0.0
      %1339 = vmatpush.xpose.msra.mxu0 0.0
      %1340 = vmatpush.xpose.msra.mxu0 0.0
      %1341 = vmatpush.xpose.msra.mxu0 0.0
      %1342 = vmatpush.xpose.msra.mxu0 0.0
      %1343 = vmatpush.xpose.msra.mxu0 0.0
      %1344 = vmatpush.xpose.msra.mxu0 0.0
      %1345 = vmatpush.xpose.msra.mxu0 0.0
      %1346 = vmatpush.xpose.msra.mxu0 0.0
      %1347 = vmatpush.xpose.msra.mxu0 0.0
      %1348 = vmatpush.xpose.msra.mxu0 0.0
      %1349 = vmatpush.xpose.msra.mxu0 0.0
      %1350 = vmatpush.xpose.msra.mxu0 0.0
      %1351 = vmatpush.xpose.msra.mxu0 0.0
      %1352 = vmatpush.xpose.msra.mxu0 0.0
      %1353 = vmatpush.xpose.msra.mxu0 %v1079
      %1354 = vmatmul.f32.gmra.mxu0 %v1102
      %v1355 = vpop.f32.mrf.mxu0
      %v1356 = vadd.f32 0.0, %v1355
      %1357 = vdwg.mxu0
      %1358 = vmatpush.xpose.msra.mxu0 0.0
      %1359 = vmatpush.xpose.msra.mxu0 0.0
      %1360 = vmatpush.xpose.msra.mxu0 0.0
      %1361 = vmatpush.xpose.msra.mxu0 0.0
      %1362 = vmatpush.xpose.msra.mxu0 0.0
      %1363 = vmatpush.xpose.msra.mxu0 0.0
      %1364 = vmatpush.xpose.msra.mxu0 0.0
      %1365 = vmatpush.xpose.msra.mxu0 0.0
      %1366 = vmatpush.xpose.msra.mxu0 0.0
      %1367 = vmatpush.xpose.msra.mxu0 0.0
      %1368 = vmatpush.xpose.msra.mxu0 0.0
      %1369 = vmatpush.xpose.msra.mxu0 0.0
      %1370 = vmatpush.xpose.msra.mxu0 0.0
      %1371 = vmatpush.xpose.msra.mxu0 0.0
      %1372 = vmatpush.xpose.msra.mxu0 0.0
      %1373 = vmatpush.xpose.msra.mxu0 %v1105
      %1374 = vmatmul.f32.gmra.mxu0 %v1128
      %v1375 = vpop.f32.mrf.mxu0
      %v1376 = vadd.f32 0.0, %v1375
      %1377 = vdwg.mxu0
      %1378 = vmatpush.xpose.msra.mxu0 0.0
      %1379 = vmatpush.xpose.msra.mxu0 0.0
      %1380 = vmatpush.xpose.msra.mxu0 0.0
      %1381 = vmatpush.xpose.msra.mxu0 0.0
      %1382 = vmatpush.xpose.msra.mxu0 0.0
      %1383 = vmatpush.xpose.msra.mxu0 0.0
      %1384 = vmatpush.xpose.msra.mxu0 0.0
      %1385 = vmatpush.xpose.msra.mxu0 0.0
      %1386 = vmatpush.xpose.msra.mxu0 0.0
      %1387 = vmatpush.xpose.msra.mxu0 0.0
      %1388 = vmatpush.xpose.msra.mxu0 0.0
      %1389 = vmatpush.xpose.msra.mxu0 0.0
      %1390 = vmatpush.xpose.msra.mxu0 0.0
      %1391 = vmatpush.xpose.msra.mxu0 0.0
      %1392 = vmatpush.xpose.msra.mxu0 0.0
      %1393 = vmatpush.xpose.msra.mxu0 %v1131
      %1394 = vmatmul.f32.gmra.mxu0 %v1154
      %v1395 = vpop.f32.mrf.mxu0
      %v1396 = vadd.f32 0.0, %v1395
      %1397 = vdwg.mxu0
      %1398 = vmatpush.xpose.msra.mxu0 0.0
      %1399 = vmatpush.xpose.msra.mxu0 0.0
      %1400 = vmatpush.xpose.msra.mxu0 0.0
      %1401 = vmatpush.xpose.msra.mxu0 0.0
      %1402 = vmatpush.xpose.msra.mxu0 0.0
      %1403 = vmatpush.xpose.msra.mxu0 0.0
      %1404 = vmatpush.xpose.msra.mxu0 0.0
      %1405 = vmatpush.xpose.msra.mxu0 0.0
      %1406 = vmatpush.xpose.msra.mxu0 0.0
      %1407 = vmatpush.xpose.msra.mxu0 0.0
      %1408 = vmatpush.xpose.msra.mxu0 0.0
      %1409 = vmatpush.xpose.msra.mxu0 0.0
      %1410 = vmatpush.xpose.msra.mxu0 0.0
      %1411 = vmatpush.xpose.msra.mxu0 0.0
      %1412 = vmatpush.xpose.msra.mxu0 0.0
      %1413 = vmatpush.xpose.msra.mxu0 %v1157
      %1414 = vmatmul.f32.gmra.mxu0 %v1180
      %v1415 = vpop.f32.mrf.mxu0
      %v1416 = vadd.f32 0.0, %v1415
      %1417 = vdwg.mxu0
      %1418 = vmatpush.xpose.msra.mxu0 0.0
      %1419 = vmatpush.xpose.msra.mxu0 0.0
      %1420 = vmatpush.xpose.msra.mxu0 0.0
      %1421 = vmatpush.xpose.msra.mxu0 0.0
      %1422 = vmatpush.xpose.msra.mxu0 0.0
      %1423 = vmatpush.xpose.msra.mxu0 0.0
      %1424 = vmatpush.xpose.msra.mxu0 0.0
      %1425 = vmatpush.xpose.msra.mxu0 0.0
      %1426 = vmatpush.xpose.msra.mxu0 0.0
      %1427 = vmatpush.xpose.msra.mxu0 0.0
      %1428 = vmatpush.xpose.msra.mxu0 0.0
      %1429 = vmatpush.xpose.msra.mxu0 0.0
      %1430 = vmatpush.xpose.msra.mxu0 0.0
      %1431 = vmatpush.xpose.msra.mxu0 0.0
      %1432 = vmatpush.xpose.msra.mxu0 0.0
      %1433 = vmatpush.xpose.msra.mxu0 %v1183
      %1434 = vmatmul.f32.gmra.mxu0 %v1206
      %v1435 = vpop.f32.mrf.mxu0
      %v1436 = vadd.f32 0.0, %v1435
      %1437 = vdwg.mxu0
      %1438 = vmatpush.xpose.msra.mxu0 0.0
      %1439 = vmatpush.xpose.msra.mxu0 0.0
      %1440 = vmatpush.xpose.msra.mxu0 0.0
      %1441 = vmatpush.xpose.msra.mxu0 0.0
      %1442 = vmatpush.xpose.msra.mxu0 0.0
      %1443 = vmatpush.xpose.msra.mxu0 0.0
      %1444 = vmatpush.xpose.msra.mxu0 0.0
      %1445 = vmatpush.xpose.msra.mxu0 0.0
      %1446 = vmatpush.xpose.msra.mxu0 0.0
      %1447 = vmatpush.xpose.msra.mxu0 0.0
      %1448 = vmatpush.xpose.msra.mxu0 0.0
      %1449 = vmatpush.xpose.msra.mxu0 0.0
      %1450 = vmatpush.xpose.msra.mxu0 0.0
      %1451 = vmatpush.xpose.msra.mxu0 0.0
      %1452 = vmatpush.xpose.msra.mxu0 0.0
      %1453 = vmatpush.xpose.msra.mxu0 %v1209
      %1454 = vmatmul.f32.gmra.mxu0 %v1232
      %v1455 = vpop.f32.mrf.mxu0
      %v1456 = vadd.f32 0.0, %v1455
      %1457 = vdwg.mxu0
      %1458 = vmatpush.xpose.msra.mxu0 0.0
      %1459 = vmatpush.xpose.msra.mxu0 0.0
      %1460 = vmatpush.xpose.msra.mxu0 0.0
      %1461 = vmatpush.xpose.msra.mxu0 0.0
      %1462 = vmatpush.xpose.msra.mxu0 0.0
      %1463 = vmatpush.xpose.msra.mxu0 0.0
      %1464 = vmatpush.xpose.msra.mxu0 0.0
      %1465 = vmatpush.xpose.msra.mxu0 0.0
      %1466 = vmatpush.xpose.msra.mxu0 0.0
      %1467 = vmatpush.xpose.msra.mxu0 0.0
      %1468 = vmatpush.xpose.msra.mxu0 0.0
      %1469 = vmatpush.xpose.msra.mxu0 0.0
      %1470 = vmatpush.xpose.msra.mxu0 0.0
      %1471 = vmatpush.xpose.msra.mxu0 0.0
      %1472 = vmatpush.xpose.msra.mxu0 0.0
      %1473 = vmatpush.xpose.msra.mxu0 %v1235
      %1474 = vmatmul.f32.gmra.mxu0 %v1258
      %v1475 = vpop.f32.mrf.mxu0
      %v1476 = vadd.f32 0.0, %v1475
      %1477 = vdwg.mxu0
      %v1478 = vperm.slane %v804, 0
      %v1479 = vlaneseq
      %v1480 = vshrl.u32 %v1479, 7
      %1482 = vset.pattern.permute.xlu0 %v1480
      %1483 = vperm.xlu0 %1482, %v1478
      %v1484 = vpop.permute.xlu0 %1483
      %v1485 = vperm.slane %v804, 1
      %v1486 = vlaneseq
      %v1487 = vshrl.u32 %v1486, 7
      %1489 = vset.pattern.permute.xlu0 %v1487
      %1490 = vperm.xlu0 %1489, %v1485
      %v1491 = vpop.permute.xlu0 %1490
      %v1492 = vperm.slane %v804, 2
      %v1493 = vlaneseq
      %v1494 = vshrl.u32 %v1493, 7
      %1496 = vset.pattern.permute.xlu0 %v1494
      %1497 = vperm.xlu0 %1496, %v1492
      %v1498 = vpop.permute.xlu0 %1497
      %v1499 = vperm.slane %v804, 3
      %v1500 = vlaneseq
      %v1501 = vshrl.u32 %v1500, 7
      %1503 = vset.pattern.permute.xlu0 %v1501
      %1504 = vperm.xlu0 %1503, %v1499
      %v1505 = vpop.permute.xlu0 %1504
      %v1506 = vperm.slane %v804, 4
      %v1507 = vlaneseq
      %v1508 = vshrl.u32 %v1507, 7
      %1510 = vset.pattern.permute.xlu0 %v1508
      %1511 = vperm.xlu0 %1510, %v1506
      %v1512 = vpop.permute.xlu0 %1511
      %v1513 = vperm.slane %v804, 5
      %v1514 = vlaneseq
      %v1515 = vshrl.u32 %v1514, 7
      %1517 = vset.pattern.permute.xlu0 %v1515
      %1518 = vperm.xlu0 %1517, %v1513
      %v1519 = vpop.permute.xlu0 %1518
      %v1520 = vperm.slane %v804, 6
      %v1521 = vlaneseq
      %v1522 = vshrl.u32 %v1521, 7
      %1524 = vset.pattern.permute.xlu0 %v1522
      %1525 = vperm.xlu0 %1524, %v1520
      %v1526 = vpop.permute.xlu0 %1525
      %v1527 = vperm.slane %v804, 7
      %v1528 = vlaneseq
      %v1529 = vshrl.u32 %v1528, 7
      %1531 = vset.pattern.permute.xlu0 %v1529
      %1532 = vperm.xlu0 %1531, %v1527
      %v1533 = vpop.permute.xlu0 %1532
      %v1534 = vrot.slane %v804, 1
      %v1535 = vrot.slane %v804, 2
      %v1536 = vrot.slane %v804, 3
      %v1537 = vrot.slane %v804, 4
      %v1538 = vrot.slane %v804, 5
      %v1539 = vrot.slane %v804, 6
      %v1540 = vperm.slane %v1534, 0
      %v1541 = vperm.slane %v1535, 0
      %v1542 = vperm.slane %v1536, 0
      %v1543 = vperm.slane %v1537, 0
      %v1544 = vperm.slane %v1538, 0
      %v1545 = vperm.slane %v1539, 0
      %v1546 = vperm.slane %v807, 0
      %vm1547 = vcmp.eq.s32.totalorder %v1484, %v1478
      %vm1548 = vcmp.eq.s32.totalorder %v1491, %v1540
      %vm1549 = vcmp.eq.s32.totalorder %v1498, %v1541
      %vm1550 = vcmp.eq.s32.totalorder %v1505, %v1542
      %vm1551 = vcmp.eq.s32.totalorder %v1512, %v1543
      %vm1552 = vcmp.eq.s32.totalorder %v1519, %v1544
      %vm1553 = vcmp.eq.s32.totalorder %v1526, %v1545
      %vm1554 = vcmp.eq.s32.totalorder %v1533, %v1546
      %v1555 = vsel %vm1547, -50000.0, %v1099
      %v1556 = vsel %vm1548, -50000.0, %v1125
      %v1557 = vsel %vm1549, -50000.0, %v1151
      %v1558 = vsel %vm1550, -50000.0, %v1177
      %v1559 = vsel %vm1551, -50000.0, %v1203
      %v1560 = vsel %vm1552, -50000.0, %v1229
      %v1561 = vsel %vm1553, -50000.0, %v1255
      %v1562 = vsel %vm1554, -50000.0, %v1281
      %v1563 = vrot.slane %v809, 1
      %v1564 = vrot.slane %v809, 2
      %v1565 = vrot.slane %v809, 3
      %v1566 = vrot.slane %v809, 4
      %v1567 = vrot.slane %v809, 5
      %v1568 = vrot.slane %v809, 6
      %v1569 = vrot.slane %v809, 7
      %v1570 = vperm.slane %v809, 0
      %v1571 = vperm.slane %v1563, 0
      %v1572 = vperm.slane %v1564, 0
      %v1573 = vperm.slane %v1565, 0
      %v1574 = vperm.slane %v1566, 0
      %v1575 = vperm.slane %v1567, 0
      %v1576 = vperm.slane %v1568, 0
      %v1577 = vperm.slane %v1569, 0
      %vm1578 = vcmp.eq.s32.totalorder %v1484, %v1570
      %vm1579 = vcmp.eq.s32.totalorder %v1491, %v1571
      %vm1580 = vcmp.eq.s32.totalorder %v1498, %v1572
      %vm1581 = vcmp.eq.s32.totalorder %v1505, %v1573
      %vm1582 = vcmp.eq.s32.totalorder %v1512, %v1574
      %vm1583 = vcmp.eq.s32.totalorder %v1519, %v1575
      %vm1584 = vcmp.eq.s32.totalorder %v1526, %v1576
      %vm1585 = vcmp.eq.s32.totalorder %v1533, %v1577
      %v1586 = vsel %vm1578, -50000.0, %v1336
      %v1587 = vsel %vm1579, -50000.0, %v1356
      %v1588 = vsel %vm1580, -50000.0, %v1376
      %v1589 = vsel %vm1581, -50000.0, %v1396
      %v1590 = vsel %vm1582, -50000.0, %v1416
      %v1591 = vsel %vm1583, -50000.0, %v1436
      %v1592 = vsel %vm1584, -50000.0, %v1456
      %v1593 = vsel %vm1585, -50000.0, %v1476
      %v1594 = vsel %vm826, %v1555, -inf
      %1595 = vmax.xlane.f32.xlu0 %v1594
      %v1596 = vpop.xlane.xlu0 %1595
      %v1597 = vsel %vm826, %v1556, -inf
      %1598 = vmax.xlane.f32.xlu0 %v1597
      %v1599 = vpop.xlane.xlu0 %1598
      %v1600 = vsel %vm826, %v1557, -inf
      %1601 = vmax.xlane.f32.xlu0 %v1600
      %v1602 = vpop.xlane.xlu0 %1601
      %v1603 = vsel %vm826, %v1558, -inf
      %1604 = vmax.xlane.f32.xlu0 %v1603
      %v1605 = vpop.xlane.xlu0 %1604
      %v1606 = vsel %vm826, %v1559, -inf
      %1607 = vmax.xlane.f32.xlu0 %v1606
      %v1608 = vpop.xlane.xlu0 %1607
      %v1609 = vsel %vm826, %v1560, -inf
      %1610 = vmax.xlane.f32.xlu0 %v1609
      %v1611 = vpop.xlane.xlu0 %1610
      %v1612 = vsel %vm826, %v1561, -inf
      %1613 = vmax.xlane.f32.xlu0 %v1612
      %v1614 = vpop.xlane.xlu0 %1613
      %v1615 = vsel %vm826, %v1562, -inf
      %1616 = vmax.xlane.f32.xlu0 %v1615
      %v1617 = vpop.xlane.xlu0 %1616
      %v1618 = vsel %vm826, %v1586, -inf
      %1619 = vmax.xlane.f32.xlu0 %v1618
      %v1620 = vpop.xlane.xlu0 %1619
      %v1621 = vsel %vm826, %v1587, -inf
      %1622 = vmax.xlane.f32.xlu0 %v1621
      %v1623 = vpop.xlane.xlu0 %1622
      %v1624 = vsel %vm826, %v1588, -inf
      %1625 = vmax.xlane.f32.xlu0 %v1624
      %v1626 = vpop.xlane.xlu0 %1625
      %v1627 = vsel %vm826, %v1589, -inf
      %1628 = vmax.xlane.f32.xlu0 %v1627
      %v1629 = vpop.xlane.xlu0 %1628
      %v1630 = vsel %vm826, %v1590, -inf
      %1631 = vmax.xlane.f32.xlu0 %v1630
      %v1632 = vpop.xlane.xlu0 %1631
      %v1633 = vsel %vm826, %v1591, -inf
      %1634 = vmax.xlane.f32.xlu0 %v1633
      %v1635 = vpop.xlane.xlu0 %1634
      %v1636 = vsel %vm826, %v1592, -inf
      %1637 = vmax.xlane.f32.xlu0 %v1636
      %v1638 = vpop.xlane.xlu0 %1637
      %v1639 = vsel %vm826, %v1593, -inf
      %1640 = vmax.xlane.f32.xlu0 %v1639
      %v1641 = vpop.xlane.xlu0 %1640
      %v1642 = vmax.f32 %v1596, %v1620
      %v1643 = vmax.f32 %v1599, %v1623
      %v1644 = vmax.f32 %v1602, %v1626
      %v1645 = vmax.f32 %v1605, %v1629
      %v1646 = vmax.f32 %v1608, %v1632
      %v1647 = vmax.f32 %v1611, %v1635
      %v1648 = vmax.f32 %v1614, %v1638
      %v1649 = vmax.f32 %v1617, %v1641
      %v1650 = vsub.f32 %v1555, %v1642
      %v1651 = vsub.f32 %v1556, %v1643
      %v1652 = vsub.f32 %v1557, %v1644
      %v1653 = vsub.f32 %v1558, %v1645
      %v1654 = vsub.f32 %v1559, %v1646
      %v1655 = vsub.f32 %v1560, %v1647
      %v1656 = vsub.f32 %v1561, %v1648
      %v1657 = vsub.f32 %v1562, %v1649
      %v1658 = vmul.f32 %v1650, 1.442695
      %v1659 = vpow.pop %v1658
      %v1660 = vmul.f32 %v1651, 1.442695
      %v1661 = vpow.pop %v1660
      %v1662 = vmul.f32 %v1652, 1.442695
      %v1663 = vpow.pop %v1662
      %v1664 = vmul.f32 %v1653, 1.442695
      %v1665 = vpow.pop %v1664
      %v1666 = vmul.f32 %v1654, 1.442695
      %v1667 = vpow.pop %v1666
      %v1668 = vmul.f32 %v1655, 1.442695
      %v1669 = vpow.pop %v1668
      %v1670 = vmul.f32 %v1656, 1.442695
      %v1671 = vpow.pop %v1670
      %v1672 = vmul.f32 %v1657, 1.442695
      %v1673 = vpow.pop %v1672
      %v1674 = vsub.f32 %v1586, %v1642
      %v1675 = vsub.f32 %v1587, %v1643
      %v1676 = vsub.f32 %v1588, %v1644
      %v1677 = vsub.f32 %v1589, %v1645
      %v1678 = vsub.f32 %v1590, %v1646
      %v1679 = vsub.f32 %v1591, %v1647
      %v1680 = vsub.f32 %v1592, %v1648
      %v1681 = vsub.f32 %v1593, %v1649
      %v1682 = vmul.f32 %v1674, 1.442695
      %v1683 = vpow.pop %v1682
      %v1684 = vmul.f32 %v1675, 1.442695
      %v1685 = vpow.pop %v1684
      %v1686 = vmul.f32 %v1676, 1.442695
      %v1687 = vpow.pop %v1686
      %v1688 = vmul.f32 %v1677, 1.442695
      %v1689 = vpow.pop %v1688
      %v1690 = vmul.f32 %v1678, 1.442695
      %v1691 = vpow.pop %v1690
      %v1692 = vmul.f32 %v1679, 1.442695
      %v1693 = vpow.pop %v1692
      %v1694 = vmul.f32 %v1680, 1.442695
      %v1695 = vpow.pop %v1694
      %v1696 = vmul.f32 %v1681, 1.442695
      %v1697 = vpow.pop %v1696
      %v1698 = vsel %vm826, %v1659, 0.0
      %1699 = vadd.xlane.f32.xlu0 %v1698
      %v1700 = vpop.xlane.xlu0 %1699
      %v1701 = vsel %vm826, %v1661, 0.0
      %1702 = vadd.xlane.f32.xlu0 %v1701
      %v1703 = vpop.xlane.xlu0 %1702
      %v1704 = vsel %vm826, %v1663, 0.0
      %1705 = vadd.xlane.f32.xlu0 %v1704
      %v1706 = vpop.xlane.xlu0 %1705
      %v1707 = vsel %vm826, %v1665, 0.0
      %1708 = vadd.xlane.f32.xlu0 %v1707
      %v1709 = vpop.xlane.xlu0 %1708
      %v1710 = vsel %vm826, %v1667, 0.0
      %1711 = vadd.xlane.f32.xlu0 %v1710
      %v1712 = vpop.xlane.xlu0 %1711
      %v1713 = vsel %vm826, %v1669, 0.0
      %1714 = vadd.xlane.f32.xlu0 %v1713
      %v1715 = vpop.xlane.xlu0 %1714
      %v1716 = vsel %vm826, %v1671, 0.0
      %1717 = vadd.xlane.f32.xlu0 %v1716
      %v1718 = vpop.xlane.xlu0 %1717
      %v1719 = vsel %vm826, %v1673, 0.0
      %1720 = vadd.xlane.f32.xlu0 %v1719
      %v1721 = vpop.xlane.xlu0 %1720
      %v1722 = vsel %vm826, %v1683, 0.0
      %1723 = vadd.xlane.f32.xlu0 %v1722
      %v1724 = vpop.xlane.xlu0 %1723
      %v1725 = vsel %vm826, %v1685, 0.0
      %1726 = vadd.xlane.f32.xlu0 %v1725
      %v1727 = vpop.xlane.xlu0 %1726
      %v1728 = vsel %vm826, %v1687, 0.0
      %1729 = vadd.xlane.f32.xlu0 %v1728
      %v1730 = vpop.xlane.xlu0 %1729
      %v1731 = vsel %vm826, %v1689, 0.0
      %1732 = vadd.xlane.f32.xlu0 %v1731
      %v1733 = vpop.xlane.xlu0 %1732
      %v1734 = vsel %vm826, %v1691, 0.0
      %1735 = vadd.xlane.f32.xlu0 %v1734
      %v1736 = vpop.xlane.xlu0 %1735
      %v1737 = vsel %vm826, %v1693, 0.0
      %1738 = vadd.xlane.f32.xlu0 %v1737
      %v1739 = vpop.xlane.xlu0 %1738
      %v1740 = vsel %vm826, %v1695, 0.0
      %1741 = vadd.xlane.f32.xlu0 %v1740
      %v1742 = vpop.xlane.xlu0 %1741
      %v1743 = vsel %vm826, %v1697, 0.0
      %1744 = vadd.xlane.f32.xlu0 %v1743
      %v1745 = vpop.xlane.xlu0 %1744
      %v1746 = vadd.f32 %v1700, %v1724
      %v1747 = vadd.f32 %v1703, %v1727
      %v1748 = vadd.f32 %v1706, %v1730
      %v1749 = vadd.f32 %v1709, %v1733
      %v1750 = vadd.f32 %v1712, %v1736
      %v1751 = vadd.f32 %v1715, %v1739
      %v1752 = vadd.f32 %v1718, %v1742
      %v1753 = vadd.f32 %v1721, %v1745
      %v1754 = vrcp.pop %v1746
      %v1755 = vrcp.pop %v1747
      %v1756 = vrcp.pop %v1748
      %v1757 = vrcp.pop %v1749
      %v1758 = vrcp.pop %v1750
      %v1759 = vrcp.pop %v1751
      %v1760 = vrcp.pop %v1752
      %v1761 = vrcp.pop %v1753
      %v1763 = vsel %vm826, %v1683, 0
      %1765 = vmatpush.msra.mxu0 0.0
      %1766 = vmatpush.msra.mxu0 0.0
      %1767 = vmatpush.msra.mxu0 0.0
      %1768 = vmatpush.msra.mxu0 0.0
      %1769 = vmatpush.msra.mxu0 0.0
      %1770 = vmatpush.msra.mxu0 0.0
      %1771 = vmatpush.msra.mxu0 0.0
      %1772 = vmatpush.msra.mxu0 0.0
      %1773 = vmatpush.msra.mxu0 0.0
      %1774 = vmatpush.msra.mxu0 0.0
      %1775 = vmatpush.msra.mxu0 0.0
      %1776 = vmatpush.msra.mxu0 0.0
      %1777 = vmatpush.msra.mxu0 0.0
      %1778 = vmatpush.msra.mxu0 0.0
      %1779 = vmatpush.msra.mxu0 0.0
      %1780 = vmatpush.msra.mxu0 %v803
      %1781 = vmatmul.f32.gmra.mxu0 %v1763
      %v1782 = vpop.f32.mrf.mxu0
      %v1783 = vadd.f32 0.0, %v1782
      %1784 = vdwg.mxu0
      %v1786 = vsel %vm826, %v1685, 0
      %1788 = vmatpush.msra.mxu0 0.0
      %1789 = vmatpush.msra.mxu0 0.0
      %1790 = vmatpush.msra.mxu0 0.0
      %1791 = vmatpush.msra.mxu0 0.0
      %1792 = vmatpush.msra.mxu0 0.0
      %1793 = vmatpush.msra.mxu0 0.0
      %1794 = vmatpush.msra.mxu0 0.0
      %1795 = vmatpush.msra.mxu0 0.0
      %1796 = vmatpush.msra.mxu0 0.0
      %1797 = vmatpush.msra.mxu0 0.0
      %1798 = vmatpush.msra.mxu0 0.0
      %1799 = vmatpush.msra.mxu0 0.0
      %1800 = vmatpush.msra.mxu0 0.0
      %1801 = vmatpush.msra.mxu0 0.0
      %1802 = vmatpush.msra.mxu0 0.0
      %1803 = vmatpush.msra.mxu0 %v795
      %1804 = vmatmul.f32.gmra.mxu0 %v1786
      %v1805 = vpop.f32.mrf.mxu0
      %v1806 = vadd.f32 0.0, %v1805
      %1807 = vdwg.mxu0
      %v1809 = vsel %vm826, %v1687, 0
      %1811 = vmatpush.msra.mxu0 0.0
      %1812 = vmatpush.msra.mxu0 0.0
      %1813 = vmatpush.msra.mxu0 0.0
      %1814 = vmatpush.msra.mxu0 0.0
      %1815 = vmatpush.msra.mxu0 0.0
      %1816 = vmatpush.msra.mxu0 0.0
      %1817 = vmatpush.msra.mxu0 0.0
      %1818 = vmatpush.msra.mxu0 0.0
      %1819 = vmatpush.msra.mxu0 0.0
      %1820 = vmatpush.msra.mxu0 0.0
      %1821 = vmatpush.msra.mxu0 0.0
      %1822 = vmatpush.msra.mxu0 0.0
      %1823 = vmatpush.msra.mxu0 0.0
      %1824 = vmatpush.msra.mxu0 0.0
      %1825 = vmatpush.msra.mxu0 0.0
      %1826 = vmatpush.msra.mxu0 %v796
      %1827 = vmatmul.f32.gmra.mxu0 %v1809
      %v1828 = vpop.f32.mrf.mxu0
      %v1829 = vadd.f32 0.0, %v1828
      %1830 = vdwg.mxu0
      %v1832 = vsel %vm826, %v1689, 0
      %1834 = vmatpush.msra.mxu0 0.0
      %1835 = vmatpush.msra.mxu0 0.0
      %1836 = vmatpush.msra.mxu0 0.0
      %1837 = vmatpush.msra.mxu0 0.0
      %1838 = vmatpush.msra.mxu0 0.0
      %1839 = vmatpush.msra.mxu0 0.0
      %1840 = vmatpush.msra.mxu0 0.0
      %1841 = vmatpush.msra.mxu0 0.0
      %1842 = vmatpush.msra.mxu0 0.0
      %1843 = vmatpush.msra.mxu0 0.0
      %1844 = vmatpush.msra.mxu0 0.0
      %1845 = vmatpush.msra.mxu0 0.0
      %1846 = vmatpush.msra.mxu0 0.0
      %1847 = vmatpush.msra.mxu0 0.0
      %1848 = vmatpush.msra.mxu0 0.0
      %1849 = vmatpush.msra.mxu0 %v797
      %1850 = vmatmul.f32.gmra.mxu0 %v1832
      %v1851 = vpop.f32.mrf.mxu0
      %v1852 = vadd.f32 0.0, %v1851
      %1853 = vdwg.mxu0
      %v1855 = vsel %vm826, %v1691, 0
      %1857 = vmatpush.msra.mxu0 0.0
      %1858 = vmatpush.msra.mxu0 0.0
      %1859 = vmatpush.msra.mxu0 0.0
      %1860 = vmatpush.msra.mxu0 0.0
      %1861 = vmatpush.msra.mxu0 0.0
      %1862 = vmatpush.msra.mxu0 0.0
      %1863 = vmatpush.msra.mxu0 0.0
      %1864 = vmatpush.msra.mxu0 0.0
      %1865 = vmatpush.msra.mxu0 0.0
      %1866 = vmatpush.msra.mxu0 0.0
      %1867 = vmatpush.msra.mxu0 0.0
      %1868 = vmatpush.msra.mxu0 0.0
      %1869 = vmatpush.msra.mxu0 0.0
      %1870 = vmatpush.msra.mxu0 0.0
      %1871 = vmatpush.msra.mxu0 0.0
      %1872 = vmatpush.msra.mxu0 %v798
      %1873 = vmatmul.f32.gmra.mxu0 %v1855
      %v1874 = vpop.f32.mrf.mxu0
      %v1875 = vadd.f32 0.0, %v1874
      %1876 = vdwg.mxu0
      %v1878 = vsel %vm826, %v1693, 0
      %1880 = vmatpush.msra.mxu0 0.0
      %1881 = vmatpush.msra.mxu0 0.0
      %1882 = vmatpush.msra.mxu0 0.0
      %1883 = vmatpush.msra.mxu0 0.0
      %1884 = vmatpush.msra.mxu0 0.0
      %1885 = vmatpush.msra.mxu0 0.0
      %1886 = vmatpush.msra.mxu0 0.0
      %1887 = vmatpush.msra.mxu0 0.0
      %1888 = vmatpush.msra.mxu0 0.0
      %1889 = vmatpush.msra.mxu0 0.0
      %1890 = vmatpush.msra.mxu0 0.0
      %1891 = vmatpush.msra.mxu0 0.0
      %1892 = vmatpush.msra.mxu0 0.0
      %1893 = vmatpush.msra.mxu0 0.0
      %1894 = vmatpush.msra.mxu0 0.0
      %1895 = vmatpush.msra.mxu0 %v799
      %1896 = vmatmul.f32.gmra.mxu0 %v1878
      %v1897 = vpop.f32.mrf.mxu0
      %v1898 = vadd.f32 0.0, %v1897
      %1899 = vdwg.mxu0
      %v1901 = vsel %vm826, %v1695, 0
      %1903 = vmatpush.msra.mxu0 0.0
      %1904 = vmatpush.msra.mxu0 0.0
      %1905 = vmatpush.msra.mxu0 0.0
      %1906 = vmatpush.msra.mxu0 0.0
      %1907 = vmatpush.msra.mxu0 0.0
      %1908 = vmatpush.msra.mxu0 0.0
      %1909 = vmatpush.msra.mxu0 0.0
      %1910 = vmatpush.msra.mxu0 0.0
      %1911 = vmatpush.msra.mxu0 0.0
      %1912 = vmatpush.msra.mxu0 0.0
      %1913 = vmatpush.msra.mxu0 0.0
      %1914 = vmatpush.msra.mxu0 0.0
      %1915 = vmatpush.msra.mxu0 0.0
      %1916 = vmatpush.msra.mxu0 0.0
      %1917 = vmatpush.msra.mxu0 0.0
      %1918 = vmatpush.msra.mxu0 %v800
      %1919 = vmatmul.f32.gmra.mxu0 %v1901
      %v1920 = vpop.f32.mrf.mxu0
      %v1921 = vadd.f32 0.0, %v1920
      %1922 = vdwg.mxu0
      %v1924 = vsel %vm826, %v1697, 0
      %1926 = vmatpush.msra.mxu0 0.0
      %1927 = vmatpush.msra.mxu0 0.0
      %1928 = vmatpush.msra.mxu0 0.0
      %1929 = vmatpush.msra.mxu0 0.0
      %1930 = vmatpush.msra.mxu0 0.0
      %1931 = vmatpush.msra.mxu0 0.0
      %1932 = vmatpush.msra.mxu0 0.0
      %1933 = vmatpush.msra.mxu0 0.0
      %1934 = vmatpush.msra.mxu0 0.0
      %1935 = vmatpush.msra.mxu0 0.0
      %1936 = vmatpush.msra.mxu0 0.0
      %1937 = vmatpush.msra.mxu0 0.0
      %1938 = vmatpush.msra.mxu0 0.0
      %1939 = vmatpush.msra.mxu0 0.0
      %1940 = vmatpush.msra.mxu0 0.0
      %1941 = vmatpush.msra.mxu0 %v801
      %1942 = vmatmul.f32.gmra.mxu0 %v1924
      %v1943 = vpop.f32.mrf.mxu0
      %v1944 = vadd.f32 0.0, %v1943
      %1945 = vdwg.mxu0
      %v1947 = vsel %vm826, %v1659, 0
      %1949 = vmatpush.msra.mxu0 0.0
      %1950 = vmatpush.msra.mxu0 0.0
      %1951 = vmatpush.msra.mxu0 0.0
      %1952 = vmatpush.msra.mxu0 0.0
      %1953 = vmatpush.msra.mxu0 0.0
      %1954 = vmatpush.msra.mxu0 0.0
      %1955 = vmatpush.msra.mxu0 0.0
      %1956 = vmatpush.msra.mxu0 0.0
      %1957 = vmatpush.msra.mxu0 0.0
      %1958 = vmatpush.msra.mxu0 0.0
      %1959 = vmatpush.msra.mxu0 0.0
      %1960 = vmatpush.msra.mxu0 0.0
      %1961 = vmatpush.msra.mxu0 0.0
      %1962 = vmatpush.msra.mxu0 0.0
      %1963 = vmatpush.msra.mxu0 0.0
      %1964 = vmatpush.msra.mxu0 %v795
      %1965 = vmatmul.f32.gmra.mxu0 %v1947
      %v1966 = vpop.f32.mrf.mxu0
      %v1967 = vadd.f32 %v1783, %v1966
      %1968 = vdwg.mxu0
      %v1970 = vsel %vm826, %v1661, 0
      %1972 = vmatpush.msra.mxu0 0.0
      %1973 = vmatpush.msra.mxu0 0.0
      %1974 = vmatpush.msra.mxu0 0.0
      %1975 = vmatpush.msra.mxu0 0.0
      %1976 = vmatpush.msra.mxu0 0.0
      %1977 = vmatpush.msra.mxu0 0.0
      %1978 = vmatpush.msra.mxu0 0.0
      %1979 = vmatpush.msra.mxu0 0.0
      %1980 = vmatpush.msra.mxu0 0.0
      %1981 = vmatpush.msra.mxu0 0.0
      %1982 = vmatpush.msra.mxu0 0.0
      %1983 = vmatpush.msra.mxu0 0.0
      %1984 = vmatpush.msra.mxu0 0.0
      %1985 = vmatpush.msra.mxu0 0.0
      %1986 = vmatpush.msra.mxu0 0.0
      %1987 = vmatpush.msra.mxu0 %v796
      %1988 = vmatmul.f32.gmra.mxu0 %v1970
      %v1989 = vpop.f32.mrf.mxu0
      %v1990 = vadd.f32 %v1806, %v1989
      %1991 = vdwg.mxu0
      %v1993 = vsel %vm826, %v1663, 0
      %1995 = vmatpush.msra.mxu0 0.0
      %1996 = vmatpush.msra.mxu0 0.0
      %1997 = vmatpush.msra.mxu0 0.0
      %1998 = vmatpush.msra.mxu0 0.0
      %1999 = vmatpush.msra.mxu0 0.0
      %2000 = vmatpush.msra.mxu0 0.0
      %2001 = vmatpush.msra.mxu0 0.0
      %2002 = vmatpush.msra.mxu0 0.0
      %2003 = vmatpush.msra.mxu0 0.0
      %2004 = vmatpush.msra.mxu0 0.0
      %2005 = vmatpush.msra.mxu0 0.0
      %2006 = vmatpush.msra.mxu0 0.0
      %2007 = vmatpush.msra.mxu0 0.0
      %2008 = vmatpush.msra.mxu0 0.0
      %2009 = vmatpush.msra.mxu0 0.0
      %2010 = vmatpush.msra.mxu0 %v797
      %2011 = vmatmul.f32.gmra.mxu0 %v1993
      %v2012 = vpop.f32.mrf.mxu0
      %v2013 = vadd.f32 %v1829, %v2012
      %2014 = vdwg.mxu0
      %v2016 = vsel %vm826, %v1665, 0
      %2018 = vmatpush.msra.mxu0 0.0
      %2019 = vmatpush.msra.mxu0 0.0
      %2020 = vmatpush.msra.mxu0 0.0
      %2021 = vmatpush.msra.mxu0 0.0
      %2022 = vmatpush.msra.mxu0 0.0
      %2023 = vmatpush.msra.mxu0 0.0
      %2024 = vmatpush.msra.mxu0 0.0
      %2025 = vmatpush.msra.mxu0 0.0
      %2026 = vmatpush.msra.mxu0 0.0
      %2027 = vmatpush.msra.mxu0 0.0
      %2028 = vmatpush.msra.mxu0 0.0
      %2029 = vmatpush.msra.mxu0 0.0
      %2030 = vmatpush.msra.mxu0 0.0
      %2031 = vmatpush.msra.mxu0 0.0
      %2032 = vmatpush.msra.mxu0 0.0
      %2033 = vmatpush.msra.mxu0 %v798
      %2034 = vmatmul.f32.gmra.mxu0 %v2016
      %v2035 = vpop.f32.mrf.mxu0
      %v2036 = vadd.f32 %v1852, %v2035
      %2037 = vdwg.mxu0
      %v2039 = vsel %vm826, %v1667, 0
      %2041 = vmatpush.msra.mxu0 0.0
      %2042 = vmatpush.msra.mxu0 0.0
      %2043 = vmatpush.msra.mxu0 0.0
      %2044 = vmatpush.msra.mxu0 0.0
      %2045 = vmatpush.msra.mxu0 0.0
      %2046 = vmatpush.msra.mxu0 0.0
      %2047 = vmatpush.msra.mxu0 0.0
      %2048 = vmatpush.msra.mxu0 0.0
      %2049 = vmatpush.msra.mxu0 0.0
      %2050 = vmatpush.msra.mxu0 0.0
      %2051 = vmatpush.msra.mxu0 0.0
      %2052 = vmatpush.msra.mxu0 0.0
      %2053 = vmatpush.msra.mxu0 0.0
      %2054 = vmatpush.msra.mxu0 0.0
      %2055 = vmatpush.msra.mxu0 0.0
      %2056 = vmatpush.msra.mxu0 %v799
      %2057 = vmatmul.f32.gmra.mxu0 %v2039
      %v2058 = vpop.f32.mrf.mxu0
      %v2059 = vadd.f32 %v1875, %v2058
      %2060 = vdwg.mxu0
      %v2062 = vsel %vm826, %v1669, 0
      %2064 = vmatpush.msra.mxu0 0.0
      %2065 = vmatpush.msra.mxu0 0.0
      %2066 = vmatpush.msra.mxu0 0.0
      %2067 = vmatpush.msra.mxu0 0.0
      %2068 = vmatpush.msra.mxu0 0.0
      %2069 = vmatpush.msra.mxu0 0.0
      %2070 = vmatpush.msra.mxu0 0.0
      %2071 = vmatpush.msra.mxu0 0.0
      %2072 = vmatpush.msra.mxu0 0.0
      %2073 = vmatpush.msra.mxu0 0.0
      %2074 = vmatpush.msra.mxu0 0.0
      %2075 = vmatpush.msra.mxu0 0.0
      %2076 = vmatpush.msra.mxu0 0.0
      %2077 = vmatpush.msra.mxu0 0.0
      %2078 = vmatpush.msra.mxu0 0.0
      %2079 = vmatpush.msra.mxu0 %v800
      %2080 = vmatmul.f32.gmra.mxu0 %v2062
      %v2081 = vpop.f32.mrf.mxu0
      %v2082 = vadd.f32 %v1898, %v2081
      %2083 = vdwg.mxu0
      %v2085 = vsel %vm826, %v1671, 0
      %2087 = vmatpush.msra.mxu0 0.0
      %2088 = vmatpush.msra.mxu0 0.0
      %2089 = vmatpush.msra.mxu0 0.0
      %2090 = vmatpush.msra.mxu0 0.0
      %2091 = vmatpush.msra.mxu0 0.0
      %2092 = vmatpush.msra.mxu0 0.0
      %2093 = vmatpush.msra.mxu0 0.0
      %2094 = vmatpush.msra.mxu0 0.0
      %2095 = vmatpush.msra.mxu0 0.0
      %2096 = vmatpush.msra.mxu0 0.0
      %2097 = vmatpush.msra.mxu0 0.0
      %2098 = vmatpush.msra.mxu0 0.0
      %2099 = vmatpush.msra.mxu0 0.0
      %2100 = vmatpush.msra.mxu0 0.0
      %2101 = vmatpush.msra.mxu0 0.0
      %2102 = vmatpush.msra.mxu0 %v801
      %2103 = vmatmul.f32.gmra.mxu0 %v2085
      %v2104 = vpop.f32.mrf.mxu0
      %v2105 = vadd.f32 %v1921, %v2104
      %2106 = vdwg.mxu0
      %v2108 = vsel %vm826, %v1673, 0
      %2110 = vmatpush.msra.mxu0 0.0
      %2111 = vmatpush.msra.mxu0 0.0
      %2112 = vmatpush.msra.mxu0 0.0
      %2113 = vmatpush.msra.mxu0 0.0
      %2114 = vmatpush.msra.mxu0 0.0
      %2115 = vmatpush.msra.mxu0 0.0
      %2116 = vmatpush.msra.mxu0 0.0
      %2117 = vmatpush.msra.mxu0 0.0
      %2118 = vmatpush.msra.mxu0 0.0
      %2119 = vmatpush.msra.mxu0 0.0
      %2120 = vmatpush.msra.mxu0 0.0
      %2121 = vmatpush.msra.mxu0 0.0
      %2122 = vmatpush.msra.mxu0 0.0
      %2123 = vmatpush.msra.mxu0 0.0
      %2124 = vmatpush.msra.mxu0 0.0
      %2125 = vmatpush.msra.mxu0 %v802
      %2126 = vmatmul.f32.gmra.mxu0 %v2108
      %v2127 = vpop.f32.mrf.mxu0
      %v2128 = vadd.f32 %v1944, %v2127
      %2129 = vdwg.mxu0
      %v2130 = vmul.f32 %v1967, %v1754
      %v2131 = vmul.f32 %v1990, %v1755
      %v2132 = vmul.f32 %v2013, %v1756
      %v2133 = vmul.f32 %v2036, %v1757
      %v2134 = vmul.f32 %v2059, %v1758
      %v2135 = vmul.f32 %v2082, %v1759
      %v2136 = vmul.f32 %v2105, %v1760
      %v2137 = vmul.f32 %v2128, %v1761
      %2138 = vst.msk [vmem:[%s776] sm:$0xff] %vm826, %v2130
      %2139 = vst.msk [vmem:[%s776 + $0x8] sm:$0xff] %vm826, %v2131
      %2140 = vst.msk [vmem:[%s776 + $0x10] sm:$0xff] %vm826, %v2132
      %2141 = vst.msk [vmem:[%s776 + $0x18] sm:$0xff] %vm826, %v2133
      %2142 = vst.msk [vmem:[%s776 + $0x20] sm:$0xff] %vm826, %v2134
      %2143 = vst.msk [vmem:[%s776 + $0x28] sm:$0xff] %vm826, %v2135
      %2144 = vst.msk [vmem:[%s776 + $0x30] sm:$0xff] %vm826, %v2136
      %2145 = vst.msk [vmem:[%s776 + $0x38] sm:$0xff] %vm826, %v2137
      %v2146 = vlog2.pop %v1746
      %v2147 = vmul.f32 %v2146, 0.6931472
      %v2148 = vlog2.pop %v1747
      %v2149 = vmul.f32 %v2148, 0.6931472
      %v2150 = vlog2.pop %v1748
      %v2151 = vmul.f32 %v2150, 0.6931472
      %v2152 = vlog2.pop %v1749
      %v2153 = vmul.f32 %v2152, 0.6931472
      %v2154 = vlog2.pop %v1750
      %v2155 = vmul.f32 %v2154, 0.6931472
      %v2156 = vlog2.pop %v1751
      %v2157 = vmul.f32 %v2156, 0.6931472
      %v2158 = vlog2.pop %v1752
      %v2159 = vmul.f32 %v2158, 0.6931472
      %v2160 = vlog2.pop %v1753
      %v2161 = vmul.f32 %v2160, 0.6931472
      %v2162 = vadd.f32 %v1642, %v2147
      %v2163 = vadd.f32 %v1643, %v2149
      %v2164 = vadd.f32 %v1644, %v2151
      %v2165 = vadd.f32 %v1645, %v2153
      %v2166 = vadd.f32 %v1646, %v2155
      %v2167 = vadd.f32 %v1647, %v2157
      %v2168 = vadd.f32 %v1648, %v2159
      %v2169 = vadd.f32 %v1649, %v2161
      %v2178 = vlaneseq
      %v2179 = vand.u32 %v2178, 127
      %v2180 = vperm.slane %v2162, %v2179
      %v2181 = vperm.slane %v2163, %v2179
      %v2182 = vperm.slane %v2164, %v2179
      %v2183 = vperm.slane %v2165, %v2179
      %v2184 = vperm.slane %v2166, %v2179
      %v2185 = vperm.slane %v2167, %v2179
      %v2186 = vperm.slane %v2168, %v2179
      %v2187 = vperm.slane %v2169, %v2179
      %vm2188 = vcmask 1041409
      %v2189 = vsel %vm2188, %v2181, %v2180
      %vm2190 = vcmask 1042434
      %v2191 = vsel %vm2190, %v2182, %v2189
      %vm2192 = vcmask 1043459
      %v2193 = vsel %vm2192, %v2183, %v2191
      %vm2194 = vcmask 1044484
      %v2195 = vsel %vm2194, %v2184, %v2193
      %vm2196 = vcmask 1045509
      %v2197 = vsel %vm2196, %v2185, %v2195
      %vm2198 = vcmask 1046534
      %v2199 = vsel %vm2198, %v2186, %v2197
      %vm2200 = vcmask 1047559
      %v2201 = vsel %vm2200, %v2187, %v2199
      %2203 = vst.msk [vmem:[%s785] sm:$0xff] %vm826, %v2201
      %s2204 = smul.u32 8, %s24
      %p2205 = scmp.lt.s32.totalorder %s23, 7
      %s2206 = scalar_select %p2205, %s23, 7
      %p2207 = scmp.lt.s32.totalorder %s2204, 15
      %s2208 = scalar_select %p2207, %s2204, 15
      %s2209 = smul.addr %s2206, 16
      %s2210 = sadd.s32 %s2208, %s2209
      %s2211 = smul.addr %s2210, 8
      %s2212 = scalar_lea.vmem %s6, %s2211
      %p2213 = scmp.lt.s32.totalorder %s23, 7
      %s2214 = scalar_select %p2213, %s23, 7
      %p2215 = scmp.lt.s32.totalorder %s24, 1
      %s2216 = scalar_select %p2215, %s24, 1
      %s2217 = smul.addr %s2214, 2
      %s2218 = sadd.s32 %s2216, %s2217
      %s2219 = smul.addr %s2218, 8
      %s2220 = scalar_lea.vmem %s7, %s2219
      // Predicated region
      $region45: #{reformer_encoder.10} parent=43 // pred_check
        %p2221 = pneg %p301
      $region46: #{reformer_encoder.10} parent=43 // pred_check_branch
        %2223 = sbr.rel (%p2221) target = $region48
      $region47: #{reformer_encoder.10} parent=43 // pred_region
        %s2224 = smul.u32 8, %s24
      $region48: #{reformer_encoder.10} parent=43 // pred_fallthru
        _
      // Predicated region
      $region49: #{reformer_encoder.10} parent=43 // pred_check
        %p2225 = pneg %p329
      $region50: #{reformer_encoder.10} parent=43 // pred_check_branch
        %2227 = sbr.rel (%p2225) target = $region52
      $region51: #{reformer_encoder.10} parent=43 // pred_region
        _
      $region52: #{reformer_encoder.10} parent=43 // pred_fallthru
        _
    $region44: #{reformer_encoder.10} parent=5 // pred_fallthru
      _
    %p2228 = scmp.le.s32.totalorder 2, %s14
    // Predicated region
    $region53: #{reformer_encoder.10} parent=5 // pred_check
      %p2229 = pneg %p2228
    $region54: #{reformer_encoder.10} parent=5 // pred_check_branch
      %2231 = sbr.rel (%p2229) target = $region56
    $region55: #{reformer_encoder.10} parent=5 // pred_region
      %s2232 = ssub.s32 %s14, 2
      // Predicated region
      $region57: #{reformer_encoder.10} parent=55 // pred_check
        %p2233 = pneg %p307
      $region58: #{reformer_encoder.10} parent=55 // pred_check_branch
        %2235 = sbr.rel (%p2233) target = $region60
      $region59: #{reformer_encoder.10} parent=55 // pred_region
        %s2236 = smul.u32 8, %s26
        %p2237 = scmp.lt.s32.totalorder %s25, 7
        %s2238 = scalar_select %p2237, %s25, 7
        %p2239 = scmp.lt.s32.totalorder %s2236, 15
        %s2240 = scalar_select %p2239, %s2236, 15
        %s2241 = smul.addr %s2238, 16
        %s2242 = sadd.s32 %s2240, %s2241
        %s2243 = smul.addr %s2242, 8
        %s2244 = scalar_lea.vmem %s6, %s2243
      $region60: #{reformer_encoder.10} parent=55 // pred_fallthru
        _
      // Predicated region
      $region61: #{reformer_encoder.10} parent=55 // pred_check
        %p2245 = pneg %p335
      $region62: #{reformer_encoder.10} parent=55 // pred_check_branch
        %2247 = sbr.rel (%p2245) target = $region64
      $region63: #{reformer_encoder.10} parent=55 // pred_region
        %p2248 = scmp.lt.s32.totalorder %s25, 7
        %s2249 = scalar_select %p2248, %s25, 7
        %p2250 = scmp.lt.s32.totalorder %s26, 1
        %s2251 = scalar_select %p2250, %s26, 1
        %s2252 = smul.addr %s2249, 2
        %s2253 = sadd.s32 %s2251, %s2252
        %s2254 = smul.addr %s2253, 8
        %s2255 = scalar_lea.vmem %s7, %s2254
      $region64: #{reformer_encoder.10} parent=55 // pred_fallthru
        _
    $region56: #{reformer_encoder.10} parent=5 // pred_fallthru
      _
  $region6: #{reformer_encoder.10} parent=0 // loop_footer
    %s18 = sadd.s32 1, %s14
  $region7: #{reformer_encoder.10} parent=0 // loop_footer_branch
    %13 = sbr.rel target = $region3
  $region8: #{reformer_encoder.10} parent=0 // loop_exit
    _

// kernel: reformer_encoder.11
$region0: #{reformer_encoder.11}
  #allocation0 [shape = 'u32[]', space=smem, size = 0x4, offset = 0x4, fixed_abs, tag = 'smem constant byte address 0x4 - core index']
  #allocation1 [shape = 'u32[72,128]{1,0:T(1,128)}', space=vmem, size = 0x9000, scoped, tag = 'internal scratch']
  %s0 = inlined_call_operand.vmem [shape: f32[128,32], index: 0, kind: input, shape index: {}]
  %s1 = inlined_call_operand.vmem [shape: f32[32,32], index: 1, kind: input, shape index: {}]
  %s2 = inlined_call_operand.vmem [shape: f32[1,32], index: 2, kind: input, shape index: {}]
  %s3 = inlined_call_operand.vmem [shape: f32[128,32], index: 3, kind: output, shape index: {}]
  %s4 = sld [smem:[#allocation0]]
  $region22: #{reformer_encoder.11} parent=0
    _
  %s6 = ssub.s32 1, %s4
  %s7 = scalar_select 0, %s6, %s4
  // Predicated region
  $region2: #{reformer_encoder.11} parent=0 // pred_check
    _
  $region3: #{reformer_encoder.11} parent=0 // pred_check_branch
    %9 = sbr.rel (0) target = $region5
  $region4: #{reformer_encoder.11} parent=0 // pred_region
    _
  $region5: #{reformer_encoder.11} parent=0 // pred_fallthru
    _
  // Predicated region
  $region6: #{reformer_encoder.11} parent=0 // pred_check
    _
  $region7: #{reformer_encoder.11} parent=0 // pred_check_branch
    %11 = sbr.rel (0) target = $region9
  $region8: #{reformer_encoder.11} parent=0 // pred_region
    _
  $region9: #{reformer_encoder.11} parent=0 // pred_fallthru
    _
  // Predicated region
  $region10: #{reformer_encoder.11} parent=0 // pred_check
    _
  $region11: #{reformer_encoder.11} parent=0 // pred_check_branch
    %13 = sbr.rel (0) target = $region13
  $region12: #{reformer_encoder.11} parent=0 // pred_region
    _
  $region13: #{reformer_encoder.11} parent=0 // pred_fallthru
    _
  %v14 = vld [vmem:[%s0] sm:$0xff]
  %v15 = vld [vmem:[%s0 + $0x8] sm:$0xff]
  %v16 = vld [vmem:[%s0 + $0x10] sm:$0xff]
  %v17 = vld [vmem:[%s0 + $0x18] sm:$0xff]
  %v18 = vld [vmem:[%s0 + $0x20] sm:$0xff]
  %v19 = vld [vmem:[%s0 + $0x28] sm:$0xff]
  %v20 = vld [vmem:[%s0 + $0x30] sm:$0xff]
  %v21 = vld [vmem:[%s0 + $0x38] sm:$0xff]
  %v22 = vld [vmem:[%s0 + $0x40] sm:$0xff]
  %v23 = vld [vmem:[%s0 + $0x48] sm:$0xff]
  %v24 = vld [vmem:[%s0 + $0x50] sm:$0xff]
  %v25 = vld [vmem:[%s0 + $0x58] sm:$0xff]
  %v26 = vld [vmem:[%s0 + $0x60] sm:$0xff]
  %v27 = vld [vmem:[%s0 + $0x68] sm:$0xff]
  %v28 = vld [vmem:[%s0 + $0x70] sm:$0xff]
  %v29 = vld [vmem:[%s0 + $0x78] sm:$0xff]
  %v30 = vld [vmem:[%s1] sm:$0xff]
  %v31 = vld [vmem:[%s1 + $0x8] sm:$0xff]
  %v32 = vld [vmem:[%s1 + $0x10] sm:$0xff]
  %v33 = vld [vmem:[%s1 + $0x18] sm:$0xff]
  %v34 = vld [vmem:[%s2] sm:$0x1]
  %v36 = vperm.slane %v34, 0
  %vm38 = vcmask 261120
  %v40 = vsel %vm38, %v14, 0
  %v43 = vsel %vm38, %v15, 0
  %v46 = vsel %vm38, %v16, 0
  %v49 = vsel %vm38, %v17, 0
  %v52 = vsel %vm38, %v18, 0
  %v55 = vsel %vm38, %v19, 0
  %v58 = vsel %vm38, %v20, 0
  %v61 = vsel %vm38, %v21, 0
  %v64 = vsel %vm38, %v22, 0
  %v67 = vsel %vm38, %v23, 0
  %v70 = vsel %vm38, %v24, 0
  %v73 = vsel %vm38, %v25, 0
  %v76 = vsel %vm38, %v26, 0
  %v79 = vsel %vm38, %v27, 0
  %v82 = vsel %vm38, %v28, 0
  %v85 = vsel %vm38, %v29, 0
  %87 = vmatpush.msra.mxu0 0.0
  %88 = vmatpush.msra.mxu0 0.0
  %89 = vmatpush.msra.mxu0 0.0
  %90 = vmatpush.msra.mxu0 0.0
  %91 = vmatpush.msra.mxu0 0.0
  %92 = vmatpush.msra.mxu0 0.0
  %93 = vmatpush.msra.mxu0 0.0
  %94 = vmatpush.msra.mxu0 0.0
  %95 = vmatpush.msra.mxu0 0.0
  %96 = vmatpush.msra.mxu0 0.0
  %97 = vmatpush.msra.mxu0 0.0
  %98 = vmatpush.msra.mxu0 0.0
  %99 = vmatpush.msra.mxu0 %v33
  %100 = vmatpush.msra.mxu0 %v32
  %101 = vmatpush.msra.mxu0 %v31
  %102 = vmatpush.msra.mxu0 %v30
  %103 = vmatmul.f32.gmra.mxu0 %v40
  %v104 = vpop.f32.mrf.mxu0
  %v105 = vadd.f32 %v36, %v104
  %106 = vmatmul.f32.gmra.mxu0 %v43
  %v107 = vpop.f32.mrf.mxu0
  %v108 = vadd.f32 %v36, %v107
  %109 = vmatmul.f32.gmra.mxu0 %v46
  %v110 = vpop.f32.mrf.mxu0
  %v111 = vadd.f32 %v36, %v110
  %112 = vmatmul.f32.gmra.mxu0 %v49
  %v113 = vpop.f32.mrf.mxu0
  %v114 = vadd.f32 %v36, %v113
  %115 = vmatmul.f32.gmra.mxu0 %v52
  %v116 = vpop.f32.mrf.mxu0
  %v117 = vadd.f32 %v36, %v116
  %118 = vmatmul.f32.gmra.mxu0 %v55
  %v119 = vpop.f32.mrf.mxu0
  %v120 = vadd.f32 %v36, %v119
  %121 = vmatmul.f32.gmra.mxu0 %v58
  %v122 = vpop.f32.mrf.mxu0
  %v123 = vadd.f32 %v36, %v122
  %124 = vmatmul.f32.gmra.mxu0 %v61
  %v125 = vpop.f32.mrf.mxu0
  %v126 = vadd.f32 %v36, %v125
  %127 = vmatmul.f32.gmra.mxu0 %v64
  %v128 = vpop.f32.mrf.mxu0
  %v129 = vadd.f32 %v36, %v128
  %130 = vmatmul.f32.gmra.mxu0 %v67
  %v131 = vpop.f32.mrf.mxu0
  %v132 = vadd.f32 %v36, %v131
  %133 = vmatmul.f32.gmra.mxu0 %v70
  %v134 = vpop.f32.mrf.mxu0
  %v135 = vadd.f32 %v36, %v134
  %136 = vmatmul.f32.gmra.mxu0 %v73
  %v137 = vpop.f32.mrf.mxu0
  %v138 = vadd.f32 %v36, %v137
  %139 = vmatmul.f32.gmra.mxu0 %v76
  %v140 = vpop.f32.mrf.mxu0
  %v141 = vadd.f32 %v36, %v140
  %142 = vmatmul.f32.gmra.mxu0 %v79
  %v143 = vpop.f32.mrf.mxu0
  %v144 = vadd.f32 %v36, %v143
  %145 = vmatmul.f32.gmra.mxu0 %v82
  %v146 = vpop.f32.mrf.mxu0
  %v147 = vadd.f32 %v36, %v146
  %148 = vmatmul.f32.gmra.mxu0 %v85
  %v149 = vpop.f32.mrf.mxu0
  %v150 = vadd.f32 %v36, %v149
  %151 = vdwg.mxu0
  %152 = vst.msk [vmem:[%s3] sm:$0xff] %vm38, %v105
  %153 = vst.msk [vmem:[%s3 + $0x8] sm:$0xff] %vm38, %v108
  %154 = vst.msk [vmem:[%s3 + $0x10] sm:$0xff] %vm38, %v111
  %155 = vst.msk [vmem:[%s3 + $0x18] sm:$0xff] %vm38, %v114
  %156 = vst.msk [vmem:[%s3 + $0x20] sm:$0xff] %vm38, %v117
  %157 = vst.msk [vmem:[%s3 + $0x28] sm:$0xff] %vm38, %v120
  %158 = vst.msk [vmem:[%s3 + $0x30] sm:$0xff] %vm38, %v123
  %159 = vst.msk [vmem:[%s3 + $0x38] sm:$0xff] %vm38, %v126
  %160 = vst.msk [vmem:[%s3 + $0x40] sm:$0xff] %vm38, %v129
  %161 = vst.msk [vmem:[%s3 + $0x48] sm:$0xff] %vm38, %v132
  %162 = vst.msk [vmem:[%s3 + $0x50] sm:$0xff] %vm38, %v135
  %163 = vst.msk [vmem:[%s3 + $0x58] sm:$0xff] %vm38, %v138
  %164 = vst.msk [vmem:[%s3 + $0x60] sm:$0xff] %vm38, %v141
  %165 = vst.msk [vmem:[%s3 + $0x68] sm:$0xff] %vm38, %v144
  %166 = vst.msk [vmem:[%s3 + $0x70] sm:$0xff] %vm38, %v147
  %167 = vst.msk [vmem:[%s3 + $0x78] sm:$0xff] %vm38, %v150
  // Predicated region
  $region14: #{reformer_encoder.11} parent=0 // pred_check
    _
  $region15: #{reformer_encoder.11} parent=0 // pred_check_branch
    %169 = sbr.rel (0) target = $region17
  $region16: #{reformer_encoder.11} parent=0 // pred_region
    _
  $region17: #{reformer_encoder.11} parent=0 // pred_fallthru
    _
  // Predicated region
  $region18: #{reformer_encoder.11} parent=0 // pred_check
    _
  $region19: #{reformer_encoder.11} parent=0 // pred_check_branch
    %171 = sbr.rel (0) target = $region21
  $region20: #{reformer_encoder.11} parent=0 // pred_region
    _
  $region21: #{reformer_encoder.11} parent=0 // pred_fallthru
    _

// kernel: reformer_encoder.17
$region0: #{reformer_encoder.17}
  #allocation0 [shape = 'u32[]', space=smem, size = 0x4, offset = 0x4, fixed_abs, tag = 'smem constant byte address 0x4 - core index']
  #allocation1 [shape = 'u32[72,128]{1,0:T(1,128)}', space=vmem, size = 0x9000, scoped, tag = 'internal scratch']
  %s0 = inlined_call_operand.vmem [shape: f32[128,32], index: 0, kind: input, shape index: {}]
  %s1 = inlined_call_operand.vmem [shape: f32[1,32], index: 1, kind: input, shape index: {}]
  %s2 = inlined_call_operand.vmem [shape: f32[1,32], index: 2, kind: input, shape index: {}]
  %s3 = inlined_call_operand.vmem [shape: f32[128,32], index: 3, kind: output, shape index: {}]
  %s4 = sld [smem:[#allocation0]]
  $region22: #{reformer_encoder.17} parent=0
    _
  %s6 = ssub.s32 1, %s4
  %s7 = scalar_select 0, %s6, %s4
  // Predicated region
  $region2: #{reformer_encoder.17} parent=0 // pred_check
    _
  $region3: #{reformer_encoder.17} parent=0 // pred_check_branch
    %9 = sbr.rel (0) target = $region5
  $region4: #{reformer_encoder.17} parent=0 // pred_region
    _
  $region5: #{reformer_encoder.17} parent=0 // pred_fallthru
    _
  // Predicated region
  $region6: #{reformer_encoder.17} parent=0 // pred_check
    _
  $region7: #{reformer_encoder.17} parent=0 // pred_check_branch
    %11 = sbr.rel (0) target = $region9
  $region8: #{reformer_encoder.17} parent=0 // pred_region
    _
  $region9: #{reformer_encoder.17} parent=0 // pred_fallthru
    _
  // Predicated region
  $region10: #{reformer_encoder.17} parent=0 // pred_check
    _
  $region11: #{reformer_encoder.17} parent=0 // pred_check_branch
    %13 = sbr.rel (0) target = $region13
  $region12: #{reformer_encoder.17} parent=0 // pred_region
    _
  $region13: #{reformer_encoder.17} parent=0 // pred_fallthru
    _
  %v14 = vld [vmem:[%s0] sm:$0xff]
  %v15 = vld [vmem:[%s0 + $0x8] sm:$0xff]
  %v16 = vld [vmem:[%s0 + $0x10] sm:$0xff]
  %v17 = vld [vmem:[%s0 + $0x18] sm:$0xff]
  %v18 = vld [vmem:[%s0 + $0x20] sm:$0xff]
  %v19 = vld [vmem:[%s0 + $0x28] sm:$0xff]
  %v20 = vld [vmem:[%s0 + $0x30] sm:$0xff]
  %v21 = vld [vmem:[%s0 + $0x38] sm:$0xff]
  %v22 = vld [vmem:[%s0 + $0x40] sm:$0xff]
  %v23 = vld [vmem:[%s0 + $0x48] sm:$0xff]
  %v24 = vld [vmem:[%s0 + $0x50] sm:$0xff]
  %v25 = vld [vmem:[%s0 + $0x58] sm:$0xff]
  %v26 = vld [vmem:[%s0 + $0x60] sm:$0xff]
  %v27 = vld [vmem:[%s0 + $0x68] sm:$0xff]
  %v28 = vld [vmem:[%s0 + $0x70] sm:$0xff]
  %v29 = vld [vmem:[%s0 + $0x78] sm:$0xff]
  %vm30 = vcmask 261120
  %v31 = vsel %vm30, %v14, 0.0
  %32 = vadd.xlane.f32.xlu0 %v31
  %v33 = vpop.xlane.xlu0 %32
  %v34 = vsel %vm30, %v15, 0.0
  %35 = vadd.xlane.f32.xlu0 %v34
  %v36 = vpop.xlane.xlu0 %35
  %v37 = vsel %vm30, %v16, 0.0
  %38 = vadd.xlane.f32.xlu0 %v37
  %v39 = vpop.xlane.xlu0 %38
  %v40 = vsel %vm30, %v17, 0.0
  %41 = vadd.xlane.f32.xlu0 %v40
  %v42 = vpop.xlane.xlu0 %41
  %v43 = vsel %vm30, %v18, 0.0
  %44 = vadd.xlane.f32.xlu0 %v43
  %v45 = vpop.xlane.xlu0 %44
  %v46 = vsel %vm30, %v19, 0.0
  %47 = vadd.xlane.f32.xlu0 %v46
  %v48 = vpop.xlane.xlu0 %47
  %v49 = vsel %vm30, %v20, 0.0
  %50 = vadd.xlane.f32.xlu0 %v49
  %v51 = vpop.xlane.xlu0 %50
  %v52 = vsel %vm30, %v21, 0.0
  %53 = vadd.xlane.f32.xlu0 %v52
  %v54 = vpop.xlane.xlu0 %53
  %v55 = vsel %vm30, %v22, 0.0
  %56 = vadd.xlane.f32.xlu0 %v55
  %v57 = vpop.xlane.xlu0 %56
  %v58 = vsel %vm30, %v23, 0.0
  %59 = vadd.xlane.f32.xlu0 %v58
  %v60 = vpop.xlane.xlu0 %59
  %v61 = vsel %vm30, %v24, 0.0
  %62 = vadd.xlane.f32.xlu0 %v61
  %v63 = vpop.xlane.xlu0 %62
  %v64 = vsel %vm30, %v25, 0.0
  %65 = vadd.xlane.f32.xlu0 %v64
  %v66 = vpop.xlane.xlu0 %65
  %v67 = vsel %vm30, %v26, 0.0
  %68 = vadd.xlane.f32.xlu0 %v67
  %v69 = vpop.xlane.xlu0 %68
  %v70 = vsel %vm30, %v27, 0.0
  %71 = vadd.xlane.f32.xlu0 %v70
  %v72 = vpop.xlane.xlu0 %71
  %v73 = vsel %vm30, %v28, 0.0
  %74 = vadd.xlane.f32.xlu0 %v73
  %v75 = vpop.xlane.xlu0 %74
  %v76 = vsel %vm30, %v29, 0.0
  %77 = vadd.xlane.f32.xlu0 %v76
  %v78 = vpop.xlane.xlu0 %77
  %v79 = vrcp.pop 32.0
  %v80 = vmul.f32 32.0, %v79
  %v81 = vsub.f32 1.0, %v80
  %v82 = vmul.f32 %v79, %v81
  %v83 = vadd.f32 %v79, %v82
  %vm84 = vweird.f32 %v79
  %v85 = vsel %vm84, %v79, %v83
  %v86 = vmul.f32 %v33, %v85
  %v87 = vmul.f32 %v36, %v85
  %v88 = vmul.f32 %v39, %v85
  %v89 = vmul.f32 %v42, %v85
  %v90 = vmul.f32 %v45, %v85
  %v91 = vmul.f32 %v48, %v85
  %v92 = vmul.f32 %v51, %v85
  %v93 = vmul.f32 %v54, %v85
  %v94 = vmul.f32 %v57, %v85
  %v95 = vmul.f32 %v60, %v85
  %v96 = vmul.f32 %v63, %v85
  %v97 = vmul.f32 %v66, %v85
  %v98 = vmul.f32 %v69, %v85
  %v99 = vmul.f32 %v72, %v85
  %v100 = vmul.f32 %v75, %v85
  %v101 = vmul.f32 %v78, %v85
  %v102 = vsub.f32 %v14, %v86
  %v103 = vsub.f32 %v15, %v87
  %v104 = vsub.f32 %v16, %v88
  %v105 = vsub.f32 %v17, %v89
  %v106 = vsub.f32 %v18, %v90
  %v107 = vsub.f32 %v19, %v91
  %v108 = vsub.f32 %v20, %v92
  %v109 = vsub.f32 %v21, %v93
  %v110 = vsub.f32 %v22, %v94
  %v111 = vsub.f32 %v23, %v95
  %v112 = vsub.f32 %v24, %v96
  %v113 = vsub.f32 %v25, %v97
  %v114 = vsub.f32 %v26, %v98
  %v115 = vsub.f32 %v27, %v99
  %v116 = vsub.f32 %v28, %v100
  %v117 = vsub.f32 %v29, %v101
  %v118 = vmul.f32 %v102, %v102
  %v119 = vmul.f32 %v103, %v103
  %v120 = vmul.f32 %v104, %v104
  %v121 = vmul.f32 %v105, %v105
  %v122 = vmul.f32 %v106, %v106
  %v123 = vmul.f32 %v107, %v107
  %v124 = vmul.f32 %v108, %v108
  %v125 = vmul.f32 %v109, %v109
  %v126 = vmul.f32 %v110, %v110
  %v127 = vmul.f32 %v111, %v111
  %v128 = vmul.f32 %v112, %v112
  %v129 = vmul.f32 %v113, %v113
  %v130 = vmul.f32 %v114, %v114
  %v131 = vmul.f32 %v115, %v115
  %v132 = vmul.f32 %v116, %v116
  %v133 = vmul.f32 %v117, %v117
  %v134 = vsel %vm30, %v118, 0.0
  %135 = vadd.xlane.f32.xlu0 %v134
  %v136 = vpop.xlane.xlu0 %135
  %v137 = vsel %vm30, %v119, 0.0
  %138 = vadd.xlane.f32.xlu0 %v137
  %v139 = vpop.xlane.xlu0 %138
  %v140 = vsel %vm30, %v120, 0.0
  %141 = vadd.xlane.f32.xlu0 %v140
  %v142 = vpop.xlane.xlu0 %141
  %v143 = vsel %vm30, %v121, 0.0
  %144 = vadd.xlane.f32.xlu0 %v143
  %v145 = vpop.xlane.xlu0 %144
  %v146 = vsel %vm30, %v122, 0.0
  %147 = vadd.xlane.f32.xlu0 %v146
  %v148 = vpop.xlane.xlu0 %147
  %v149 = vsel %vm30, %v123, 0.0
  %150 = vadd.xlane.f32.xlu0 %v149
  %v151 = vpop.xlane.xlu0 %150
  %v152 = vsel %vm30, %v124, 0.0
  %153 = vadd.xlane.f32.xlu0 %v152
  %v154 = vpop.xlane.xlu0 %153
  %v155 = vsel %vm30, %v125, 0.0
  %156 = vadd.xlane.f32.xlu0 %v155
  %v157 = vpop.xlane.xlu0 %156
  %v158 = vsel %vm30, %v126, 0.0
  %159 = vadd.xlane.f32.xlu0 %v158
  %v160 = vpop.xlane.xlu0 %159
  %v161 = vsel %vm30, %v127, 0.0
  %162 = vadd.xlane.f32.xlu0 %v161
  %v163 = vpop.xlane.xlu0 %162
  %v164 = vsel %vm30, %v128, 0.0
  %165 = vadd.xlane.f32.xlu0 %v164
  %v166 = vpop.xlane.xlu0 %165
  %v167 = vsel %vm30, %v129, 0.0
  %168 = vadd.xlane.f32.xlu0 %v167
  %v169 = vpop.xlane.xlu0 %168
  %v170 = vsel %vm30, %v130, 0.0
  %171 = vadd.xlane.f32.xlu0 %v170
  %v172 = vpop.xlane.xlu0 %171
  %v173 = vsel %vm30, %v131, 0.0
  %174 = vadd.xlane.f32.xlu0 %v173
  %v175 = vpop.xlane.xlu0 %174
  %v176 = vsel %vm30, %v132, 0.0
  %177 = vadd.xlane.f32.xlu0 %v176
  %v178 = vpop.xlane.xlu0 %177
  %v179 = vsel %vm30, %v133, 0.0
  %180 = vadd.xlane.f32.xlu0 %v179
  %v181 = vpop.xlane.xlu0 %180
  %v182 = vmul.f32 %v136, %v85
  %v183 = vmul.f32 %v139, %v85
  %v184 = vmul.f32 %v142, %v85
  %v185 = vmul.f32 %v145, %v85
  %v186 = vmul.f32 %v148, %v85
  %v187 = vmul.f32 %v151, %v85
  %v188 = vmul.f32 %v154, %v85
  %v189 = vmul.f32 %v157, %v85
  %v190 = vmul.f32 %v160, %v85
  %v191 = vmul.f32 %v163, %v85
  %v192 = vmul.f32 %v166, %v85
  %v193 = vmul.f32 %v169, %v85
  %v194 = vmul.f32 %v172, %v85
  %v195 = vmul.f32 %v175, %v85
  %v196 = vmul.f32 %v178, %v85
  %v197 = vmul.f32 %v181, %v85
  %v198 = vadd.f32 %v182, 1e-06
  %v199 = vadd.f32 %v183, 1e-06
  %v200 = vadd.f32 %v184, 1e-06
  %v201 = vadd.f32 %v185, 1e-06
  %v202 = vadd.f32 %v186, 1e-06
  %v203 = vadd.f32 %v187, 1e-06
  %v204 = vadd.f32 %v188, 1e-06
  %v205 = vadd.f32 %v189, 1e-06
  %v206 = vadd.f32 %v190, 1e-06
  %v207 = vadd.f32 %v191, 1e-06
  %v208 = vadd.f32 %v192, 1e-06
  %v209 = vadd.f32 %v193, 1e-06
  %v210 = vadd.f32 %v194, 1e-06
  %v211 = vadd.f32 %v195, 1e-06
  %v212 = vadd.f32 %v196, 1e-06
  %v213 = vadd.f32 %v197, 1e-06
  %v214 = vrsqrt.pop %v198
  %v215 = vmul.f32 %v214, %v198
  %v216 = vmul.f32 %v215, %v214
  %v217 = vmul.f32 0.5, %v216
  %v218 = vsub.f32 1.5, %v217
  %v219 = vmul.f32 %v214, %v218
  %vm220 = vweird.f32 %v198
  %vm221 = vweird.f32 %v214
  %vm222 = vmor %vm220, %vm221
  %v223 = vsel %vm222, %v214, %v219
  %v224 = vrsqrt.pop %v199
  %v225 = vmul.f32 %v224, %v199
  %v226 = vmul.f32 %v225, %v224
  %v227 = vmul.f32 0.5, %v226
  %v228 = vsub.f32 1.5, %v227
  %v229 = vmul.f32 %v224, %v228
  %vm230 = vweird.f32 %v199
  %vm231 = vweird.f32 %v224
  %vm232 = vmor %vm230, %vm231
  %v233 = vsel %vm232, %v224, %v229
  %v234 = vrsqrt.pop %v200
  %v235 = vmul.f32 %v234, %v200
  %v236 = vmul.f32 %v235, %v234
  %v237 = vmul.f32 0.5, %v236
  %v238 = vsub.f32 1.5, %v237
  %v239 = vmul.f32 %v234, %v238
  %vm240 = vweird.f32 %v200
  %vm241 = vweird.f32 %v234
  %vm242 = vmor %vm240, %vm241
  %v243 = vsel %vm242, %v234, %v239
  %v244 = vrsqrt.pop %v201
  %v245 = vmul.f32 %v244, %v201
  %v246 = vmul.f32 %v245, %v244
  %v247 = vmul.f32 0.5, %v246
  %v248 = vsub.f32 1.5, %v247
  %v249 = vmul.f32 %v244, %v248
  %vm250 = vweird.f32 %v201
  %vm251 = vweird.f32 %v244
  %vm252 = vmor %vm250, %vm251
  %v253 = vsel %vm252, %v244, %v249
  %v254 = vrsqrt.pop %v202
  %v255 = vmul.f32 %v254, %v202
  %v256 = vmul.f32 %v255, %v254
  %v257 = vmul.f32 0.5, %v256
  %v258 = vsub.f32 1.5, %v257
  %v259 = vmul.f32 %v254, %v258
  %vm260 = vweird.f32 %v202
  %vm261 = vweird.f32 %v254
  %vm262 = vmor %vm260, %vm261
  %v263 = vsel %vm262, %v254, %v259
  %v264 = vrsqrt.pop %v203
  %v265 = vmul.f32 %v264, %v203
  %v266 = vmul.f32 %v265, %v264
  %v267 = vmul.f32 0.5, %v266
  %v268 = vsub.f32 1.5, %v267
  %v269 = vmul.f32 %v264, %v268
  %vm270 = vweird.f32 %v203
  %vm271 = vweird.f32 %v264
  %vm272 = vmor %vm270, %vm271
  %v273 = vsel %vm272, %v264, %v269
  %v274 = vrsqrt.pop %v204
  %v275 = vmul.f32 %v274, %v204
  %v276 = vmul.f32 %v275, %v274
  %v277 = vmul.f32 0.5, %v276
  %v278 = vsub.f32 1.5, %v277
  %v279 = vmul.f32 %v274, %v278
  %vm280 = vweird.f32 %v204
  %vm281 = vweird.f32 %v274
  %vm282 = vmor %vm280, %vm281
  %v283 = vsel %vm282, %v274, %v279
  %v284 = vrsqrt.pop %v205
  %v285 = vmul.f32 %v284, %v205
  %v286 = vmul.f32 %v285, %v284
  %v287 = vmul.f32 0.5, %v286
  %v288 = vsub.f32 1.5, %v287
  %v289 = vmul.f32 %v284, %v288
  %vm290 = vweird.f32 %v205
  %vm291 = vweird.f32 %v284
  %vm292 = vmor %vm290, %vm291
  %v293 = vsel %vm292, %v284, %v289
  %v294 = vrsqrt.pop %v206
  %v295 = vmul.f32 %v294, %v206
  %v296 = vmul.f32 %v295, %v294
  %v297 = vmul.f32 0.5, %v296
  %v298 = vsub.f32 1.5, %v297
  %v299 = vmul.f32 %v294, %v298
  %vm300 = vweird.f32 %v206
  %vm301 = vweird.f32 %v294
  %vm302 = vmor %vm300, %vm301
  %v303 = vsel %vm302, %v294, %v299
  %v304 = vrsqrt.pop %v207
  %v305 = vmul.f32 %v304, %v207
  %v306 = vmul.f32 %v305, %v304
  %v307 = vmul.f32 0.5, %v306
  %v308 = vsub.f32 1.5, %v307
  %v309 = vmul.f32 %v304, %v308
  %vm310 = vweird.f32 %v207
  %vm311 = vweird.f32 %v304
  %vm312 = vmor %vm310, %vm311
  %v313 = vsel %vm312, %v304, %v309
  %v314 = vrsqrt.pop %v208
  %v315 = vmul.f32 %v314, %v208
  %v316 = vmul.f32 %v315, %v314
  %v317 = vmul.f32 0.5, %v316
  %v318 = vsub.f32 1.5, %v317
  %v319 = vmul.f32 %v314, %v318
  %vm320 = vweird.f32 %v208
  %vm321 = vweird.f32 %v314
  %vm322 = vmor %vm320, %vm321
  %v323 = vsel %vm322, %v314, %v319
  %v324 = vrsqrt.pop %v209
  %v325 = vmul.f32 %v324, %v209
  %v326 = vmul.f32 %v325, %v324
  %v327 = vmul.f32 0.5, %v326
  %v328 = vsub.f32 1.5, %v327
  %v329 = vmul.f32 %v324, %v328
  %vm330 = vweird.f32 %v209
  %vm331 = vweird.f32 %v324
  %vm332 = vmor %vm330, %vm331
  %v333 = vsel %vm332, %v324, %v329
  %v334 = vrsqrt.pop %v210
  %v335 = vmul.f32 %v334, %v210
  %v336 = vmul.f32 %v335, %v334
  %v337 = vmul.f32 0.5, %v336
  %v338 = vsub.f32 1.5, %v337
  %v339 = vmul.f32 %v334, %v338
  %vm340 = vweird.f32 %v210
  %vm341 = vweird.f32 %v334
  %vm342 = vmor %vm340, %vm341
  %v343 = vsel %vm342, %v334, %v339
  %v344 = vrsqrt.pop %v211
  %v345 = vmul.f32 %v344, %v211
  %v346 = vmul.f32 %v345, %v344
  %v347 = vmul.f32 0.5, %v346
  %v348 = vsub.f32 1.5, %v347
  %v349 = vmul.f32 %v344, %v348
  %vm350 = vweird.f32 %v211
  %vm351 = vweird.f32 %v344
  %vm352 = vmor %vm350, %vm351
  %v353 = vsel %vm352, %v344, %v349
  %v354 = vrsqrt.pop %v212
  %v355 = vmul.f32 %v354, %v212
  %v356 = vmul.f32 %v355, %v354
  %v357 = vmul.f32 0.5, %v356
  %v358 = vsub.f32 1.5, %v357
  %v359 = vmul.f32 %v354, %v358
  %vm360 = vweird.f32 %v212
  %vm361 = vweird.f32 %v354
  %vm362 = vmor %vm360, %vm361
  %v363 = vsel %vm362, %v354, %v359
  %v364 = vrsqrt.pop %v213
  %v365 = vmul.f32 %v364, %v213
  %v366 = vmul.f32 %v365, %v364
  %v367 = vmul.f32 0.5, %v366
  %v368 = vsub.f32 1.5, %v367
  %v369 = vmul.f32 %v364, %v368
  %vm370 = vweird.f32 %v213
  %vm371 = vweird.f32 %v364
  %vm372 = vmor %vm370, %vm371
  %v373 = vsel %vm372, %v364, %v369
  %v374 = vmul.f32 %v102, %v223
  %v375 = vmul.f32 %v103, %v233
  %v376 = vmul.f32 %v104, %v243
  %v377 = vmul.f32 %v105, %v253
  %v378 = vmul.f32 %v106, %v263
  %v379 = vmul.f32 %v107, %v273
  %v380 = vmul.f32 %v108, %v283
  %v381 = vmul.f32 %v109, %v293
  %v382 = vmul.f32 %v110, %v303
  %v383 = vmul.f32 %v111, %v313
  %v384 = vmul.f32 %v112, %v323
  %v385 = vmul.f32 %v113, %v333
  %v386 = vmul.f32 %v114, %v343
  %v387 = vmul.f32 %v115, %v353
  %v388 = vmul.f32 %v116, %v363
  %v389 = vmul.f32 %v117, %v373
  %v390 = vld [vmem:[%s1] sm:$0x1]
  %v392 = vperm.slane %v390, 0
  %v394 = vmul.f32 %v374, %v392
  %v395 = vmul.f32 %v375, %v392
  %v396 = vmul.f32 %v376, %v392
  %v397 = vmul.f32 %v377, %v392
  %v398 = vmul.f32 %v378, %v392
  %v399 = vmul.f32 %v379, %v392
  %v400 = vmul.f32 %v380, %v392
  %v401 = vmul.f32 %v381, %v392
  %v402 = vmul.f32 %v382, %v392
  %v403 = vmul.f32 %v383, %v392
  %v404 = vmul.f32 %v384, %v392
  %v405 = vmul.f32 %v385, %v392
  %v406 = vmul.f32 %v386, %v392
  %v407 = vmul.f32 %v387, %v392
  %v408 = vmul.f32 %v388, %v392
  %v409 = vmul.f32 %v389, %v392
  %v410 = vld [vmem:[%s2] sm:$0x1]
  %v412 = vperm.slane %v410, 0
  %v414 = vadd.f32 %v394, %v412
  %v415 = vadd.f32 %v395, %v412
  %v416 = vadd.f32 %v396, %v412
  %v417 = vadd.f32 %v397, %v412
  %v418 = vadd.f32 %v398, %v412
  %v419 = vadd.f32 %v399, %v412
  %v420 = vadd.f32 %v400, %v412
  %v421 = vadd.f32 %v401, %v412
  %v422 = vadd.f32 %v402, %v412
  %v423 = vadd.f32 %v403, %v412
  %v424 = vadd.f32 %v404, %v412
  %v425 = vadd.f32 %v405, %v412
  %v426 = vadd.f32 %v406, %v412
  %v427 = vadd.f32 %v407, %v412
  %v428 = vadd.f32 %v408, %v412
  %v429 = vadd.f32 %v409, %v412
  %430 = vst.msk [vmem:[%s3] sm:$0xff] %vm30, %v414
  %431 = vst.msk [vmem:[%s3 + $0x8] sm:$0xff] %vm30, %v415
  %432 = vst.msk [vmem:[%s3 + $0x10] sm:$0xff] %vm30, %v416
  %433 = vst.msk [vmem:[%s3 + $0x18] sm:$0xff] %vm30, %v417
  %434 = vst.msk [vmem:[%s3 + $0x20] sm:$0xff] %vm30, %v418
  %435 = vst.msk [vmem:[%s3 + $0x28] sm:$0xff] %vm30, %v419
  %436 = vst.msk [vmem:[%s3 + $0x30] sm:$0xff] %vm30, %v420
  %437 = vst.msk [vmem:[%s3 + $0x38] sm:$0xff] %vm30, %v421
  %438 = vst.msk [vmem:[%s3 + $0x40] sm:$0xff] %vm30, %v422
  %439 = vst.msk [vmem:[%s3 + $0x48] sm:$0xff] %vm30, %v423
  %440 = vst.msk [vmem:[%s3 + $0x50] sm:$0xff] %vm30, %v424
  %441 = vst.msk [vmem:[%s3 + $0x58] sm:$0xff] %vm30, %v425
  %442 = vst.msk [vmem:[%s3 + $0x60] sm:$0xff] %vm30, %v426
  %443 = vst.msk [vmem:[%s3 + $0x68] sm:$0xff] %vm30, %v427
  %444 = vst.msk [vmem:[%s3 + $0x70] sm:$0xff] %vm30, %v428
  %445 = vst.msk [vmem:[%s3 + $0x78] sm:$0xff] %vm30, %v429
  // Predicated region
  $region14: #{reformer_encoder.17} parent=0 // pred_check
    _
  $region15: #{reformer_encoder.17} parent=0 // pred_check_branch
    %447 = sbr.rel (0) target = $region17
  $region16: #{reformer_encoder.17} parent=0 // pred_region
    _
  $region17: #{reformer_encoder.17} parent=0 // pred_fallthru
    _
  // Predicated region
  $region18: #{reformer_encoder.17} parent=0 // pred_check
    _
  $region19: #{reformer_encoder.17} parent=0 // pred_check_branch
    %449 = sbr.rel (0) target = $region21
  $region20: #{reformer_encoder.17} parent=0 // pred_region
    _
  $region21: #{reformer_encoder.17} parent=0 // pred_fallthru
    _

// kernel: reformer_encoder.12
$region0: #{reformer_encoder.12}
  #allocation0 [shape = 'u32[]', space=smem, size = 0x4, offset = 0x4, fixed_abs, tag = 'smem constant byte address 0x4 - core index']
  #allocation1 [shape = 'u32[72,128]{1,0:T(1,128)}', space=vmem, size = 0x9000, scoped, tag = 'internal scratch']
  %s0 = inlined_call_operand.vmem [shape: f32[128,32], index: 0, kind: input, shape index: {}]
  %s1 = inlined_call_operand.vmem [shape: f32[128,32], index: 1, kind: input, shape index: {}]
  %s2 = inlined_call_operand.vmem [shape: f32[32,64], index: 2, kind: input, shape index: {}]
  %s3 = inlined_call_operand.vmem [shape: f32[1,64], index: 3, kind: input, shape index: {}]
  %s4 = inlined_call_operand.vmem [shape: f32[64,32], index: 4, kind: input, shape index: {}]
  %s5 = inlined_call_operand.vmem [shape: f32[1,32], index: 5, kind: input, shape index: {}]
  %s6 = inlined_call_operand.vmem [shape: f32[1,32], index: 6, kind: input, shape index: {}]
  %s7 = inlined_call_operand.vmem [shape: f32[1,32], index: 7, kind: input, shape index: {}]
  %s8 = inlined_call_operand.vmem [shape: f32[128,32], index: 8, kind: output, shape index: {}]
  %s9 = sld [smem:[#allocation0]]
  $region42: #{reformer_encoder.12} parent=0
    _
  %s11 = ssub.s32 1, %s9
  %s12 = scalar_select 0, %s11, %s9
  // Predicated region
  $region2: #{reformer_encoder.12} parent=0 // pred_check
    _
  $region3: #{reformer_encoder.12} parent=0 // pred_check_branch
    %14 = sbr.rel (0) target = $region5
  $region4: #{reformer_encoder.12} parent=0 // pred_region
    _
  $region5: #{reformer_encoder.12} parent=0 // pred_fallthru
    _
  // Predicated region
  $region6: #{reformer_encoder.12} parent=0 // pred_check
    _
  $region7: #{reformer_encoder.12} parent=0 // pred_check_branch
    %16 = sbr.rel (0) target = $region9
  $region8: #{reformer_encoder.12} parent=0 // pred_region
    _
  $region9: #{reformer_encoder.12} parent=0 // pred_fallthru
    _
  // Predicated region
  $region10: #{reformer_encoder.12} parent=0 // pred_check
    _
  $region11: #{reformer_encoder.12} parent=0 // pred_check_branch
    %18 = sbr.rel (0) target = $region13
  $region12: #{reformer_encoder.12} parent=0 // pred_region
    _
  $region13: #{reformer_encoder.12} parent=0 // pred_fallthru
    _
  // Predicated region
  $region14: #{reformer_encoder.12} parent=0 // pred_check
    _
  $region15: #{reformer_encoder.12} parent=0 // pred_check_branch
    %20 = sbr.rel (0) target = $region17
  $region16: #{reformer_encoder.12} parent=0 // pred_region
    _
  $region17: #{reformer_encoder.12} parent=0 // pred_fallthru
    _
  // Predicated region
  $region18: #{reformer_encoder.12} parent=0 // pred_check
    _
  $region19: #{reformer_encoder.12} parent=0 // pred_check_branch
    %22 = sbr.rel (0) target = $region21
  $region20: #{reformer_encoder.12} parent=0 // pred_region
    _
  $region21: #{reformer_encoder.12} parent=0 // pred_fallthru
    _
  // Predicated region
  $region22: #{reformer_encoder.12} parent=0 // pred_check
    _
  $region23: #{reformer_encoder.12} parent=0 // pred_check_branch
    %24 = sbr.rel (0) target = $region25
  $region24: #{reformer_encoder.12} parent=0 // pred_region
    _
  $region25: #{reformer_encoder.12} parent=0 // pred_fallthru
    _
  // Predicated region
  $region26: #{reformer_encoder.12} parent=0 // pred_check
    _
  $region27: #{reformer_encoder.12} parent=0 // pred_check_branch
    %26 = sbr.rel (0) target = $region29
  $region28: #{reformer_encoder.12} parent=0 // pred_region
    _
  $region29: #{reformer_encoder.12} parent=0 // pred_fallthru
    _
  // Predicated region
  $region30: #{reformer_encoder.12} parent=0 // pred_check
    _
  $region31: #{reformer_encoder.12} parent=0 // pred_check_branch
    %28 = sbr.rel (0) target = $region33
  $region32: #{reformer_encoder.12} parent=0 // pred_region
    _
  $region33: #{reformer_encoder.12} parent=0 // pred_fallthru
    _
  %v29 = vld [vmem:[%s0] sm:$0xff]
  %v30 = vld [vmem:[%s0 + $0x8] sm:$0xff]
  %v31 = vld [vmem:[%s0 + $0x10] sm:$0xff]
  %v32 = vld [vmem:[%s0 + $0x18] sm:$0xff]
  %v33 = vld [vmem:[%s0 + $0x20] sm:$0xff]
  %v34 = vld [vmem:[%s0 + $0x28] sm:$0xff]
  %v35 = vld [vmem:[%s0 + $0x30] sm:$0xff]
  %v36 = vld [vmem:[%s0 + $0x38] sm:$0xff]
  %v37 = vld [vmem:[%s0 + $0x40] sm:$0xff]
  %v38 = vld [vmem:[%s0 + $0x48] sm:$0xff]
  %v39 = vld [vmem:[%s0 + $0x50] sm:$0xff]
  %v40 = vld [vmem:[%s0 + $0x58] sm:$0xff]
  %v41 = vld [vmem:[%s0 + $0x60] sm:$0xff]
  %v42 = vld [vmem:[%s0 + $0x68] sm:$0xff]
  %v43 = vld [vmem:[%s0 + $0x70] sm:$0xff]
  %v44 = vld [vmem:[%s0 + $0x78] sm:$0xff]
  %v45 = vld [vmem:[%s1] sm:$0xff]
  %v46 = vld [vmem:[%s1 + $0x8] sm:$0xff]
  %v47 = vld [vmem:[%s1 + $0x10] sm:$0xff]
  %v48 = vld [vmem:[%s1 + $0x18] sm:$0xff]
  %v49 = vld [vmem:[%s1 + $0x20] sm:$0xff]
  %v50 = vld [vmem:[%s1 + $0x28] sm:$0xff]
  %v51 = vld [vmem:[%s1 + $0x30] sm:$0xff]
  %v52 = vld [vmem:[%s1 + $0x38] sm:$0xff]
  %v53 = vld [vmem:[%s1 + $0x40] sm:$0xff]
  %v54 = vld [vmem:[%s1 + $0x48] sm:$0xff]
  %v55 = vld [vmem:[%s1 + $0x50] sm:$0xff]
  %v56 = vld [vmem:[%s1 + $0x58] sm:$0xff]
  %v57 = vld [vmem:[%s1 + $0x60] sm:$0xff]
  %v58 = vld [vmem:[%s1 + $0x68] sm:$0xff]
  %v59 = vld [vmem:[%s1 + $0x70] sm:$0xff]
  %v60 = vld [vmem:[%s1 + $0x78] sm:$0xff]
  %v61 = vadd.f32 %v29, %v45
  %v62 = vadd.f32 %v30, %v46
  %v63 = vadd.f32 %v31, %v47
  %v64 = vadd.f32 %v32, %v48
  %v65 = vadd.f32 %v33, %v49
  %v66 = vadd.f32 %v34, %v50
  %v67 = vadd.f32 %v35, %v51
  %v68 = vadd.f32 %v36, %v52
  %v69 = vadd.f32 %v37, %v53
  %v70 = vadd.f32 %v38, %v54
  %v71 = vadd.f32 %v39, %v55
  %v72 = vadd.f32 %v40, %v56
  %v73 = vadd.f32 %v41, %v57
  %v74 = vadd.f32 %v42, %v58
  %v75 = vadd.f32 %v43, %v59
  %v76 = vadd.f32 %v44, %v60
  %v77 = vld [vmem:[%s2] sm:$0xff]
  %v78 = vld [vmem:[%s2 + $0x8] sm:$0xff]
  %v79 = vld [vmem:[%s2 + $0x10] sm:$0xff]
  %v80 = vld [vmem:[%s2 + $0x18] sm:$0xff]
  %v81 = vld [vmem:[%s3] sm:$0x1]
  %v83 = vperm.slane %v81, 0
  %vm85 = vcmask 261120
  %v87 = vsel %vm85, %v61, 0
  %v90 = vsel %vm85, %v62, 0
  %v93 = vsel %vm85, %v63, 0
  %v96 = vsel %vm85, %v64, 0
  %v99 = vsel %vm85, %v65, 0
  %v102 = vsel %vm85, %v66, 0
  %v105 = vsel %vm85, %v67, 0
  %v108 = vsel %vm85, %v68, 0
  %v111 = vsel %vm85, %v69, 0
  %v114 = vsel %vm85, %v70, 0
  %v117 = vsel %vm85, %v71, 0
  %v120 = vsel %vm85, %v72, 0
  %v123 = vsel %vm85, %v73, 0
  %v126 = vsel %vm85, %v74, 0
  %v129 = vsel %vm85, %v75, 0
  %v132 = vsel %vm85, %v76, 0
  %134 = vmatpush.msra.mxu0 0.0
  %135 = vmatpush.msra.mxu0 0.0
  %136 = vmatpush.msra.mxu0 0.0
  %137 = vmatpush.msra.mxu0 0.0
  %138 = vmatpush.msra.mxu0 0.0
  %139 = vmatpush.msra.mxu0 0.0
  %140 = vmatpush.msra.mxu0 0.0
  %141 = vmatpush.msra.mxu0 0.0
  %142 = vmatpush.msra.mxu0 0.0
  %143 = vmatpush.msra.mxu0 0.0
  %144 = vmatpush.msra.mxu0 0.0
  %145 = vmatpush.msra.mxu0 0.0
  %146 = vmatpush.msra.mxu0 %v80
  %147 = vmatpush.msra.mxu0 %v79
  %148 = vmatpush.msra.mxu0 %v78
  %149 = vmatpush.msra.mxu0 %v77
  %150 = vmatmul.f32.gmra.mxu0 %v87
  %v151 = vpop.f32.mrf.mxu0
  %v152 = vadd.f32 %v83, %v151
  %153 = vmatmul.f32.gmra.mxu0 %v90
  %v154 = vpop.f32.mrf.mxu0
  %v155 = vadd.f32 %v83, %v154
  %156 = vmatmul.f32.gmra.mxu0 %v93
  %v157 = vpop.f32.mrf.mxu0
  %v158 = vadd.f32 %v83, %v157
  %159 = vmatmul.f32.gmra.mxu0 %v96
  %v160 = vpop.f32.mrf.mxu0
  %v161 = vadd.f32 %v83, %v160
  %162 = vmatmul.f32.gmra.mxu0 %v99
  %v163 = vpop.f32.mrf.mxu0
  %v164 = vadd.f32 %v83, %v163
  %165 = vmatmul.f32.gmra.mxu0 %v102
  %v166 = vpop.f32.mrf.mxu0
  %v167 = vadd.f32 %v83, %v166
  %168 = vmatmul.f32.gmra.mxu0 %v105
  %v169 = vpop.f32.mrf.mxu0
  %v170 = vadd.f32 %v83, %v169
  %171 = vmatmul.f32.gmra.mxu0 %v108
  %v172 = vpop.f32.mrf.mxu0
  %v173 = vadd.f32 %v83, %v172
  %174 = vmatmul.f32.gmra.mxu0 %v111
  %v175 = vpop.f32.mrf.mxu0
  %v176 = vadd.f32 %v83, %v175
  %177 = vmatmul.f32.gmra.mxu0 %v114
  %v178 = vpop.f32.mrf.mxu0
  %v179 = vadd.f32 %v83, %v178
  %180 = vmatmul.f32.gmra.mxu0 %v117
  %v181 = vpop.f32.mrf.mxu0
  %v182 = vadd.f32 %v83, %v181
  %183 = vmatmul.f32.gmra.mxu0 %v120
  %v184 = vpop.f32.mrf.mxu0
  %v185 = vadd.f32 %v83, %v184
  %186 = vmatmul.f32.gmra.mxu0 %v123
  %v187 = vpop.f32.mrf.mxu0
  %v188 = vadd.f32 %v83, %v187
  %189 = vmatmul.f32.gmra.mxu0 %v126
  %v190 = vpop.f32.mrf.mxu0
  %v191 = vadd.f32 %v83, %v190
  %192 = vmatmul.f32.gmra.mxu0 %v129
  %v193 = vpop.f32.mrf.mxu0
  %v194 = vadd.f32 %v83, %v193
  %195 = vmatmul.f32.gmra.mxu0 %v132
  %v196 = vpop.f32.mrf.mxu0
  %v197 = vadd.f32 %v83, %v196
  %198 = vdwg.mxu0
  %v199 = vmax.f32 %v152, 0.0
  %v200 = vmax.f32 %v155, 0.0
  %v201 = vmax.f32 %v158, 0.0
  %v202 = vmax.f32 %v161, 0.0
  %v203 = vmax.f32 %v164, 0.0
  %v204 = vmax.f32 %v167, 0.0
  %v205 = vmax.f32 %v170, 0.0
  %v206 = vmax.f32 %v173, 0.0
  %v207 = vmax.f32 %v176, 0.0
  %v208 = vmax.f32 %v179, 0.0
  %v209 = vmax.f32 %v182, 0.0
  %v210 = vmax.f32 %v185, 0.0
  %v211 = vmax.f32 %v188, 0.0
  %v212 = vmax.f32 %v191, 0.0
  %v213 = vmax.f32 %v194, 0.0
  %v214 = vmax.f32 %v197, 0.0
  %v215 = vld [vmem:[%s4] sm:$0xff]
  %v216 = vld [vmem:[%s4 + $0x8] sm:$0xff]
  %v217 = vld [vmem:[%s4 + $0x10] sm:$0xff]
  %v218 = vld [vmem:[%s4 + $0x18] sm:$0xff]
  %v219 = vld [vmem:[%s4 + $0x20] sm:$0xff]
  %v220 = vld [vmem:[%s4 + $0x28] sm:$0xff]
  %v221 = vld [vmem:[%s4 + $0x30] sm:$0xff]
  %v222 = vld [vmem:[%s4 + $0x38] sm:$0xff]
  %v223 = vld [vmem:[%s5] sm:$0x1]
  %v225 = vperm.slane %v223, 0
  %vm227 = vcmask 523264
  %v229 = vsel %vm227, %v199, 0
  %v232 = vsel %vm227, %v200, 0
  %v235 = vsel %vm227, %v201, 0
  %v238 = vsel %vm227, %v202, 0
  %v241 = vsel %vm227, %v203, 0
  %v244 = vsel %vm227, %v204, 0
  %v247 = vsel %vm227, %v205, 0
  %v250 = vsel %vm227, %v206, 0
  %v253 = vsel %vm227, %v207, 0
  %v256 = vsel %vm227, %v208, 0
  %v259 = vsel %vm227, %v209, 0
  %v262 = vsel %vm227, %v210, 0
  %v265 = vsel %vm227, %v211, 0
  %v268 = vsel %vm227, %v212, 0
  %v271 = vsel %vm227, %v213, 0
  %v274 = vsel %vm227, %v214, 0
  %276 = vmatpush.msra.mxu0 0.0
  %277 = vmatpush.msra.mxu0 0.0
  %278 = vmatpush.msra.mxu0 0.0
  %279 = vmatpush.msra.mxu0 0.0
  %280 = vmatpush.msra.mxu0 0.0
  %281 = vmatpush.msra.mxu0 0.0
  %282 = vmatpush.msra.mxu0 0.0
  %283 = vmatpush.msra.mxu0 0.0
  %284 = vmatpush.msra.mxu0 %v222
  %285 = vmatpush.msra.mxu0 %v221
  %286 = vmatpush.msra.mxu0 %v220
  %287 = vmatpush.msra.mxu0 %v219
  %288 = vmatpush.msra.mxu0 %v218
  %289 = vmatpush.msra.mxu0 %v217
  %290 = vmatpush.msra.mxu0 %v216
  %291 = vmatpush.msra.mxu0 %v215
  %292 = vmatmul.f32.gmra.mxu0 %v229
  %v293 = vpop.f32.mrf.mxu0
  %v294 = vadd.f32 %v225, %v293
  %295 = vmatmul.f32.gmra.mxu0 %v232
  %v296 = vpop.f32.mrf.mxu0
  %v297 = vadd.f32 %v225, %v296
  %298 = vmatmul.f32.gmra.mxu0 %v235
  %v299 = vpop.f32.mrf.mxu0
  %v300 = vadd.f32 %v225, %v299
  %301 = vmatmul.f32.gmra.mxu0 %v238
  %v302 = vpop.f32.mrf.mxu0
  %v303 = vadd.f32 %v225, %v302
  %304 = vmatmul.f32.gmra.mxu0 %v241
  %v305 = vpop.f32.mrf.mxu0
  %v306 = vadd.f32 %v225, %v305
  %307 = vmatmul.f32.gmra.mxu0 %v244
  %v308 = vpop.f32.mrf.mxu0
  %v309 = vadd.f32 %v225, %v308
  %310 = vmatmul.f32.gmra.mxu0 %v247
  %v311 = vpop.f32.mrf.mxu0
  %v312 = vadd.f32 %v225, %v311
  %313 = vmatmul.f32.gmra.mxu0 %v250
  %v314 = vpop.f32.mrf.mxu0
  %v315 = vadd.f32 %v225, %v314
  %316 = vmatmul.f32.gmra.mxu0 %v253
  %v317 = vpop.f32.mrf.mxu0
  %v318 = vadd.f32 %v225, %v317
  %319 = vmatmul.f32.gmra.mxu0 %v256
  %v320 = vpop.f32.mrf.mxu0
  %v321 = vadd.f32 %v225, %v320
  %322 = vmatmul.f32.gmra.mxu0 %v259
  %v323 = vpop.f32.mrf.mxu0
  %v324 = vadd.f32 %v225, %v323
  %325 = vmatmul.f32.gmra.mxu0 %v262
  %v326 = vpop.f32.mrf.mxu0
  %v327 = vadd.f32 %v225, %v326
  %328 = vmatmul.f32.gmra.mxu0 %v265
  %v329 = vpop.f32.mrf.mxu0
  %v330 = vadd.f32 %v225, %v329
  %331 = vmatmul.f32.gmra.mxu0 %v268
  %v332 = vpop.f32.mrf.mxu0
  %v333 = vadd.f32 %v225, %v332
  %334 = vmatmul.f32.gmra.mxu0 %v271
  %v335 = vpop.f32.mrf.mxu0
  %v336 = vadd.f32 %v225, %v335
  %337 = vmatmul.f32.gmra.mxu0 %v274
  %v338 = vpop.f32.mrf.mxu0
  %v339 = vadd.f32 %v225, %v338
  %340 = vdwg.mxu0
  %v341 = vadd.f32 %v294, %v61
  %v342 = vadd.f32 %v297, %v62
  %v343 = vadd.f32 %v300, %v63
  %v344 = vadd.f32 %v303, %v64
  %v345 = vadd.f32 %v306, %v65
  %v346 = vadd.f32 %v309, %v66
  %v347 = vadd.f32 %v312, %v67
  %v348 = vadd.f32 %v315, %v68
  %v349 = vadd.f32 %v318, %v69
  %v350 = vadd.f32 %v321, %v70
  %v351 = vadd.f32 %v324, %v71
  %v352 = vadd.f32 %v327, %v72
  %v353 = vadd.f32 %v330, %v73
  %v354 = vadd.f32 %v333, %v74
  %v355 = vadd.f32 %v336, %v75
  %v356 = vadd.f32 %v339, %v76
  %v357 = vsel %vm85, %v341, 0.0
  %358 = vadd.xlane.f32.xlu0 %v357
  %v359 = vpop.xlane.xlu0 %358
  %v360 = vsel %vm85, %v342, 0.0
  %361 = vadd.xlane.f32.xlu0 %v360
  %v362 = vpop.xlane.xlu0 %361
  %v363 = vsel %vm85, %v343, 0.0
  %364 = vadd.xlane.f32.xlu0 %v363
  %v365 = vpop.xlane.xlu0 %364
  %v366 = vsel %vm85, %v344, 0.0
  %367 = vadd.xlane.f32.xlu0 %v366
  %v368 = vpop.xlane.xlu0 %367
  %v369 = vsel %vm85, %v345, 0.0
  %370 = vadd.xlane.f32.xlu0 %v369
  %v371 = vpop.xlane.xlu0 %370
  %v372 = vsel %vm85, %v346, 0.0
  %373 = vadd.xlane.f32.xlu0 %v372
  %v374 = vpop.xlane.xlu0 %373
  %v375 = vsel %vm85, %v347, 0.0
  %376 = vadd.xlane.f32.xlu0 %v375
  %v377 = vpop.xlane.xlu0 %376
  %v378 = vsel %vm85, %v348, 0.0
  %379 = vadd.xlane.f32.xlu0 %v378
  %v380 = vpop.xlane.xlu0 %379
  %v381 = vsel %vm85, %v349, 0.0
  %382 = vadd.xlane.f32.xlu0 %v381
  %v383 = vpop.xlane.xlu0 %382
  %v384 = vsel %vm85, %v350, 0.0
  %385 = vadd.xlane.f32.xlu0 %v384
  %v386 = vpop.xlane.xlu0 %385
  %v387 = vsel %vm85, %v351, 0.0
  %388 = vadd.xlane.f32.xlu0 %v387
  %v389 = vpop.xlane.xlu0 %388
  %v390 = vsel %vm85, %v352, 0.0
  %391 = vadd.xlane.f32.xlu0 %v390
  %v392 = vpop.xlane.xlu0 %391
  %v393 = vsel %vm85, %v353, 0.0
  %394 = vadd.xlane.f32.xlu0 %v393
  %v395 = vpop.xlane.xlu0 %394
  %v396 = vsel %vm85, %v354, 0.0
  %397 = vadd.xlane.f32.xlu0 %v396
  %v398 = vpop.xlane.xlu0 %397
  %v399 = vsel %vm85, %v355, 0.0
  %400 = vadd.xlane.f32.xlu0 %v399
  %v401 = vpop.xlane.xlu0 %400
  %v402 = vsel %vm85, %v356, 0.0
  %403 = vadd.xlane.f32.xlu0 %v402
  %v404 = vpop.xlane.xlu0 %403
  %v405 = vrcp.pop 32.0
  %v406 = vmul.f32 32.0, %v405
  %v407 = vsub.f32 1.0, %v406
  %v408 = vmul.f32 %v405, %v407
  %v409 = vadd.f32 %v405, %v408
  %vm410 = vweird.f32 %v405
  %v411 = vsel %vm410, %v405, %v409
  %v412 = vmul.f32 %v359, %v411
  %v413 = vmul.f32 %v362, %v411
  %v414 = vmul.f32 %v365, %v411
  %v415 = vmul.f32 %v368, %v411
  %v416 = vmul.f32 %v371, %v411
  %v417 = vmul.f32 %v374, %v411
  %v418 = vmul.f32 %v377, %v411
  %v419 = vmul.f32 %v380, %v411
  %v420 = vmul.f32 %v383, %v411
  %v421 = vmul.f32 %v386, %v411
  %v422 = vmul.f32 %v389, %v411
  %v423 = vmul.f32 %v392, %v411
  %v424 = vmul.f32 %v395, %v411
  %v425 = vmul.f32 %v398, %v411
  %v426 = vmul.f32 %v401, %v411
  %v427 = vmul.f32 %v404, %v411
  %v428 = vsub.f32 %v341, %v412
  %v429 = vsub.f32 %v342, %v413
  %v430 = vsub.f32 %v343, %v414
  %v431 = vsub.f32 %v344, %v415
  %v432 = vsub.f32 %v345, %v416
  %v433 = vsub.f32 %v346, %v417
  %v434 = vsub.f32 %v347, %v418
  %v435 = vsub.f32 %v348, %v419
  %v436 = vsub.f32 %v349, %v420
  %v437 = vsub.f32 %v350, %v421
  %v438 = vsub.f32 %v351, %v422
  %v439 = vsub.f32 %v352, %v423
  %v440 = vsub.f32 %v353, %v424
  %v441 = vsub.f32 %v354, %v425
  %v442 = vsub.f32 %v355, %v426
  %v443 = vsub.f32 %v356, %v427
  %v444 = vmul.f32 %v428, %v428
  %v445 = vmul.f32 %v429, %v429
  %v446 = vmul.f32 %v430, %v430
  %v447 = vmul.f32 %v431, %v431
  %v448 = vmul.f32 %v432, %v432
  %v449 = vmul.f32 %v433, %v433
  %v450 = vmul.f32 %v434, %v434
  %v451 = vmul.f32 %v435, %v435
  %v452 = vmul.f32 %v436, %v436
  %v453 = vmul.f32 %v437, %v437
  %v454 = vmul.f32 %v438, %v438
  %v455 = vmul.f32 %v439, %v439
  %v456 = vmul.f32 %v440, %v440
  %v457 = vmul.f32 %v441, %v441
  %v458 = vmul.f32 %v442, %v442
  %v459 = vmul.f32 %v443, %v443
  %v460 = vsel %vm85, %v444, 0.0
  %461 = vadd.xlane.f32.xlu0 %v460
  %v462 = vpop.xlane.xlu0 %461
  %v463 = vsel %vm85, %v445, 0.0
  %464 = vadd.xlane.f32.xlu0 %v463
  %v465 = vpop.xlane.xlu0 %464
  %v466 = vsel %vm85, %v446, 0.0
  %467 = vadd.xlane.f32.xlu0 %v466
  %v468 = vpop.xlane.xlu0 %467
  %v469 = vsel %vm85, %v447, 0.0
  %470 = vadd.xlane.f32.xlu0 %v469
  %v471 = vpop.xlane.xlu0 %470
  %v472 = vsel %vm85, %v448, 0.0
  %473 = vadd.xlane.f32.xlu0 %v472
  %v474 = vpop.xlane.xlu0 %473
  %v475 = vsel %vm85, %v449, 0.0
  %476 = vadd.xlane.f32.xlu0 %v475
  %v477 = vpop.xlane.xlu0 %476
  %v478 = vsel %vm85, %v450, 0.0
  %479 = vadd.xlane.f32.xlu0 %v478
  %v480 = vpop.xlane.xlu0 %479
  %v481 = vsel %vm85, %v451, 0.0
  %482 = vadd.xlane.f32.xlu0 %v481
  %v483 = vpop.xlane.xlu0 %482
  %v484 = vsel %vm85, %v452, 0.0
  %485 = vadd.xlane.f32.xlu0 %v484
  %v486 = vpop.xlane.xlu0 %485
  %v487 = vsel %vm85, %v453, 0.0
  %488 = vadd.xlane.f32.xlu0 %v487
  %v489 = vpop.xlane.xlu0 %488
  %v490 = vsel %vm85, %v454, 0.0
  %491 = vadd.xlane.f32.xlu0 %v490
  %v492 = vpop.xlane.xlu0 %491
  %v493 = vsel %vm85, %v455, 0.0
  %494 = vadd.xlane.f32.xlu0 %v493
  %v495 = vpop.xlane.xlu0 %494
  %v496 = vsel %vm85, %v456, 0.0
  %497 = vadd.xlane.f32.xlu0 %v496
  %v498 = vpop.xlane.xlu0 %497
  %v499 = vsel %vm85, %v457, 0.0
  %500 = vadd.xlane.f32.xlu0 %v499
  %v501 = vpop.xlane.xlu0 %500
  %v502 = vsel %vm85, %v458, 0.0
  %503 = vadd.xlane.f32.xlu0 %v502
  %v504 = vpop.xlane.xlu0 %503
  %v505 = vsel %vm85, %v459, 0.0
  %506 = vadd.xlane.f32.xlu0 %v505
  %v507 = vpop.xlane.xlu0 %506
  %v508 = vmul.f32 %v462, %v411
  %v509 = vmul.f32 %v465, %v411
  %v510 = vmul.f32 %v468, %v411
  %v511 = vmul.f32 %v471, %v411
  %v512 = vmul.f32 %v474, %v411
  %v513 = vmul.f32 %v477, %v411
  %v514 = vmul.f32 %v480, %v411
  %v515 = vmul.f32 %v483, %v411
  %v516 = vmul.f32 %v486, %v411
  %v517 = vmul.f32 %v489, %v411
  %v518 = vmul.f32 %v492, %v411
  %v519 = vmul.f32 %v495, %v411
  %v520 = vmul.f32 %v498, %v411
  %v521 = vmul.f32 %v501, %v411
  %v522 = vmul.f32 %v504, %v411
  %v523 = vmul.f32 %v507, %v411
  %v524 = vadd.f32 %v508, 1e-06
  %v525 = vadd.f32 %v509, 1e-06
  %v526 = vadd.f32 %v510, 1e-06
  %v527 = vadd.f32 %v511, 1e-06
  %v528 = vadd.f32 %v512, 1e-06
  %v529 = vadd.f32 %v513, 1e-06
  %v530 = vadd.f32 %v514, 1e-06
  %v531 = vadd.f32 %v515, 1e-06
  %v532 = vadd.f32 %v516, 1e-06
  %v533 = vadd.f32 %v517, 1e-06
  %v534 = vadd.f32 %v518, 1e-06
  %v535 = vadd.f32 %v519, 1e-06
  %v536 = vadd.f32 %v520, 1e-06
  %v537 = vadd.f32 %v521, 1e-06
  %v538 = vadd.f32 %v522, 1e-06
  %v539 = vadd.f32 %v523, 1e-06
  %v540 = vrsqrt.pop %v524
  %v541 = vmul.f32 %v540, %v524
  %v542 = vmul.f32 %v541, %v540
  %v543 = vmul.f32 0.5, %v542
  %v544 = vsub.f32 1.5, %v543
  %v545 = vmul.f32 %v540, %v544
  %vm546 = vweird.f32 %v524
  %vm547 = vweird.f32 %v540
  %vm548 = vmor %vm546, %vm547
  %v549 = vsel %vm548, %v540, %v545
  %v550 = vrsqrt.pop %v525
  %v551 = vmul.f32 %v550, %v525
  %v552 = vmul.f32 %v551, %v550
  %v553 = vmul.f32 0.5, %v552
  %v554 = vsub.f32 1.5, %v553
  %v555 = vmul.f32 %v550, %v554
  %vm556 = vweird.f32 %v525
  %vm557 = vweird.f32 %v550
  %vm558 = vmor %vm556, %vm557
  %v559 = vsel %vm558, %v550, %v555
  %v560 = vrsqrt.pop %v526
  %v561 = vmul.f32 %v560, %v526
  %v562 = vmul.f32 %v561, %v560
  %v563 = vmul.f32 0.5, %v562
  %v564 = vsub.f32 1.5, %v563
  %v565 = vmul.f32 %v560, %v564
  %vm566 = vweird.f32 %v526
  %vm567 = vweird.f32 %v560
  %vm568 = vmor %vm566, %vm567
  %v569 = vsel %vm568, %v560, %v565
  %v570 = vrsqrt.pop %v527
  %v571 = vmul.f32 %v570, %v527
  %v572 = vmul.f32 %v571, %v570
  %v573 = vmul.f32 0.5, %v572
  %v574 = vsub.f32 1.5, %v573
  %v575 = vmul.f32 %v570, %v574
  %vm576 = vweird.f32 %v527
  %vm577 = vweird.f32 %v570
  %vm578 = vmor %vm576, %vm577
  %v579 = vsel %vm578, %v570, %v575
  %v580 = vrsqrt.pop %v528
  %v581 = vmul.f32 %v580, %v528
  %v582 = vmul.f32 %v581, %v580
  %v583 = vmul.f32 0.5, %v582
  %v584 = vsub.f32 1.5, %v583
  %v585 = vmul.f32 %v580, %v584
  %vm586 = vweird.f32 %v528
  %vm587 = vweird.f32 %v580
  %vm588 = vmor %vm586, %vm587
  %v589 = vsel %vm588, %v580, %v585
  %v590 = vrsqrt.pop %v529
  %v591 = vmul.f32 %v590, %v529
  %v592 = vmul.f32 %v591, %v590
  %v593 = vmul.f32 0.5, %v592
  %v594 = vsub.f32 1.5, %v593
  %v595 = vmul.f32 %v590, %v594
  %vm596 = vweird.f32 %v529
  %vm597 = vweird.f32 %v590
  %vm598 = vmor %vm596, %vm597
  %v599 = vsel %vm598, %v590, %v595
  %v600 = vrsqrt.pop %v530
  %v601 = vmul.f32 %v600, %v530
  %v602 = vmul.f32 %v601, %v600
  %v603 = vmul.f32 0.5, %v602
  %v604 = vsub.f32 1.5, %v603
  %v605 = vmul.f32 %v600, %v604
  %vm606 = vweird.f32 %v530
  %vm607 = vweird.f32 %v600
  %vm608 = vmor %vm606, %vm607
  %v609 = vsel %vm608, %v600, %v605
  %v610 = vrsqrt.pop %v531
  %v611 = vmul.f32 %v610, %v531
  %v612 = vmul.f32 %v611, %v610
  %v613 = vmul.f32 0.5, %v612
  %v614 = vsub.f32 1.5, %v613
  %v615 = vmul.f32 %v610, %v614
  %vm616 = vweird.f32 %v531
  %vm617 = vweird.f32 %v610
  %vm618 = vmor %vm616, %vm617
  %v619 = vsel %vm618, %v610, %v615
  %v620 = vrsqrt.pop %v532
  %v621 = vmul.f32 %v620, %v532
  %v622 = vmul.f32 %v621, %v620
  %v623 = vmul.f32 0.5, %v622
  %v624 = vsub.f32 1.5, %v623
  %v625 = vmul.f32 %v620, %v624
  %vm626 = vweird.f32 %v532
  %vm627 = vweird.f32 %v620
  %vm628 = vmor %vm626, %vm627
  %v629 = vsel %vm628, %v620, %v625
  %v630 = vrsqrt.pop %v533
  %v631 = vmul.f32 %v630, %v533
  %v632 = vmul.f32 %v631, %v630
  %v633 = vmul.f32 0.5, %v632
  %v634 = vsub.f32 1.5, %v633
  %v635 = vmul.f32 %v630, %v634
  %vm636 = vweird.f32 %v533
  %vm637 = vweird.f32 %v630
  %vm638 = vmor %vm636, %vm637
  %v639 = vsel %vm638, %v630, %v635
  %v640 = vrsqrt.pop %v534
  %v641 = vmul.f32 %v640, %v534
  %v642 = vmul.f32 %v641, %v640
  %v643 = vmul.f32 0.5, %v642
  %v644 = vsub.f32 1.5, %v643
  %v645 = vmul.f32 %v640, %v644
  %vm646 = vweird.f32 %v534
  %vm647 = vweird.f32 %v640
  %vm648 = vmor %vm646, %vm647
  %v649 = vsel %vm648, %v640, %v645
  %v650 = vrsqrt.pop %v535
  %v651 = vmul.f32 %v650, %v535
  %v652 = vmul.f32 %v651, %v650
  %v653 = vmul.f32 0.5, %v652
  %v654 = vsub.f32 1.5, %v653
  %v655 = vmul.f32 %v650, %v654
  %vm656 = vweird.f32 %v535
  %vm657 = vweird.f32 %v650
  %vm658 = vmor %vm656, %vm657
  %v659 = vsel %vm658, %v650, %v655
  %v660 = vrsqrt.pop %v536
  %v661 = vmul.f32 %v660, %v536
  %v662 = vmul.f32 %v661, %v660
  %v663 = vmul.f32 0.5, %v662
  %v664 = vsub.f32 1.5, %v663
  %v665 = vmul.f32 %v660, %v664
  %vm666 = vweird.f32 %v536
  %vm667 = vweird.f32 %v660
  %vm668 = vmor %vm666, %vm667
  %v669 = vsel %vm668, %v660, %v665
  %v670 = vrsqrt.pop %v537
  %v671 = vmul.f32 %v670, %v537
  %v672 = vmul.f32 %v671, %v670
  %v673 = vmul.f32 0.5, %v672
  %v674 = vsub.f32 1.5, %v673
  %v675 = vmul.f32 %v670, %v674
  %vm676 = vweird.f32 %v537
  %vm677 = vweird.f32 %v670
  %vm678 = vmor %vm676, %vm677
  %v679 = vsel %vm678, %v670, %v675
  %v680 = vrsqrt.pop %v538
  %v681 = vmul.f32 %v680, %v538
  %v682 = vmul.f32 %v681, %v680
  %v683 = vmul.f32 0.5, %v682
  %v684 = vsub.f32 1.5, %v683
  %v685 = vmul.f32 %v680, %v684
  %vm686 = vweird.f32 %v538
  %vm687 = vweird.f32 %v680
  %vm688 = vmor %vm686, %vm687
  %v689 = vsel %vm688, %v680, %v685
  %v690 = vrsqrt.pop %v539
  %v691 = vmul.f32 %v690, %v539
  %v692 = vmul.f32 %v691, %v690
  %v693 = vmul.f32 0.5, %v692
  %v694 = vsub.f32 1.5, %v693
  %v695 = vmul.f32 %v690, %v694
  %vm696 = vweird.f32 %v539
  %vm697 = vweird.f32 %v690
  %vm698 = vmor %vm696, %vm697
  %v699 = vsel %vm698, %v690, %v695
  %v700 = vmul.f32 %v428, %v549
  %v701 = vmul.f32 %v429, %v559
  %v702 = vmul.f32 %v430, %v569
  %v703 = vmul.f32 %v431, %v579
  %v704 = vmul.f32 %v432, %v589
  %v705 = vmul.f32 %v433, %v599
  %v706 = vmul.f32 %v434, %v609
  %v707 = vmul.f32 %v435, %v619
  %v708 = vmul.f32 %v436, %v629
  %v709 = vmul.f32 %v437, %v639
  %v710 = vmul.f32 %v438, %v649
  %v711 = vmul.f32 %v439, %v659
  %v712 = vmul.f32 %v440, %v669
  %v713 = vmul.f32 %v441, %v679
  %v714 = vmul.f32 %v442, %v689
  %v715 = vmul.f32 %v443, %v699
  %v716 = vld [vmem:[%s6] sm:$0x1]
  %v718 = vperm.slane %v716, 0
  %v720 = vmul.f32 %v700, %v718
  %v721 = vmul.f32 %v701, %v718
  %v722 = vmul.f32 %v702, %v718
  %v723 = vmul.f32 %v703, %v718
  %v724 = vmul.f32 %v704, %v718
  %v725 = vmul.f32 %v705, %v718
  %v726 = vmul.f32 %v706, %v718
  %v727 = vmul.f32 %v707, %v718
  %v728 = vmul.f32 %v708, %v718
  %v729 = vmul.f32 %v709, %v718
  %v730 = vmul.f32 %v710, %v718
  %v731 = vmul.f32 %v711, %v718
  %v732 = vmul.f32 %v712, %v718
  %v733 = vmul.f32 %v713, %v718
  %v734 = vmul.f32 %v714, %v718
  %v735 = vmul.f32 %v715, %v718
  %v736 = vld [vmem:[%s7] sm:$0x1]
  %v738 = vperm.slane %v736, 0
  %v740 = vadd.f32 %v720, %v738
  %v741 = vadd.f32 %v721, %v738
  %v742 = vadd.f32 %v722, %v738
  %v743 = vadd.f32 %v723, %v738
  %v744 = vadd.f32 %v724, %v738
  %v745 = vadd.f32 %v725, %v738
  %v746 = vadd.f32 %v726, %v738
  %v747 = vadd.f32 %v727, %v738
  %v748 = vadd.f32 %v728, %v738
  %v749 = vadd.f32 %v729, %v738
  %v750 = vadd.f32 %v730, %v738
  %v751 = vadd.f32 %v731, %v738
  %v752 = vadd.f32 %v732, %v738
  %v753 = vadd.f32 %v733, %v738
  %v754 = vadd.f32 %v734, %v738
  %v755 = vadd.f32 %v735, %v738
  %756 = vst.msk [vmem:[%s8] sm:$0xff] %vm85, %v740
  %757 = vst.msk [vmem:[%s8 + $0x8] sm:$0xff] %vm85, %v741
  %758 = vst.msk [vmem:[%s8 + $0x10] sm:$0xff] %vm85, %v742
  %759 = vst.msk [vmem:[%s8 + $0x18] sm:$0xff] %vm85, %v743
  %760 = vst.msk [vmem:[%s8 + $0x20] sm:$0xff] %vm85, %v744
  %761 = vst.msk [vmem:[%s8 + $0x28] sm:$0xff] %vm85, %v745
  %762 = vst.msk [vmem:[%s8 + $0x30] sm:$0xff] %vm85, %v746
  %763 = vst.msk [vmem:[%s8 + $0x38] sm:$0xff] %vm85, %v747
  %764 = vst.msk [vmem:[%s8 + $0x40] sm:$0xff] %vm85, %v748
  %765 = vst.msk [vmem:[%s8 + $0x48] sm:$0xff] %vm85, %v749
  %766 = vst.msk [vmem:[%s8 + $0x50] sm:$0xff] %vm85, %v750
  %767 = vst.msk [vmem:[%s8 + $0x58] sm:$0xff] %vm85, %v751
  %768 = vst.msk [vmem:[%s8 + $0x60] sm:$0xff] %vm85, %v752
  %769 = vst.msk [vmem:[%s8 + $0x68] sm:$0xff] %vm85, %v753
  %770 = vst.msk [vmem:[%s8 + $0x70] sm:$0xff] %vm85, %v754
  %771 = vst.msk [vmem:[%s8 + $0x78] sm:$0xff] %vm85, %v755
  // Predicated region
  $region34: #{reformer_encoder.12} parent=0 // pred_check
    _
  $region35: #{reformer_encoder.12} parent=0 // pred_check_branch
    %773 = sbr.rel (0) target = $region37
  $region36: #{reformer_encoder.12} parent=0 // pred_region
    _
  $region37: #{reformer_encoder.12} parent=0 // pred_fallthru
    _
  // Predicated region
  $region38: #{reformer_encoder.12} parent=0 // pred_check
    _
  $region39: #{reformer_encoder.12} parent=0 // pred_check_branch
    %775 = sbr.rel (0) target = $region41
  $region40: #{reformer_encoder.12} parent=0 // pred_region
    _
  $region41: #{reformer_encoder.12} parent=0 // pred_fallthru
    _

</llo_original>
